<compile_context>
chip_gen: v7x
topology: tpu7x:2x2x1
jax: 0.10.0
libtpu: 0.0.40
codegen_flags: <defaults>
</compile_context>

<pallas_src>
import functools
import numpy as np
import jax
import jax.numpy as jnp
from jax import lax
from jax.experimental import pallas as pl
from jax.experimental.pallas import tpu as pltpu


def _round_up(x, m):
    return ((x + m - 1) // m) * m


def _pick_tile_m(n_points, max_tile_m):
    # Fat tiles for v5e/v6e, but keep >=2 grid steps so v7x megacore splits.
    cap = max(512, _round_up(int(max_tile_m), 512))
    t = _round_up(pl.cdiv(max(int(n_points), 1), 2), 512)
    return int(min(cap, t))


def _vmem_capacity_bytes(default=64 << 20):
    try:
        return int(pltpu.get_tpu_info().vmem_capacity_bytes)
    except Exception:   # older jax / non-TPU trace context
        return default


def pinn_kernel(x_ref, wh_ref, wo_ref, o_ref, feat, *,
                n_input, ones_row, x_rows, n_hidden, n_layers_hidden,
                k_hidden, k_out, mxu_dtype):
    tile_m = feat.shape[1]

    # (Re-)initialize only the feature rows that are read before being written
    # this grid step: the x rows, the constant-1 bias row, and the zero pad
    # rows up to x_rows.  Hidden rows are fully overwritten by each layer
    # before the first dot that reads them.  Scratch VMEM is per-core and
    # uninitialized, so this must run every step (megacore sharding gives each
    # TensorCore its own scratch).
    row = lax.broadcasted_iota(jnp.int32, (x_rows, tile_m), 0)
    feat[:x_rows, :] = jnp.where(row == ones_row, 1.0, 0.0).astype(jnp.float32)
    feat[:n_input, :] = x_ref[...]

    def mxu(a, b):
        return jnp.dot(a.astype(mxu_dtype), b.astype(mxu_dtype),
                       preferred_element_type=jnp.float32)

    # Unrolled hidden layers (dense skip connections).  Biases are folded into
    # the weights via the always-1 row, so each layer is one MXU dot + EUP sin
    # and a full-lane, sublane-aligned (n_hidden x tile_m) store.  Only the
    # live feature prefix is contracted.
    for i in range(n_layers_hidden):
        k = k_hidden[i]
        h = jnp.sin(mxu(wh_ref[i, :, :k], feat[:k, :]))
        start = x_rows + i * n_hidden
        feat[start:start + n_hidden, :] = h

    # Output layer: lane-dense (n_out_rows x tile_m) block.
    o_ref[...] = mxu(wo_ref[...], feat[:k_out, :]).astype(o_ref.dtype)


def make_pinn(packed, meta, *, max_tile_m=2048, mxu_dtype=jnp.float32):
    """Builds forward(x: (N, n_input) f32) -> (N, n_output) f32."""
    wh, wo = packed                      # wh: (L, H, d_k_max), wo: (n_out_rows, d_valid)
    L, H, d_k_max = wh.shape
    n_out_rows, d_valid = wo.shape
    n_input = meta["n_input"]
    n_output = meta["n_output"]

    kern = functools.partial(
        pinn_kernel,
        n_input=n_input, ones_row=meta["ones_row"], x_rows=meta["x_rows"],
        n_hidden=H, n_layers_hidden=L,
        k_hidden=tuple(meta["k_hidden"]), k_out=meta["k_out"],
        mxu_dtype=mxu_dtype)

    def forward(x):
        n_points = x.shape[0]
        tile_m = _pick_tile_m(n_points, max_tile_m)
        n_padded = _round_up(max(n_points, 1), tile_m)

        x_t = x.astype(jnp.float32).T                        # (n_input, N)
        if n_padded != n_points:
            x_t = jnp.pad(x_t, ((0, 0), (0, n_padded - n_points)))
        grid = (n_padded // tile_m,)

        # VMEM budget: double-buffered x/out tiles + resident weights (constant
        # index_map -> counted once) + feature scratch + headroom; clamped to
        # the chip's physical VMEM capacity (64 MiB per TC on v7x).
        budget = int(2 * n_input * tile_m * 4
                     + 2 * n_out_rows * tile_m * 4
                     + (wh.size + wo.size) * 4
                     + d_valid * tile_m * 4
                     + (4 << 20))
        cap = _vmem_capacity_bytes()
        vmem_limit = int(min(max(budget, 32 << 20), max(cap - (8 << 20), 16 << 20)))

        flops = 2 * n_padded * (sum(meta["k_hidden"]) * H
                                + meta["k_out"] * n_out_rows)
        cost = pl.CostEstimate(
            flops=int(flops),
            transcendentals=int(n_padded * L * H),
            bytes_accessed=int(4 * (n_padded * (n_input + n_out_rows)
                                    + wh.size + wo.size)))

        out_t = pl.pallas_call(
            kern,
            out_shape=jax.ShapeDtypeStruct((n_out_rows, n_padded), jnp.float32),
            grid_spec=pltpu.PrefetchScalarGridSpec(
                num_scalar_prefetch=0,
                grid=grid,
                in_specs=[
                    # x^T tile (n_input rows == full dim -> legal block shape)
                    pl.BlockSpec((n_input, tile_m), lambda i: (0, i)),
                    # resident weights (constant index map)
                    pl.BlockSpec((L, H, d_k_max), lambda i: (0, 0, 0)),
                    pl.BlockSpec((n_out_rows, d_valid), lambda i: (0, 0)),
                ],
                out_specs=pl.BlockSpec((n_out_rows, tile_m), lambda i: (0, i)),
                scratch_shapes=[pltpu.VMEM((d_valid, tile_m), jnp.float32)],
            ),
            compiler_params=pltpu.CompilerParams(
                dimension_semantics=("parallel",),
                vmem_limit_bytes=vmem_limit),
            cost_estimate=cost,
        )(x_t, wh, wo)

        return out_t[:n_output, :n_points].T

    return forward


def init_pinn_raw(key, n_input, n_output, n_layers, n_hidden, c=6.0):
    """SIREN weight init + PyTorch-default uniform bias init.

    Returns a list of (W (out, in), b (out,)) in torch layout: one entry per
    hidden layer (dense=True feature growth) and one final output entry.
    """
    assert n_layers >= 2
    L = n_layers - 1
    keys = jax.random.split(key, 2 * L + 2)
    raw = []
    n_in = n_input
    for i in range(L):
        w_std = (1.0 / n_in) if i == 0 else float(np.sqrt(c / n_in))
        w = jax.random.uniform(keys[2 * i], (n_hidden, n_in), jnp.float32,
                               -w_std, w_std)
        b_std = 1.0 / float(np.sqrt(n_in))
        b = jax.random.uniform(keys[2 * i + 1], (n_hidden,), jnp.float32,
                               -b_std, b_std)
        raw.append((w, b))
        n_in += n_hidden                      # dense=True: feature width grows
    w_std = float(np.sqrt(c / n_in))
    wo = jax.random.uniform(keys[-2], (n_output, n_in), jnp.float32,
                            -w_std, w_std)
    b_std = 1.0 / float(np.sqrt(n_in))
    bo = jax.random.uniform(keys[-1], (n_output,), jnp.float32, -b_std, b_std)
    raw.append((wo, bo))
    return raw


def pack_params(raw, n_input, n_hidden, n_output):
    """Packs torch-layout weights into the kernel's feature-major, bias-folded layout."""
    L = len(raw) - 1
    H = n_hidden
    ones_row = n_input                       # constant-1 bias feature row
    x_rows = _round_up(n_input + 1, 8)       # 8-aligned start of hidden rows
    d_valid = x_rows + L * H
    d_k_max = x_rows + (L - 1) * H if L > 0 else x_rows
    n_out_rows = max(8, _round_up(n_output, 8))

    wh = np.zeros((L, H, d_k_max), np.float32)
    for i in range(L):
        w, b = raw[i]
        w = np.asarray(w)                    # (H, n_input + i*H), torch (out, in)
        wh[i, :, :n_input] = w[:, :n_input]
        wh[i, :, ones_row] = np.asarray(b)   # bias via the ones row
        for j in range(i):
            wh[i, :, x_rows + j * H:x_rows + (j + 1) * H] = \
                w[:, n_input + j * H:n_input + (j + 1) * H]

    wo_t, bo = raw[-1]
    wo_t = np.asarray(wo_t)                  # (n_output, n_input + L*H)
    wo = np.zeros((n_out_rows, d_valid), np.float32)
    wo[:n_output, :n_input] = wo_t[:, :n_input]
    wo[:n_output, ones_row] = np.asarray(bo)
    for j in range(L):
        wo[:n_output, x_rows + j * H:x_rows + (j + 1) * H] = \
            wo_t[:, n_input + j * H:n_input + (j + 1) * H]

    # Per-layer live contraction widths (all 8-aligned by construction).
    k_hidden = [x_rows + i * H for i in range(L)]

    meta = dict(n_input=n_input, n_output=n_output, n_hidden=H,
                n_layers_hidden=L, ones_row=ones_row, x_rows=x_rows,
                d_valid=d_valid, k_hidden=tuple(k_hidden), k_out=d_valid,
                n_out_rows=n_out_rows)
    return (jnp.asarray(wh), jnp.asarray(wo)), meta


def pinn_reference(raw, x):
    """Pure-JAX reference of the PyTorch forward (dense=True, sin activation)."""
    feat = x
    for (w, b) in raw[:-1]:
        y = jnp.sin(feat @ w.T + b)
        feat = jnp.concatenate([feat, y], axis=-1)
    w, b = raw[-1]
    return feat @ w.T + b


if __name__ == "__main__":
    # Small PINN: 3 coords in, 2 outputs, 4 layers (3 hidden), hidden=32.
    n_input, n_output, n_layers, n_hidden = 3, 2, 4, 32
    n_points = 1000          # not a multiple of tile_m -> exercises row padding

    key = jax.random.PRNGKey(0)
    kp, kx = jax.random.split(key)
    raw = init_pinn_raw(kp, n_input, n_output, n_layers, n_hidden)
    packed, meta = pack_params(raw, n_input, n_hidden, n_output)

    x = jax.random.normal(kx, (n_points, n_input), jnp.float32)
    u_ref = pinn_reference(raw, x)

    # Default (f32 MXU operands) path: strict tolerance vs. the reference.
    forward = make_pinn(packed, meta)
    u = jax.block_until_ready(forward(x))
    np.testing.assert_allclose(np.asarray(u), np.asarray(u_ref),
                               rtol=1e-4, atol=1e-4)

    # bf16-MXU-operand path (perf option from the review): operands cast at the
    # dot, f32 accumulation/elementwise -> validated at a looser tolerance.
    forward_bf16 = make_pinn(packed, meta, mxu_dtype=jnp.bfloat16)
    u_bf16 = jax.block_until_ready(forward_bf16(x))
    np.testing.assert_allclose(np.asarray(u_bf16), np.asarray(u_ref),
                               rtol=1e-1, atol=1e-1)

    print("KERNEL_OK")
</pallas_src>

<mosaic_0001>
module attributes {stable_mosaic.version = 11 : i64} {
  func.func @pinn_kernel(%arg0: i32, %arg1: memref<3x512xf32, #tpu.memory_space<vmem>>, %arg2: memref<3x32x72xf32, #tpu.memory_space<vmem>>, %arg3: memref<8x104xf32, #tpu.memory_space<vmem>>, %arg4: memref<8x512xf32, #tpu.memory_space<vmem>>, %arg5: memref<104x512xf32, #tpu.memory_space<vmem>>) attributes {dimension_semantics = [#tpu.dimension_semantics<parallel>], iteration_bounds = array<i64: 2>, scalar_prefetch = 0 : i64, scratch_operands = 1 : i64, tpu.core_type = #tpu.core_type<tc>, window_params = [{transform_indices = @transform_0, window_bounds = array<i64: 3, 512>}, {pipeline_mode = #tpu.pipeline_mode<synchronous>, transform_indices = @transform_1, window_bounds = array<i64: 3, 32, 72>}, {pipeline_mode = #tpu.pipeline_mode<synchronous>, transform_indices = @transform_2, window_bounds = array<i64: 8, 104>}, {transform_indices = @transform_3, window_bounds = array<i64: 8, 512>}]} {
    %0 = tpu.iota {dimensions = array<i32: 0>} : vector<8x512xi32>
    %c3_i32 = arith.constant 3 : i32
    %1 = vector.broadcast %c3_i32 : i32 to vector<8x512xi32>
    %2 = arith.cmpi eq, %0, %1 : vector<8x512xi32>
    %cst = arith.constant 1.000000e+00 : f32
    %cst_0 = arith.constant 0.000000e+00 : f32
    %3 = vector.broadcast %cst : f32 to vector<8x512xf32>
    %4 = vector.broadcast %cst_0 : f32 to vector<8x512xf32>
    %5 = arith.select %2, %3, %4 : vector<8x512xi1>, vector<8x512xf32>
    %c0 = arith.constant 0 : index
    %c0_1 = arith.constant 0 : index
    %6 = vector.load %arg5[%c0, %c0_1] : memref<104x512xf32, #tpu.memory_space<vmem>>, vector<8x512xf32>
    tpu.vector_store %arg5[%c0, %c0_1], %5 {strides = array<i32>} : memref<104x512xf32, #tpu.memory_space<vmem>>, vector<8x512xf32>,
    %c0_2 = arith.constant 0 : index
    %c0_3 = arith.constant 0 : index
    %7 = vector.load %arg1[%c0_2, %c0_3] : memref<3x512xf32, #tpu.memory_space<vmem>>, vector<3x512xf32>
    %c0_4 = arith.constant 0 : index
    %c0_5 = arith.constant 0 : index
    %8 = vector.load %arg5[%c0_4, %c0_5] : memref<104x512xf32, #tpu.memory_space<vmem>>, vector<3x512xf32>
    tpu.vector_store %arg5[%c0_4, %c0_5], %7 {strides = array<i32>} : memref<104x512xf32, #tpu.memory_space<vmem>>, vector<3x512xf32>,
    %c0_6 = arith.constant 0 : index
    %c0_7 = arith.constant 0 : index
    %c0_8 = arith.constant 0 : index
    %9 = vector.load %arg2[%c0_6, %c0_7, %c0_8] : memref<3x32x72xf32, #tpu.memory_space<vmem>>, vector<1x32x8xf32>
    %10 = vector.shape_cast %9 : vector<1x32x8xf32> to vector<32x8xf32>
    %c0_9 = arith.constant 0 : index
    %c0_10 = arith.constant 0 : index
    %11 = vector.load %arg5[%c0_9, %c0_10] : memref<104x512xf32, #tpu.memory_space<vmem>>, vector<8x512xf32>
    %cst_11 = arith.constant dense<0.000000e+00> : vector<32x512xf32>
    %12 = tpu.matmul %10, %11, %cst_11 {dimension_numbers = #tpu.dot_dimension_numbers<[1], [0], [0], [1], [0, 0, 1, 1], [], []>} : vector<32x8xf32>, vector<8x512xf32>, vector<32x512xf32> -> vector<32x512xf32>
    %13 = math.sin %12 : vector<32x512xf32>
    %c8 = arith.constant 8 : index
    %c0_12 = arith.constant 0 : index
    %14 = vector.load %arg5[%c8, %c0_12] : memref<104x512xf32, #tpu.memory_space<vmem>>, vector<32x512xf32>
    tpu.vector_store %arg5[%c8, %c0_12], %13 {strides = array<i32>} : memref<104x512xf32, #tpu.memory_space<vmem>>, vector<32x512xf32>,
    %c1 = arith.constant 1 : index
    %c0_13 = arith.constant 0 : index
    %c0_14 = arith.constant 0 : index
    %15 = vector.load %arg2[%c1, %c0_13, %c0_14] : memref<3x32x72xf32, #tpu.memory_space<vmem>>, vector<1x32x40xf32>
    %16 = vector.shape_cast %15 : vector<1x32x40xf32> to vector<32x40xf32>
    %c0_15 = arith.constant 0 : index
    %c0_16 = arith.constant 0 : index
    %17 = vector.load %arg5[%c0_15, %c0_16] : memref<104x512xf32, #tpu.memory_space<vmem>>, vector<40x512xf32>
    %cst_17 = arith.constant dense<0.000000e+00> : vector<32x512xf32>
    %18 = tpu.matmul %16, %17, %cst_17 {dimension_numbers = #tpu.dot_dimension_numbers<[1], [0], [0], [1], [0, 0, 1, 1], [], []>} : vector<32x40xf32>, vector<40x512xf32>, vector<32x512xf32> -> vector<32x512xf32>
    %19 = math.sin %18 : vector<32x512xf32>
    %c40 = arith.constant 40 : index
    %c0_18 = arith.constant 0 : index
    %20 = vector.load %arg5[%c40, %c0_18] : memref<104x512xf32, #tpu.memory_space<vmem>>, vector<32x512xf32>
    tpu.vector_store %arg5[%c40, %c0_18], %19 {strides = array<i32>} : memref<104x512xf32, #tpu.memory_space<vmem>>, vector<32x512xf32>,
    %c2 = arith.constant 2 : index
    %c0_19 = arith.constant 0 : index
    %c0_20 = arith.constant 0 : index
    %21 = vector.load %arg2[%c2, %c0_19, %c0_20] : memref<3x32x72xf32, #tpu.memory_space<vmem>>, vector<1x32x72xf32>
    %22 = vector.shape_cast %21 : vector<1x32x72xf32> to vector<32x72xf32>
    %c0_21 = arith.constant 0 : index
    %c0_22 = arith.constant 0 : index
    %23 = vector.load %arg5[%c0_21, %c0_22] : memref<104x512xf32, #tpu.memory_space<vmem>>, vector<72x512xf32>
    %cst_23 = arith.constant dense<0.000000e+00> : vector<32x512xf32>
    %24 = tpu.matmul %22, %23, %cst_23 {dimension_numbers = #tpu.dot_dimension_numbers<[1], [0], [0], [1], [0, 0, 1, 1], [], []>} : vector<32x72xf32>, vector<72x512xf32>, vector<32x512xf32> -> vector<32x512xf32>
    %25 = math.sin %24 : vector<32x512xf32>
    %c72 = arith.constant 72 : index
    %c0_24 = arith.constant 0 : index
    %26 = vector.load %arg5[%c72, %c0_24] : memref<104x512xf32, #tpu.memory_space<vmem>>, vector<32x512xf32>
    tpu.vector_store %arg5[%c72, %c0_24], %25 {strides = array<i32>} : memref<104x512xf32, #tpu.memory_space<vmem>>, vector<32x512xf32>,
    %c0_25 = arith.constant 0 : index
    %c0_26 = arith.constant 0 : index
    %27 = vector.load %arg3[%c0_25, %c0_26] : memref<8x104xf32, #tpu.memory_space<vmem>>, vector<8x104xf32>
    %c0_27 = arith.constant 0 : index
    %c0_28 = arith.constant 0 : index
    %28 = vector.load %arg5[%c0_27, %c0_28] : memref<104x512xf32, #tpu.memory_space<vmem>>, vector<104x512xf32>
    %cst_29 = arith.constant dense<0.000000e+00> : vector<8x512xf32>
    %29 = tpu.matmul %27, %28, %cst_29 {dimension_numbers = #tpu.dot_dimension_numbers<[1], [0], [0], [1], [0, 0, 1, 1], [], []>} : vector<8x104xf32>, vector<104x512xf32>, vector<8x512xf32> -> vector<8x512xf32>
    %c0_30 = arith.constant 0 : index
    %c0_31 = arith.constant 0 : index
    %30 = vector.load %arg4[%c0_30, %c0_31] : memref<8x512xf32, #tpu.memory_space<vmem>>, vector<8x512xf32>
    tpu.vector_store %arg4[%c0_30, %c0_31], %29 {strides = array<i32>} : memref<8x512xf32, #tpu.memory_space<vmem>>, vector<8x512xf32>,
    return
  }
  func.func @transform_0(%arg0: i32) -> (i32, i32) {
    %c0_i32 = arith.constant 0 : i32
    %c0_i32_0 = arith.constant 0 : i32
    return %c0_i32, %arg0 : i32, i32
  }
  func.func @transform_1(%arg0: i32) -> (i32, i32, i32) {
    %c0_i32 = arith.constant 0 : i32
    %c0_i32_0 = arith.constant 0 : i32
    %c0_i32_1 = arith.constant 0 : i32
    %c0_i32_2 = arith.constant 0 : i32
    return %c0_i32, %c0_i32_0, %c0_i32_1 : i32, i32, i32
  }
  func.func @transform_2(%arg0: i32) -> (i32, i32) {
    %c0_i32 = arith.constant 0 : i32
    %c0_i32_0 = arith.constant 0 : i32
    %c0_i32_1 = arith.constant 0 : i32
    return %c0_i32, %c0_i32_0 : i32, i32
  }
  func.func @transform_3(%arg0: i32) -> (i32, i32) {
    %c0_i32 = arith.constant 0 : i32
    %c0_i32_0 = arith.constant 0 : i32
    return %c0_i32, %arg0 : i32, i32
  }
}

</mosaic_0001>

<llo_original>
// kernel: tpu_custom_call.1
$region0: #{tpu_custom_call.1}
  #allocation0 [shape = 'u32[]', space=smem, size = 0x4, offset = 0x4, fixed_abs, tag = 'smem constant byte address 0x4 - core index']
  #allocation1 [shape = 'u32[144,128]{1,0:T(1,128)}', space=vmem, size = 0x12000, scoped, tag = 'internal scratch']
  #allocation2 [shape = 'f32[104,512]{1,0:T(8,128)}', space=vmem, size = 0x34000, scoped, tag = 'scratch operand']
  %s0 = inlined_call_operand.hbm [shape: f32[3,1024], index: 0, kind: input, shape index: {}]
  %s1 = inlined_call_operand.hbm [shape: f32[3,32,72], index: 1, kind: input, shape index: {}]
  %s2 = inlined_call_operand.hbm [shape: f32[8,104], index: 2, kind: input, shape index: {}]
  %s3 = inlined_call_operand.hbm [shape: f32[8,1024], index: 3, kind: output, shape index: {}]
  %s4 = sld [smem:[#allocation0]]
  $region57: #{tpu_custom_call.1} parent=0
    _
  %s6 = ssub.s32 1, %s4
  %s7 = scalar_select 0, %s6, %s4
  $region1: #{tpu_custom_call.1} parent=0
    #allocation3 [shape = 'u8[16384]{0}', space=vmem, size = 0x4000, scoped, tag = 'input window, operand 0']
    #allocation4 [shape = 's32[2]{0}', space=sflag, size = 0x8, scoped, tag = 'scoped memory for tpu_custom_call.1']
    #allocation5 [shape = 's32[2]{0}', space=sflag, size = 0x8, scoped, tag = 'scoped memory for tpu_custom_call.1']
    #allocation6 [shape = 'u8[49152]{0}', space=vmem, size = 0xc000, scoped, tag = 'input window, operand 1, single buffered']
    #allocation7 [shape = 's32[1]{0}', space=sflag, size = 0x4, scoped, tag = 'scoped memory for tpu_custom_call.1']
    #allocation8 [shape = 'u8[4096]{0}', space=vmem, size = 0x1000, scoped, tag = 'input window, operand 2, single buffered']
    #allocation9 [shape = 'u8[32768]{0}', space=vmem, size = 0x8000, scoped, tag = 'output window, operand 0']
    %8 = vsyncpa [#allocation4], 0
    %s9 = scalar_lea.sflag [#allocation4], 1
    %10 = vsyncpa %s9, 0
    %11 = vsyncpa [#allocation7], 0
    %12 = vsyncpa [#allocation5], 0
    %s13 = scalar_lea.sflag [#allocation5], 1
    %14 = vsyncpa %s13, 0
    loop: start=0, step=1, limit=4
    $region2: #{tpu_custom_call.1} parent=1 // loop_pre_header
      _
    $region3: #{tpu_custom_call.1} parent=1 // loop_header
      %s16 = sphi 0, %s20
      %p17 = scmp.ge.s32.totalorder %s16, 4
      %s26 = sphi 0, %s28
      %s29 = sphi 0, %s26
      %s30 = sphi 0, %s29
      %s46 = sphi 0, %s30
      %s50 = sphi 0, %s50
      %s52 = sphi 0, %s50
      %s53 = sphi 0, %s52
      %s67 = sphi 0, %s53
      %s71 = sphi 0, %s71
      %s73 = sphi 0, %s71
      %s74 = sphi 0, %s73
      %s88 = sphi 0, %s74
      %s94 = sphi 0, %s96
      %s97 = sphi 0, %s94
      %s98 = sphi 0, %s97
      %s114 = sphi 0, %s98
    $region4: #{tpu_custom_call.1} parent=1 // loop_header_branch
      %19 = sbr.rel (%p17) target = $region8
    $region5: #{tpu_custom_call.1} parent=1 // loop_body
      %s21 = ssub.s32 %s16, 1
      %s22 = ssub.s32 %s16, 2
      %s23 = sadd.s32 %s16, 1
      %s24 = ssub.s32 %s16, %s23
      %p25 = scmp.eq.s32.totalorder %s24, 0
      %s27 = sadd.s32 %s26, 1
      %s28 = scalar_select %p25, %s26, %s27
      %p31 = pneg %p25
      %p32 = scmp.eq.s32.totalorder %s16, 1
      %p33 = por %p31, %p32
      %p34 = scmp.ne.s32.totalorder %s26, %s29
      %p35 = scmp.eq.s32.totalorder %s16, 0
      %p36 = por %p34, %p35
      %p37 = scmp.ne.s32.totalorder %s26, %s29
      %p38 = scmp.eq.s32.totalorder %s21, 1
      %p39 = por %p37, %p38
      %p40 = scmp.ne.s32.totalorder %s29, %s30
      %p41 = scmp.eq.s32.totalorder %s21, 0
      %p42 = por %p40, %p41
      %p43 = scmp.ne.s32.totalorder %s29, %s30
      %p44 = scmp.eq.s32.totalorder %s22, 1
      %p45 = por %p43, %p44
      %p47 = scmp.ne.s32.totalorder %s30, %s46
      %p48 = scmp.eq.s32.totalorder %s22, 0
      %p49 = por %p47, %p48
      %s51 = sadd.s32 %s50, 1
      %p54 = scmp.eq.s32.totalorder %s16, 1
      %p55 = scmp.ne.s32.totalorder %s50, %s52
      %p56 = scmp.eq.s32.totalorder %s16, 0
      %p57 = por %p55, %p56
      %p58 = scmp.ne.s32.totalorder %s50, %s52
      %p59 = scmp.eq.s32.totalorder %s21, 1
      %p60 = por %p58, %p59
      %p61 = scmp.ne.s32.totalorder %s52, %s53
      %p62 = scmp.eq.s32.totalorder %s21, 0
      %p63 = por %p61, %p62
      %p64 = scmp.ne.s32.totalorder %s52, %s53
      %p65 = scmp.eq.s32.totalorder %s22, 1
      %p66 = por %p64, %p65
      %p68 = scmp.ne.s32.totalorder %s53, %s67
      %p69 = scmp.eq.s32.totalorder %s22, 0
      %p70 = por %p68, %p69
      %s72 = sadd.s32 %s71, 1
      %p75 = scmp.eq.s32.totalorder %s16, 1
      %p76 = scmp.ne.s32.totalorder %s71, %s73
      %p77 = scmp.eq.s32.totalorder %s16, 0
      %p78 = por %p76, %p77
      %p79 = scmp.ne.s32.totalorder %s71, %s73
      %p80 = scmp.eq.s32.totalorder %s21, 1
      %p81 = por %p79, %p80
      %p82 = scmp.ne.s32.totalorder %s73, %s74
      %p83 = scmp.eq.s32.totalorder %s21, 0
      %p84 = por %p82, %p83
      %p85 = scmp.ne.s32.totalorder %s73, %s74
      %p86 = scmp.eq.s32.totalorder %s22, 1
      %p87 = por %p85, %p86
      %p89 = scmp.ne.s32.totalorder %s74, %s88
      %p90 = scmp.eq.s32.totalorder %s22, 0
      %p91 = por %p89, %p90
      %s92 = ssub.s32 %s16, %s23
      %p93 = scmp.eq.s32.totalorder %s92, 0
      %s95 = sadd.s32 %s94, 1
      %s96 = scalar_select %p93, %s94, %s95
      %p99 = pneg %p93
      %p100 = scmp.eq.s32.totalorder %s16, 1
      %p101 = por %p99, %p100
      %p102 = scmp.ne.s32.totalorder %s94, %s97
      %p103 = scmp.eq.s32.totalorder %s16, 0
      %p104 = por %p102, %p103
      %p105 = scmp.ne.s32.totalorder %s94, %s97
      %p106 = scmp.eq.s32.totalorder %s21, 1
      %p107 = por %p105, %p106
      %p108 = scmp.ne.s32.totalorder %s97, %s98
      %p109 = scmp.eq.s32.totalorder %s21, 0
      %p110 = por %p108, %p109
      %p111 = scmp.ne.s32.totalorder %s97, %s98
      %p112 = scmp.eq.s32.totalorder %s22, 1
      %p113 = por %p111, %p112
      %p115 = scmp.ne.s32.totalorder %s98, %s114
      %p116 = scmp.eq.s32.totalorder %s22, 0
      %p117 = por %p115, %p116
      %p118 = scmp.le.s32.totalorder 1, %s16
      %p119 = scmp.lt.s32.totalorder %s16, 3
      %p120 = pnand %p118, %p119
      %p121 = pneg %p120
      // Predicated region
      $region9: #{tpu_custom_call.1} parent=5 // pred_check
        _
      $region10: #{tpu_custom_call.1} parent=5 // pred_check_branch
        %123 = sbr.rel (%p120) target = $region12
      $region11: #{tpu_custom_call.1} parent=5 // pred_region
        %s124 = ssub.s32 %s16, 1
        // Predicated region
        $region13: #{tpu_custom_call.1} parent=11 // pred_check
          %p125 = pneg %p63
        $region14: #{tpu_custom_call.1} parent=11 // pred_check_branch
          %127 = sbr.rel (%p125) target = $region16
        $region15: #{tpu_custom_call.1} parent=11 // pred_region
          %s129 = ssub.s32 1536, 1536
          %130 = vsyncadd [#allocation7], %s129
          %s131 = sshll.u32 [#allocation6], 4
          %s132 = int_to_ptr.vmem [resolvable:$true] %s131
          %137 = dma.hbm_to_vmem [thread:$0]  %s1, 1536, %s132, [#allocation7], 128, 128, 8
        $region16: #{tpu_custom_call.1} parent=11 // pred_fallthru
          _
        // Predicated region
        $region17: #{tpu_custom_call.1} parent=11 // pred_check
          %p138 = pneg %p84
        $region18: #{tpu_custom_call.1} parent=11 // pred_check_branch
          %140 = sbr.rel (%p138) target = $region20
        $region19: #{tpu_custom_call.1} parent=11 // pred_region
          %s142 = ssub.s32 128, 128
          %143 = vsyncadd [#allocation7], %s142
          %s145 = sshll.u32 [#allocation8], 4
          %s146 = int_to_ptr.vmem [resolvable:$true] %s145
          %148 = dma.hbm_to_vmem [thread:$0]  %s2, 128, %s146, [#allocation7]
        $region20: #{tpu_custom_call.1} parent=11 // pred_fallthru
          _
      $region12: #{tpu_custom_call.1} parent=5 // pred_fallthru
        _
      %p149 = scmp.lt.s32.totalorder %s16, 2
      // Predicated region
      $region21: #{tpu_custom_call.1} parent=5 // pred_check
        %p150 = pneg %p149
      $region22: #{tpu_custom_call.1} parent=5 // pred_check_branch
        %152 = sbr.rel (%p150) target = $region24
      $region23: #{tpu_custom_call.1} parent=5 // pred_region
        // Predicated region
        $region25: #{tpu_custom_call.1} parent=23 // pred_check
          %p153 = pneg %p36
        $region26: #{tpu_custom_call.1} parent=23 // pred_check_branch
          %155 = sbr.rel (%p153) target = $region28
        $region27: #{tpu_custom_call.1} parent=23 // pred_region
          %s156 = sand.u32 %s26, 1
          %s157 = scalar_lea.sflag [#allocation4], %s156
          %s158 = sand.u32 %s26, 1
          %s159 = smul.addr %s158, 16
          %s160 = scalar_lea.vmem [#allocation3], %s159
          %s161 = smul.u32 4, %s16
          %s163 = ssub.s32 256, 256
          %164 = vsyncadd %s157, %s163
          %s165 = smul.addr %s161, 64
          %s166 = scalar_lea.hbm %s0, %s165
          %s168 = sshll.u32 %s160, 4
          %s169 = int_to_ptr.vmem [resolvable:$true] %s168
          %171 = dma.hbm_to_vmem [thread:$0]  %s166, 256, %s169, %s157
        $region28: #{tpu_custom_call.1} parent=23 // pred_fallthru
          _
      $region24: #{tpu_custom_call.1} parent=5 // pred_fallthru
        _
      %p172 = scmp.le.s32.totalorder 1, %s16
      %p173 = scmp.lt.s32.totalorder %s16, 3
      %p174 = pnand %p172, %p173
      %p175 = pneg %p174
      // Predicated region
      $region29: #{tpu_custom_call.1} parent=5 // pred_check
        _
      $region30: #{tpu_custom_call.1} parent=5 // pred_check_branch
        %177 = sbr.rel (%p174) target = $region32
      $region31: #{tpu_custom_call.1} parent=5 // pred_region
        %s178 = ssub.s32 %s16, 1
        %s179 = sand.u32 %s29, 1
        %s180 = scalar_lea.sflag [#allocation4], %s179
        %s181 = sand.u32 %s29, 1
        %s182 = smul.addr %s181, 16
        %s183 = scalar_lea.vmem [#allocation3], %s182
        // Predicated region
        $region33: #{tpu_custom_call.1} parent=31 // pred_check
          %p184 = pneg %p42
        $region34: #{tpu_custom_call.1} parent=31 // pred_check_branch
          %186 = sbr.rel (%p184) target = $region36
        $region35: #{tpu_custom_call.1} parent=31 // pred_region
          %187 = dma.done %s180, 256
        $region36: #{tpu_custom_call.1} parent=31 // pred_fallthru
          _
        // Predicated region
        $region37: #{tpu_custom_call.1} parent=31 // pred_check
          %p188 = pneg %p63
        $region38: #{tpu_custom_call.1} parent=31 // pred_check_branch
          %190 = sbr.rel (%p188) target = $region40
        $region39: #{tpu_custom_call.1} parent=31 // pred_region
          %191 = dma.done [#allocation7], 1536
        $region40: #{tpu_custom_call.1} parent=31 // pred_fallthru
          _
        // Predicated region
        $region41: #{tpu_custom_call.1} parent=31 // pred_check
          %p192 = pneg %p84
        $region42: #{tpu_custom_call.1} parent=31 // pred_check_branch
          %194 = sbr.rel (%p192) target = $region44
        $region43: #{tpu_custom_call.1} parent=31 // pred_region
          %195 = dma.done [#allocation7], 128
        $region44: #{tpu_custom_call.1} parent=31 // pred_fallthru
          _
        %s196 = sand.u32 %s29, 1
        %s197 = scalar_lea.sflag [#allocation4], %s196
        %s198 = sand.u32 %s29, 1
        %s199 = smul.addr %s198, 16
        %s200 = scalar_lea.vmem [#allocation3], %s199
        %p201 = pneg %p42
        %p202 = pneg %p39
        %p203 = pneg %p63
        %p204 = pneg %p60
        %p205 = pneg %p84
        %p206 = pneg %p81
        %p207 = pneg %p110
        %p208 = pneg %p107
        %s209 = sand.u32 %s97, 1
        %s210 = scalar_lea.sflag [#allocation5], %s209
        %s211 = sand.u32 %s97, 1
        %s212 = smul.addr %s211, 32
        %s213 = scalar_lea.vmem [#allocation9], %s212
        %s214 = smul.u32 4, %s21
        %s215 = smul.u32 4, %s21
        %v216 = vlaneseq
        %v217 = vshrl.u32 %v216, 7
        %vm218 = vcmp.eq.s32.totalorder %v217, 3
        %v219 = vsel %vm218, 1.0, 0.0
        %220 = vst [vmem:[#allocation2] sm:$0xff] %v219
        %221 = vst [vmem:[#allocation2 + $0x8] sm:$0xff] %v219
        %222 = vst [vmem:[#allocation2 + $0x10] sm:$0xff] %v219
        %223 = vst [vmem:[#allocation2 + $0x18] sm:$0xff] %v219
        %v224 = vld [vmem:[%s183] sm:$0x77]
        %v225 = vld [vmem:[%s183 + $0x8] sm:$0x77]
        %v228 = vcombine.high %v224, %v224
        %v229 = vcombine.high %v225, %v225
        %232 = vst [vmem:[#allocation2] sm:$0x7] %v224
        %233 = vst [vmem:[#allocation2 + $0x8] sm:$0x7] %v228
        %234 = vst [vmem:[#allocation2 + $0x10] sm:$0x7] %v225
        %235 = vst [vmem:[#allocation2 + $0x18] sm:$0x7] %v229
        %v236 = vld [vmem:[#allocation6] sm:$0xff]
        %v237 = vld [vmem:[#allocation6 + $0x8] sm:$0xff]
        %v238 = vld [vmem:[#allocation6 + $0x10] sm:$0xff]
        %v239 = vld [vmem:[#allocation6 + $0x18] sm:$0xff]
        %v240 = vld [vmem:[#allocation2] sm:$0xff]
        %v241 = vld [vmem:[#allocation2 + $0x8] sm:$0xff]
        %v242 = vld [vmem:[#allocation2 + $0x10] sm:$0xff]
        %v243 = vld [vmem:[#allocation2 + $0x18] sm:$0xff]
        %vm244 = vcmask 64512
        %v246 = vsel %vm244, %v236, 0
        %v249 = vsel %vm244, %v237, 0
        %v252 = vsel %vm244, %v238, 0
        %v255 = vsel %vm244, %v239, 0
        %257 = vmatprep.subr.mxu0 %v241
        %258 = vmatpush1.msra.mxu0 %v240
        %259 = vmatprep.subr.mxu0 0.0
        %260 = vmatpush1.msra.mxu0 0.0
        %261 = vmatprep.subr.mxu0 0.0
        %262 = vmatpush1.msra.mxu0 0.0
        %263 = vmatprep.subr.mxu0 0.0
        %264 = vmatpush1.msra.mxu0 0.0
        %265 = vmatprep.subr.mxu0 0.0
        %266 = vmatpush1.msra.mxu0 0.0
        %267 = vmatprep.subr.mxu0 0.0
        %268 = vmatpush1.msra.mxu0 0.0
        %269 = vmatprep.subr.mxu0 0.0
        %270 = vmatpush1.msra.mxu0 0.0
        %271 = vmatprep.subr.mxu0 0.0
        %272 = vmatpush1.msra.mxu0 0.0
        %273 = vmatprep.subr.mxu0 0.0
        %274 = vmatpush1.msra.mxu0 0.0
        %275 = vmatprep.subr.mxu0 0.0
        %276 = vmatpush1.msra.mxu0 0.0
        %277 = vmatprep.subr.mxu0 0.0
        %278 = vmatpush1.msra.mxu0 0.0
        %279 = vmatprep.subr.mxu0 0.0
        %280 = vmatpush1.msra.mxu0 0.0
        %281 = vmatprep.subr.mxu0 0.0
        %282 = vmatpush1.msra.mxu0 0.0
        %283 = vmatprep.subr.mxu0 0.0
        %284 = vmatpush1.msra.mxu0 0.0
        %285 = vmatprep.subr.mxu0 0.0
        %286 = vmatpush1.msra.mxu0 0.0
        %287 = vmatprep.subr.mxu0 0.0
        %288 = vmatpush1.msra.mxu0 0.0
        %289 = vmatprep.subr.mxu0 0.0
        %290 = vmatpush1.msra.mxu0 0.0
        %291 = vmatprep.subr.mxu0 0.0
        %292 = vmatpush1.msra.mxu0 0.0
        %293 = vmatprep.subr.mxu0 0.0
        %294 = vmatpush1.msra.mxu0 0.0
        %295 = vmatprep.subr.mxu0 0.0
        %296 = vmatpush1.msra.mxu0 0.0
        %297 = vmatprep.subr.mxu0 0.0
        %298 = vmatpush1.msra.mxu0 0.0
        %299 = vmatprep.subr.mxu0 0.0
        %300 = vmatpush1.msra.mxu0 0.0
        %301 = vmatprep.subr.mxu0 0.0
        %302 = vmatpush1.msra.mxu0 0.0
        %303 = vmatprep.subr.mxu0 0.0
        %304 = vmatpush1.msra.mxu0 0.0
        %305 = vmatprep.subr.mxu0 0.0
        %306 = vmatpush1.msra.mxu0 0.0
        %307 = vmatprep.subr.mxu0 0.0
        %308 = vmatpush1.msra.mxu0 0.0
        %309 = vmatprep.subr.mxu0 0.0
        %310 = vmatpush1.msra.mxu0 0.0
        %311 = vmatprep.subr.mxu0 0.0
        %312 = vmatpush1.msra.mxu0 0.0
        %313 = vmatprep.subr.mxu0 0.0
        %314 = vmatpush1.msra.mxu0 0.0
        %315 = vmatprep.subr.mxu0 0.0
        %316 = vmatpush1.msra.mxu0 0.0
        %317 = vmatprep.subr.mxu0 0.0
        %318 = vmatpush1.msra.mxu0 0.0
        %319 = vmatprep.subr.mxu0 0.0
        %320 = vmatpush1.msra.mxu0 0.0
        %321 = vmatprep.mubr.f32.mxu0 0.0
        %322 = vmatmul.mubr.f32.gmra.mrb[0].mxu0 %v246
        %v323 = vpop.f32.mrb[0].mxu0
        %v324 = vadd.f32 0.0, %v323
        %v325 = vpop.f32.mrb[0].mxu0
        %v326 = vadd.f32 0.0, %v325
        %327 = vmatprep.mubr.f32.mxu0 0.0
        %328 = vmatmul.mubr.f32.gmra.mrb[0].mxu0 %v249
        %v329 = vpop.f32.mrb[0].mxu0
        %v330 = vadd.f32 0.0, %v329
        %v331 = vpop.f32.mrb[0].mxu0
        %v332 = vadd.f32 0.0, %v331
        %333 = vmatprep.mubr.f32.mxu0 0.0
        %334 = vmatmul.mubr.f32.gmra.mrb[0].mxu0 %v252
        %v335 = vpop.f32.mrb[0].mxu0
        %v336 = vadd.f32 0.0, %v335
        %v337 = vpop.f32.mrb[0].mxu0
        %v338 = vadd.f32 0.0, %v337
        %339 = vmatprep.mubr.f32.mxu0 0.0
        %340 = vmatmul.mubr.f32.gmra.mrb[0].mxu0 %v255
        %v341 = vpop.f32.mrb[0].mxu0
        %v342 = vadd.f32 0.0, %v341
        %v343 = vpop.f32.mrb[0].mxu0
        %v344 = vadd.f32 0.0, %v343
        %345 = vdwg.mxu0
        %346 = vmatprep.subr.mxu0 %v243
        %347 = vmatpush1.msra.mxu0 %v242
        %348 = vmatprep.subr.mxu0 0.0
        %349 = vmatpush1.msra.mxu0 0.0
        %350 = vmatprep.subr.mxu0 0.0
        %351 = vmatpush1.msra.mxu0 0.0
        %352 = vmatprep.subr.mxu0 0.0
        %353 = vmatpush1.msra.mxu0 0.0
        %354 = vmatprep.subr.mxu0 0.0
        %355 = vmatpush1.msra.mxu0 0.0
        %356 = vmatprep.subr.mxu0 0.0
        %357 = vmatpush1.msra.mxu0 0.0
        %358 = vmatprep.subr.mxu0 0.0
        %359 = vmatpush1.msra.mxu0 0.0
        %360 = vmatprep.subr.mxu0 0.0
        %361 = vmatpush1.msra.mxu0 0.0
        %362 = vmatprep.subr.mxu0 0.0
        %363 = vmatpush1.msra.mxu0 0.0
        %364 = vmatprep.subr.mxu0 0.0
        %365 = vmatpush1.msra.mxu0 0.0
        %366 = vmatprep.subr.mxu0 0.0
        %367 = vmatpush1.msra.mxu0 0.0
        %368 = vmatprep.subr.mxu0 0.0
        %369 = vmatpush1.msra.mxu0 0.0
        %370 = vmatprep.subr.mxu0 0.0
        %371 = vmatpush1.msra.mxu0 0.0
        %372 = vmatprep.subr.mxu0 0.0
        %373 = vmatpush1.msra.mxu0 0.0
        %374 = vmatprep.subr.mxu0 0.0
        %375 = vmatpush1.msra.mxu0 0.0
        %376 = vmatprep.subr.mxu0 0.0
        %377 = vmatpush1.msra.mxu0 0.0
        %378 = vmatprep.subr.mxu0 0.0
        %379 = vmatpush1.msra.mxu0 0.0
        %380 = vmatprep.subr.mxu0 0.0
        %381 = vmatpush1.msra.mxu0 0.0
        %382 = vmatprep.subr.mxu0 0.0
        %383 = vmatpush1.msra.mxu0 0.0
        %384 = vmatprep.subr.mxu0 0.0
        %385 = vmatpush1.msra.mxu0 0.0
        %386 = vmatprep.subr.mxu0 0.0
        %387 = vmatpush1.msra.mxu0 0.0
        %388 = vmatprep.subr.mxu0 0.0
        %389 = vmatpush1.msra.mxu0 0.0
        %390 = vmatprep.subr.mxu0 0.0
        %391 = vmatpush1.msra.mxu0 0.0
        %392 = vmatprep.subr.mxu0 0.0
        %393 = vmatpush1.msra.mxu0 0.0
        %394 = vmatprep.subr.mxu0 0.0
        %395 = vmatpush1.msra.mxu0 0.0
        %396 = vmatprep.subr.mxu0 0.0
        %397 = vmatpush1.msra.mxu0 0.0
        %398 = vmatprep.subr.mxu0 0.0
        %399 = vmatpush1.msra.mxu0 0.0
        %400 = vmatprep.subr.mxu0 0.0
        %401 = vmatpush1.msra.mxu0 0.0
        %402 = vmatprep.subr.mxu0 0.0
        %403 = vmatpush1.msra.mxu0 0.0
        %404 = vmatprep.subr.mxu0 0.0
        %405 = vmatpush1.msra.mxu0 0.0
        %406 = vmatprep.subr.mxu0 0.0
        %407 = vmatpush1.msra.mxu0 0.0
        %408 = vmatprep.subr.mxu0 0.0
        %409 = vmatpush1.msra.mxu0 0.0
        %410 = vmatprep.mubr.f32.mxu0 0.0
        %411 = vmatmul.mubr.f32.gmra.mrb[0].mxu0 %v246
        %v412 = vpop.f32.mrb[0].mxu0
        %v413 = vadd.f32 0.0, %v412
        %v414 = vpop.f32.mrb[0].mxu0
        %v415 = vadd.f32 0.0, %v414
        %416 = vmatprep.mubr.f32.mxu0 0.0
        %417 = vmatmul.mubr.f32.gmra.mrb[0].mxu0 %v249
        %v418 = vpop.f32.mrb[0].mxu0
        %v419 = vadd.f32 0.0, %v418
        %v420 = vpop.f32.mrb[0].mxu0
        %v421 = vadd.f32 0.0, %v420
        %422 = vmatprep.mubr.f32.mxu0 0.0
        %423 = vmatmul.mubr.f32.gmra.mrb[0].mxu0 %v252
        %v424 = vpop.f32.mrb[0].mxu0
        %v425 = vadd.f32 0.0, %v424
        %v426 = vpop.f32.mrb[0].mxu0
        %v427 = vadd.f32 0.0, %v426
        %428 = vmatprep.mubr.f32.mxu0 0.0
        %429 = vmatmul.mubr.f32.gmra.mrb[0].mxu0 %v255
        %v430 = vpop.f32.mrb[0].mxu0
        %v431 = vadd.f32 0.0, %v430
        %v432 = vpop.f32.mrb[0].mxu0
        %v433 = vadd.f32 0.0, %v432
        %434 = vdwg.mxu0
        %v435 = vand.u32 2147483647, %v324
        %vm436 = vcmp.le.f32.partialorder %v435, 0.7853982
        %vm437 = vcmp.lt.s32.totalorder %v324, 0
        %v438 = vand.u32 %v324, 2139095040
        %v439 = vshrl.u32 %v438, 23
        %v440 = vsub.s32 %v439, 127
        %v441 = vand.u32 2147483647, %v324
        %v442 = vand.u32 %v441, 8388607
        %v443 = vor.u32 %v442, 8388608
        %v444 = vsub.s32 0, %v443
        %v445 = vadd.s32 %v440, 1
        %vm446 = vcmp.gt.s32.totalorder %v445, 0
        %v447 = vsel %vm446, %v445, 0
        %v448 = vshrl.u32 %v447, 5
        %v449 = vand.u32 %v447, 31
        %v450 = vsub.s32 32, %v449
        %v451 = vshrl.u32 683565275, %v450
        %v452 = vshll.u32 683565275, %v449
        %v453 = vshrl.u32 2475754826, %v450
        %v454 = vor.u32 %v452, %v453
        %v455 = vshll.u32 2475754826, %v449
        %v456 = vshrl.u32 2131351028, %v450
        %v457 = vor.u32 %v455, %v456
        %v458 = vshll.u32 2131351028, %v449
        %v459 = vshrl.u32 2102212464, %v450
        %v460 = vor.u32 %v458, %v459
        %v461 = vshll.u32 2102212464, %v449
        %v462 = vshrl.u32 920167782, %v450
        %v463 = vor.u32 %v461, %v462
        %v464 = vshll.u32 920167782, %v449
        %v465 = vshrl.u32 1326507024, %v450
        %v466 = vor.u32 %v464, %v465
        %vm467 = vcmp.lt.s32.totalorder %v448, 1
        %vm468 = vcmp.lt.s32.totalorder %v448, 2
        %vm469 = vcmp.lt.s32.totalorder %v448, 3
        %vm470 = vcmp.lt.s32.totalorder %v448, 4
        %v471 = vsel %vm467, %v451, %v454
        %v472 = vsel %vm470, %v460, 2102212464
        %v473 = vsel %vm469, %v457, %v472
        %v474 = vsel %vm468, %v471, %v473
        %v475 = vsel %vm467, %v454, %v457
        %v476 = vsel %vm470, %v463, 920167782
        %v477 = vsel %vm469, %v460, %v476
        %v478 = vsel %vm468, %v475, %v477
        %v479 = vsel %vm467, %v457, %v460
        %v480 = vsel %vm470, %v466, 1326507024
        %v481 = vsel %vm469, %v463, %v480
        %v482 = vsel %vm468, %v479, %v481
        %v483 = vshll.u32 %v443, 8
        %v484 = vmul.u32.u64.compose %v483, %v482
        %v485 = vextract.low.u32 %v484
        %v486 = vextract.high.u32 %v484
        %v487 = vmul.u32.u64.compose %v483, %v478
        %v488 = vextract.low.u32 %v487
        %v489 = vextract.high.u32 %v487
        %v490 = vmul.u32 %v483, %v474
        %v491 = vadd.s32 %v486, %v488
        %vm492 = vc.u32 %v486, %v488
        %v493 = vadd.s32 %v489, 1
        %v494 = vsel %vm492, %v493, %v489
        %v495 = vadd.s32 %v490, %v494
        %v496 = vadd.s32 %v495, 536870912
        %v497 = vshrl.u32 %v496, 30
        %v498 = vshll.u32 %v497, 30
        %v499 = vsub.s32 %v495, %v498
        %vm500 = vcmp.lt.s32.totalorder %v499, 0
        %v501 = vsub.s32 0, %v499
        %v502 = vsel %vm500, %v501, %v499
        %v503 = vclz %v502
        %v504 = vsub.s32 %v503, 2
        %vm505 = vcmp.gt.s32.totalorder 0, %v504
        %v506 = vsel %vm505, 0, %v504
        %v507 = vsub.s32 32, %v506
        %v508 = vshll.u32 %v499, %v506
        %v509 = vshrl.u32 %v491, %v507
        %v510 = vor.u32 %v508, %v509
        %v511 = vsub.s32 4294967266, %v506
        %v512 = vadd.s32 %v511, 127
        %v513 = vshll.u32 %v512, 23
        %v514 = vor.u32 4788187, %v513
        %v515 = vand.u32 2147483647, %v514
        %v517 = vcvt.s32.f32 %v510
        %v518 = vmul.f32 %v517, %v515
        %v519 = vxor.u32 %v518, 2147483648
        %v520 = vsel %vm437, %v519, %v518
        %v521 = vsub.s32 4, %v497
        %v522 = vsel %vm437, %v521, %v497
        %v523 = vsel %vm436, %v324, %v520
        %v524 = vsel %vm436, 0, %v522
        %v525 = vcosq.f32.pop %v523
        %v526 = vsinq.f32.pop %v523
        %vm527 = vweird.f32 %v324
        %v528 = vadd.s32 %v524, 3
        %v529 = vand.u32 %v528, 3
        %vm530 = vcmp.lt.s32.totalorder %v529, 2
        %vm531 = vcmp.eq.s32.totalorder %v529, 0
        %v532 = vxor.u32 %v526, 2147483648
        %v533 = vsel %vm531, %v525, %v532
        %vm534 = vcmp.eq.s32.totalorder %v529, 2
        %v535 = vxor.u32 %v525, 2147483648
        %v536 = vsel %vm534, %v535, %v526
        %v537 = vsel %vm530, %v533, %v536
        %v538 = vsel %vm527, nan, %v537
        %v539 = vand.u32 2147483647, %v326
        %vm540 = vcmp.le.f32.partialorder %v539, 0.7853982
        %vm541 = vcmp.lt.s32.totalorder %v326, 0
        %v542 = vand.u32 %v326, 2139095040
        %v543 = vshrl.u32 %v542, 23
        %v544 = vsub.s32 %v543, 127
        %v545 = vand.u32 2147483647, %v326
        %v546 = vand.u32 %v545, 8388607
        %v547 = vor.u32 %v546, 8388608
        %v548 = vsub.s32 0, %v547
        %v549 = vadd.s32 %v544, 1
        %vm550 = vcmp.gt.s32.totalorder %v549, 0
        %v551 = vsel %vm550, %v549, 0
        %v552 = vshrl.u32 %v551, 5
        %v553 = vand.u32 %v551, 31
        %v554 = vsub.s32 32, %v553
        %v555 = vshrl.u32 683565275, %v554
        %v556 = vshll.u32 683565275, %v553
        %v557 = vshrl.u32 2475754826, %v554
        %v558 = vor.u32 %v556, %v557
        %v559 = vshll.u32 2475754826, %v553
        %v560 = vshrl.u32 2131351028, %v554
        %v561 = vor.u32 %v559, %v560
        %v562 = vshll.u32 2131351028, %v553
        %v563 = vshrl.u32 2102212464, %v554
        %v564 = vor.u32 %v562, %v563
        %v565 = vshll.u32 2102212464, %v553
        %v566 = vshrl.u32 920167782, %v554
        %v567 = vor.u32 %v565, %v566
        %v568 = vshll.u32 920167782, %v553
        %v569 = vshrl.u32 1326507024, %v554
        %v570 = vor.u32 %v568, %v569
        %vm571 = vcmp.lt.s32.totalorder %v552, 1
        %vm572 = vcmp.lt.s32.totalorder %v552, 2
        %vm573 = vcmp.lt.s32.totalorder %v552, 3
        %vm574 = vcmp.lt.s32.totalorder %v552, 4
        %v575 = vsel %vm571, %v555, %v558
        %v576 = vsel %vm574, %v564, 2102212464
        %v577 = vsel %vm573, %v561, %v576
        %v578 = vsel %vm572, %v575, %v577
        %v579 = vsel %vm571, %v558, %v561
        %v580 = vsel %vm574, %v567, 920167782
        %v581 = vsel %vm573, %v564, %v580
        %v582 = vsel %vm572, %v579, %v581
        %v583 = vsel %vm571, %v561, %v564
        %v584 = vsel %vm574, %v570, 1326507024
        %v585 = vsel %vm573, %v567, %v584
        %v586 = vsel %vm572, %v583, %v585
        %v587 = vshll.u32 %v547, 8
        %v588 = vmul.u32.u64.compose %v587, %v586
        %v589 = vextract.low.u32 %v588
        %v590 = vextract.high.u32 %v588
        %v591 = vmul.u32.u64.compose %v587, %v582
        %v592 = vextract.low.u32 %v591
        %v593 = vextract.high.u32 %v591
        %v594 = vmul.u32 %v587, %v578
        %v595 = vadd.s32 %v590, %v592
        %vm596 = vc.u32 %v590, %v592
        %v597 = vadd.s32 %v593, 1
        %v598 = vsel %vm596, %v597, %v593
        %v599 = vadd.s32 %v594, %v598
        %v600 = vadd.s32 %v599, 536870912
        %v601 = vshrl.u32 %v600, 30
        %v602 = vshll.u32 %v601, 30
        %v603 = vsub.s32 %v599, %v602
        %vm604 = vcmp.lt.s32.totalorder %v603, 0
        %v605 = vsub.s32 0, %v603
        %v606 = vsel %vm604, %v605, %v603
        %v607 = vclz %v606
        %v608 = vsub.s32 %v607, 2
        %vm609 = vcmp.gt.s32.totalorder 0, %v608
        %v610 = vsel %vm609, 0, %v608
        %v611 = vsub.s32 32, %v610
        %v612 = vshll.u32 %v603, %v610
        %v613 = vshrl.u32 %v595, %v611
        %v614 = vor.u32 %v612, %v613
        %v615 = vsub.s32 4294967266, %v610
        %v616 = vadd.s32 %v615, 127
        %v617 = vshll.u32 %v616, 23
        %v618 = vor.u32 4788187, %v617
        %v619 = vand.u32 2147483647, %v618
        %v621 = vcvt.s32.f32 %v614
        %v622 = vmul.f32 %v621, %v619
        %v623 = vxor.u32 %v622, 2147483648
        %v624 = vsel %vm541, %v623, %v622
        %v625 = vsub.s32 4, %v601
        %v626 = vsel %vm541, %v625, %v601
        %v627 = vsel %vm540, %v326, %v624
        %v628 = vsel %vm540, 0, %v626
        %v629 = vcosq.f32.pop %v627
        %v630 = vsinq.f32.pop %v627
        %vm631 = vweird.f32 %v326
        %v632 = vadd.s32 %v628, 3
        %v633 = vand.u32 %v632, 3
        %vm634 = vcmp.lt.s32.totalorder %v633, 2
        %vm635 = vcmp.eq.s32.totalorder %v633, 0
        %v636 = vxor.u32 %v630, 2147483648
        %v637 = vsel %vm635, %v629, %v636
        %vm638 = vcmp.eq.s32.totalorder %v633, 2
        %v639 = vxor.u32 %v629, 2147483648
        %v640 = vsel %vm638, %v639, %v630
        %v641 = vsel %vm634, %v637, %v640
        %v642 = vsel %vm631, nan, %v641
        %v643 = vand.u32 2147483647, %v413
        %vm644 = vcmp.le.f32.partialorder %v643, 0.7853982
        %vm645 = vcmp.lt.s32.totalorder %v413, 0
        %v646 = vand.u32 %v413, 2139095040
        %v647 = vshrl.u32 %v646, 23
        %v648 = vsub.s32 %v647, 127
        %v649 = vand.u32 2147483647, %v413
        %v650 = vand.u32 %v649, 8388607
        %v651 = vor.u32 %v650, 8388608
        %v652 = vsub.s32 0, %v651
        %v653 = vadd.s32 %v648, 1
        %vm654 = vcmp.gt.s32.totalorder %v653, 0
        %v655 = vsel %vm654, %v653, 0
        %v656 = vshrl.u32 %v655, 5
        %v657 = vand.u32 %v655, 31
        %v658 = vsub.s32 32, %v657
        %v659 = vshrl.u32 683565275, %v658
        %v660 = vshll.u32 683565275, %v657
        %v661 = vshrl.u32 2475754826, %v658
        %v662 = vor.u32 %v660, %v661
        %v663 = vshll.u32 2475754826, %v657
        %v664 = vshrl.u32 2131351028, %v658
        %v665 = vor.u32 %v663, %v664
        %v666 = vshll.u32 2131351028, %v657
        %v667 = vshrl.u32 2102212464, %v658
        %v668 = vor.u32 %v666, %v667
        %v669 = vshll.u32 2102212464, %v657
        %v670 = vshrl.u32 920167782, %v658
        %v671 = vor.u32 %v669, %v670
        %v672 = vshll.u32 920167782, %v657
        %v673 = vshrl.u32 1326507024, %v658
        %v674 = vor.u32 %v672, %v673
        %vm675 = vcmp.lt.s32.totalorder %v656, 1
        %vm676 = vcmp.lt.s32.totalorder %v656, 2
        %vm677 = vcmp.lt.s32.totalorder %v656, 3
        %vm678 = vcmp.lt.s32.totalorder %v656, 4
        %v679 = vsel %vm675, %v659, %v662
        %v680 = vsel %vm678, %v668, 2102212464
        %v681 = vsel %vm677, %v665, %v680
        %v682 = vsel %vm676, %v679, %v681
        %v683 = vsel %vm675, %v662, %v665
        %v684 = vsel %vm678, %v671, 920167782
        %v685 = vsel %vm677, %v668, %v684
        %v686 = vsel %vm676, %v683, %v685
        %v687 = vsel %vm675, %v665, %v668
        %v688 = vsel %vm678, %v674, 1326507024
        %v689 = vsel %vm677, %v671, %v688
        %v690 = vsel %vm676, %v687, %v689
        %v691 = vshll.u32 %v651, 8
        %v692 = vmul.u32.u64.compose %v691, %v690
        %v693 = vextract.low.u32 %v692
        %v694 = vextract.high.u32 %v692
        %v695 = vmul.u32.u64.compose %v691, %v686
        %v696 = vextract.low.u32 %v695
        %v697 = vextract.high.u32 %v695
        %v698 = vmul.u32 %v691, %v682
        %v699 = vadd.s32 %v694, %v696
        %vm700 = vc.u32 %v694, %v696
        %v701 = vadd.s32 %v697, 1
        %v702 = vsel %vm700, %v701, %v697
        %v703 = vadd.s32 %v698, %v702
        %v704 = vadd.s32 %v703, 536870912
        %v705 = vshrl.u32 %v704, 30
        %v706 = vshll.u32 %v705, 30
        %v707 = vsub.s32 %v703, %v706
        %vm708 = vcmp.lt.s32.totalorder %v707, 0
        %v709 = vsub.s32 0, %v707
        %v710 = vsel %vm708, %v709, %v707
        %v711 = vclz %v710
        %v712 = vsub.s32 %v711, 2
        %vm713 = vcmp.gt.s32.totalorder 0, %v712
        %v714 = vsel %vm713, 0, %v712
        %v715 = vsub.s32 32, %v714
        %v716 = vshll.u32 %v707, %v714
        %v717 = vshrl.u32 %v699, %v715
        %v718 = vor.u32 %v716, %v717
        %v719 = vsub.s32 4294967266, %v714
        %v720 = vadd.s32 %v719, 127
        %v721 = vshll.u32 %v720, 23
        %v722 = vor.u32 4788187, %v721
        %v723 = vand.u32 2147483647, %v722
        %v725 = vcvt.s32.f32 %v718
        %v726 = vmul.f32 %v725, %v723
        %v727 = vxor.u32 %v726, 2147483648
        %v728 = vsel %vm645, %v727, %v726
        %v729 = vsub.s32 4, %v705
        %v730 = vsel %vm645, %v729, %v705
        %v731 = vsel %vm644, %v413, %v728
        %v732 = vsel %vm644, 0, %v730
        %v733 = vcosq.f32.pop %v731
        %v734 = vsinq.f32.pop %v731
        %vm735 = vweird.f32 %v413
        %v736 = vadd.s32 %v732, 3
        %v737 = vand.u32 %v736, 3
        %vm738 = vcmp.lt.s32.totalorder %v737, 2
        %vm739 = vcmp.eq.s32.totalorder %v737, 0
        %v740 = vxor.u32 %v734, 2147483648
        %v741 = vsel %vm739, %v733, %v740
        %vm742 = vcmp.eq.s32.totalorder %v737, 2
        %v743 = vxor.u32 %v733, 2147483648
        %v744 = vsel %vm742, %v743, %v734
        %v745 = vsel %vm738, %v741, %v744
        %v746 = vsel %vm735, nan, %v745
        %v747 = vand.u32 2147483647, %v415
        %vm748 = vcmp.le.f32.partialorder %v747, 0.7853982
        %vm749 = vcmp.lt.s32.totalorder %v415, 0
        %v750 = vand.u32 %v415, 2139095040
        %v751 = vshrl.u32 %v750, 23
        %v752 = vsub.s32 %v751, 127
        %v753 = vand.u32 2147483647, %v415
        %v754 = vand.u32 %v753, 8388607
        %v755 = vor.u32 %v754, 8388608
        %v756 = vsub.s32 0, %v755
        %v757 = vadd.s32 %v752, 1
        %vm758 = vcmp.gt.s32.totalorder %v757, 0
        %v759 = vsel %vm758, %v757, 0
        %v760 = vshrl.u32 %v759, 5
        %v761 = vand.u32 %v759, 31
        %v762 = vsub.s32 32, %v761
        %v763 = vshrl.u32 683565275, %v762
        %v764 = vshll.u32 683565275, %v761
        %v765 = vshrl.u32 2475754826, %v762
        %v766 = vor.u32 %v764, %v765
        %v767 = vshll.u32 2475754826, %v761
        %v768 = vshrl.u32 2131351028, %v762
        %v769 = vor.u32 %v767, %v768
        %v770 = vshll.u32 2131351028, %v761
        %v771 = vshrl.u32 2102212464, %v762
        %v772 = vor.u32 %v770, %v771
        %v773 = vshll.u32 2102212464, %v761
        %v774 = vshrl.u32 920167782, %v762
        %v775 = vor.u32 %v773, %v774
        %v776 = vshll.u32 920167782, %v761
        %v777 = vshrl.u32 1326507024, %v762
        %v778 = vor.u32 %v776, %v777
        %vm779 = vcmp.lt.s32.totalorder %v760, 1
        %vm780 = vcmp.lt.s32.totalorder %v760, 2
        %vm781 = vcmp.lt.s32.totalorder %v760, 3
        %vm782 = vcmp.lt.s32.totalorder %v760, 4
        %v783 = vsel %vm779, %v763, %v766
        %v784 = vsel %vm782, %v772, 2102212464
        %v785 = vsel %vm781, %v769, %v784
        %v786 = vsel %vm780, %v783, %v785
        %v787 = vsel %vm779, %v766, %v769
        %v788 = vsel %vm782, %v775, 920167782
        %v789 = vsel %vm781, %v772, %v788
        %v790 = vsel %vm780, %v787, %v789
        %v791 = vsel %vm779, %v769, %v772
        %v792 = vsel %vm782, %v778, 1326507024
        %v793 = vsel %vm781, %v775, %v792
        %v794 = vsel %vm780, %v791, %v793
        %v795 = vshll.u32 %v755, 8
        %v796 = vmul.u32.u64.compose %v795, %v794
        %v797 = vextract.low.u32 %v796
        %v798 = vextract.high.u32 %v796
        %v799 = vmul.u32.u64.compose %v795, %v790
        %v800 = vextract.low.u32 %v799
        %v801 = vextract.high.u32 %v799
        %v802 = vmul.u32 %v795, %v786
        %v803 = vadd.s32 %v798, %v800
        %vm804 = vc.u32 %v798, %v800
        %v805 = vadd.s32 %v801, 1
        %v806 = vsel %vm804, %v805, %v801
        %v807 = vadd.s32 %v802, %v806
        %v808 = vadd.s32 %v807, 536870912
        %v809 = vshrl.u32 %v808, 30
        %v810 = vshll.u32 %v809, 30
        %v811 = vsub.s32 %v807, %v810
        %vm812 = vcmp.lt.s32.totalorder %v811, 0
        %v813 = vsub.s32 0, %v811
        %v814 = vsel %vm812, %v813, %v811
        %v815 = vclz %v814
        %v816 = vsub.s32 %v815, 2
        %vm817 = vcmp.gt.s32.totalorder 0, %v816
        %v818 = vsel %vm817, 0, %v816
        %v819 = vsub.s32 32, %v818
        %v820 = vshll.u32 %v811, %v818
        %v821 = vshrl.u32 %v803, %v819
        %v822 = vor.u32 %v820, %v821
        %v823 = vsub.s32 4294967266, %v818
        %v824 = vadd.s32 %v823, 127
        %v825 = vshll.u32 %v824, 23
        %v826 = vor.u32 4788187, %v825
        %v827 = vand.u32 2147483647, %v826
        %v829 = vcvt.s32.f32 %v822
        %v830 = vmul.f32 %v829, %v827
        %v831 = vxor.u32 %v830, 2147483648
        %v832 = vsel %vm749, %v831, %v830
        %v833 = vsub.s32 4, %v809
        %v834 = vsel %vm749, %v833, %v809
        %v835 = vsel %vm748, %v415, %v832
        %v836 = vsel %vm748, 0, %v834
        %v837 = vcosq.f32.pop %v835
        %v838 = vsinq.f32.pop %v835
        %vm839 = vweird.f32 %v415
        %v840 = vadd.s32 %v836, 3
        %v841 = vand.u32 %v840, 3
        %vm842 = vcmp.lt.s32.totalorder %v841, 2
        %vm843 = vcmp.eq.s32.totalorder %v841, 0
        %v844 = vxor.u32 %v838, 2147483648
        %v845 = vsel %vm843, %v837, %v844
        %vm846 = vcmp.eq.s32.totalorder %v841, 2
        %v847 = vxor.u32 %v837, 2147483648
        %v848 = vsel %vm846, %v847, %v838
        %v849 = vsel %vm842, %v845, %v848
        %v850 = vsel %vm839, nan, %v849
        %v851 = vand.u32 2147483647, %v330
        %vm852 = vcmp.le.f32.partialorder %v851, 0.7853982
        %vm853 = vcmp.lt.s32.totalorder %v330, 0
        %v854 = vand.u32 %v330, 2139095040
        %v855 = vshrl.u32 %v854, 23
        %v856 = vsub.s32 %v855, 127
        %v857 = vand.u32 2147483647, %v330
        %v858 = vand.u32 %v857, 8388607
        %v859 = vor.u32 %v858, 8388608
        %v860 = vsub.s32 0, %v859
        %v861 = vadd.s32 %v856, 1
        %vm862 = vcmp.gt.s32.totalorder %v861, 0
        %v863 = vsel %vm862, %v861, 0
        %v864 = vshrl.u32 %v863, 5
        %v865 = vand.u32 %v863, 31
        %v866 = vsub.s32 32, %v865
        %v867 = vshrl.u32 683565275, %v866
        %v868 = vshll.u32 683565275, %v865
        %v869 = vshrl.u32 2475754826, %v866
        %v870 = vor.u32 %v868, %v869
        %v871 = vshll.u32 2475754826, %v865
        %v872 = vshrl.u32 2131351028, %v866
        %v873 = vor.u32 %v871, %v872
        %v874 = vshll.u32 2131351028, %v865
        %v875 = vshrl.u32 2102212464, %v866
        %v876 = vor.u32 %v874, %v875
        %v877 = vshll.u32 2102212464, %v865
        %v878 = vshrl.u32 920167782, %v866
        %v879 = vor.u32 %v877, %v878
        %v880 = vshll.u32 920167782, %v865
        %v881 = vshrl.u32 1326507024, %v866
        %v882 = vor.u32 %v880, %v881
        %vm883 = vcmp.lt.s32.totalorder %v864, 1
        %vm884 = vcmp.lt.s32.totalorder %v864, 2
        %vm885 = vcmp.lt.s32.totalorder %v864, 3
        %vm886 = vcmp.lt.s32.totalorder %v864, 4
        %v887 = vsel %vm883, %v867, %v870
        %v888 = vsel %vm886, %v876, 2102212464
        %v889 = vsel %vm885, %v873, %v888
        %v890 = vsel %vm884, %v887, %v889
        %v891 = vsel %vm883, %v870, %v873
        %v892 = vsel %vm886, %v879, 920167782
        %v893 = vsel %vm885, %v876, %v892
        %v894 = vsel %vm884, %v891, %v893
        %v895 = vsel %vm883, %v873, %v876
        %v896 = vsel %vm886, %v882, 1326507024
        %v897 = vsel %vm885, %v879, %v896
        %v898 = vsel %vm884, %v895, %v897
        %v899 = vshll.u32 %v859, 8
        %v900 = vmul.u32.u64.compose %v899, %v898
        %v901 = vextract.low.u32 %v900
        %v902 = vextract.high.u32 %v900
        %v903 = vmul.u32.u64.compose %v899, %v894
        %v904 = vextract.low.u32 %v903
        %v905 = vextract.high.u32 %v903
        %v906 = vmul.u32 %v899, %v890
        %v907 = vadd.s32 %v902, %v904
        %vm908 = vc.u32 %v902, %v904
        %v909 = vadd.s32 %v905, 1
        %v910 = vsel %vm908, %v909, %v905
        %v911 = vadd.s32 %v906, %v910
        %v912 = vadd.s32 %v911, 536870912
        %v913 = vshrl.u32 %v912, 30
        %v914 = vshll.u32 %v913, 30
        %v915 = vsub.s32 %v911, %v914
        %vm916 = vcmp.lt.s32.totalorder %v915, 0
        %v917 = vsub.s32 0, %v915
        %v918 = vsel %vm916, %v917, %v915
        %v919 = vclz %v918
        %v920 = vsub.s32 %v919, 2
        %vm921 = vcmp.gt.s32.totalorder 0, %v920
        %v922 = vsel %vm921, 0, %v920
        %v923 = vsub.s32 32, %v922
        %v924 = vshll.u32 %v915, %v922
        %v925 = vshrl.u32 %v907, %v923
        %v926 = vor.u32 %v924, %v925
        %v927 = vsub.s32 4294967266, %v922
        %v928 = vadd.s32 %v927, 127
        %v929 = vshll.u32 %v928, 23
        %v930 = vor.u32 4788187, %v929
        %v931 = vand.u32 2147483647, %v930
        %v933 = vcvt.s32.f32 %v926
        %v934 = vmul.f32 %v933, %v931
        %v935 = vxor.u32 %v934, 2147483648
        %v936 = vsel %vm853, %v935, %v934
        %v937 = vsub.s32 4, %v913
        %v938 = vsel %vm853, %v937, %v913
        %v939 = vsel %vm852, %v330, %v936
        %v940 = vsel %vm852, 0, %v938
        %v941 = vcosq.f32.pop %v939
        %v942 = vsinq.f32.pop %v939
        %vm943 = vweird.f32 %v330
        %v944 = vadd.s32 %v940, 3
        %v945 = vand.u32 %v944, 3
        %vm946 = vcmp.lt.s32.totalorder %v945, 2
        %vm947 = vcmp.eq.s32.totalorder %v945, 0
        %v948 = vxor.u32 %v942, 2147483648
        %v949 = vsel %vm947, %v941, %v948
        %vm950 = vcmp.eq.s32.totalorder %v945, 2
        %v951 = vxor.u32 %v941, 2147483648
        %v952 = vsel %vm950, %v951, %v942
        %v953 = vsel %vm946, %v949, %v952
        %v954 = vsel %vm943, nan, %v953
        %v955 = vand.u32 2147483647, %v332
        %vm956 = vcmp.le.f32.partialorder %v955, 0.7853982
        %vm957 = vcmp.lt.s32.totalorder %v332, 0
        %v958 = vand.u32 %v332, 2139095040
        %v959 = vshrl.u32 %v958, 23
        %v960 = vsub.s32 %v959, 127
        %v961 = vand.u32 2147483647, %v332
        %v962 = vand.u32 %v961, 8388607
        %v963 = vor.u32 %v962, 8388608
        %v964 = vsub.s32 0, %v963
        %v965 = vadd.s32 %v960, 1
        %vm966 = vcmp.gt.s32.totalorder %v965, 0
        %v967 = vsel %vm966, %v965, 0
        %v968 = vshrl.u32 %v967, 5
        %v969 = vand.u32 %v967, 31
        %v970 = vsub.s32 32, %v969
        %v971 = vshrl.u32 683565275, %v970
        %v972 = vshll.u32 683565275, %v969
        %v973 = vshrl.u32 2475754826, %v970
        %v974 = vor.u32 %v972, %v973
        %v975 = vshll.u32 2475754826, %v969
        %v976 = vshrl.u32 2131351028, %v970
        %v977 = vor.u32 %v975, %v976
        %v978 = vshll.u32 2131351028, %v969
        %v979 = vshrl.u32 2102212464, %v970
        %v980 = vor.u32 %v978, %v979
        %v981 = vshll.u32 2102212464, %v969
        %v982 = vshrl.u32 920167782, %v970
        %v983 = vor.u32 %v981, %v982
        %v984 = vshll.u32 920167782, %v969
        %v985 = vshrl.u32 1326507024, %v970
        %v986 = vor.u32 %v984, %v985
        %vm987 = vcmp.lt.s32.totalorder %v968, 1
        %vm988 = vcmp.lt.s32.totalorder %v968, 2
        %vm989 = vcmp.lt.s32.totalorder %v968, 3
        %vm990 = vcmp.lt.s32.totalorder %v968, 4
        %v991 = vsel %vm987, %v971, %v974
        %v992 = vsel %vm990, %v980, 2102212464
        %v993 = vsel %vm989, %v977, %v992
        %v994 = vsel %vm988, %v991, %v993
        %v995 = vsel %vm987, %v974, %v977
        %v996 = vsel %vm990, %v983, 920167782
        %v997 = vsel %vm989, %v980, %v996
        %v998 = vsel %vm988, %v995, %v997
        %v999 = vsel %vm987, %v977, %v980
        %v1000 = vsel %vm990, %v986, 1326507024
        %v1001 = vsel %vm989, %v983, %v1000
        %v1002 = vsel %vm988, %v999, %v1001
        %v1003 = vshll.u32 %v963, 8
        %v1004 = vmul.u32.u64.compose %v1003, %v1002
        %v1005 = vextract.low.u32 %v1004
        %v1006 = vextract.high.u32 %v1004
        %v1007 = vmul.u32.u64.compose %v1003, %v998
        %v1008 = vextract.low.u32 %v1007
        %v1009 = vextract.high.u32 %v1007
        %v1010 = vmul.u32 %v1003, %v994
        %v1011 = vadd.s32 %v1006, %v1008
        %vm1012 = vc.u32 %v1006, %v1008
        %v1013 = vadd.s32 %v1009, 1
        %v1014 = vsel %vm1012, %v1013, %v1009
        %v1015 = vadd.s32 %v1010, %v1014
        %v1016 = vadd.s32 %v1015, 536870912
        %v1017 = vshrl.u32 %v1016, 30
        %v1018 = vshll.u32 %v1017, 30
        %v1019 = vsub.s32 %v1015, %v1018
        %vm1020 = vcmp.lt.s32.totalorder %v1019, 0
        %v1021 = vsub.s32 0, %v1019
        %v1022 = vsel %vm1020, %v1021, %v1019
        %v1023 = vclz %v1022
        %v1024 = vsub.s32 %v1023, 2
        %vm1025 = vcmp.gt.s32.totalorder 0, %v1024
        %v1026 = vsel %vm1025, 0, %v1024
        %v1027 = vsub.s32 32, %v1026
        %v1028 = vshll.u32 %v1019, %v1026
        %v1029 = vshrl.u32 %v1011, %v1027
        %v1030 = vor.u32 %v1028, %v1029
        %v1031 = vsub.s32 4294967266, %v1026
        %v1032 = vadd.s32 %v1031, 127
        %v1033 = vshll.u32 %v1032, 23
        %v1034 = vor.u32 4788187, %v1033
        %v1035 = vand.u32 2147483647, %v1034
        %v1037 = vcvt.s32.f32 %v1030
        %v1038 = vmul.f32 %v1037, %v1035
        %v1039 = vxor.u32 %v1038, 2147483648
        %v1040 = vsel %vm957, %v1039, %v1038
        %v1041 = vsub.s32 4, %v1017
        %v1042 = vsel %vm957, %v1041, %v1017
        %v1043 = vsel %vm956, %v332, %v1040
        %v1044 = vsel %vm956, 0, %v1042
        %v1045 = vcosq.f32.pop %v1043
        %v1046 = vsinq.f32.pop %v1043
        %vm1047 = vweird.f32 %v332
        %v1048 = vadd.s32 %v1044, 3
        %v1049 = vand.u32 %v1048, 3
        %vm1050 = vcmp.lt.s32.totalorder %v1049, 2
        %vm1051 = vcmp.eq.s32.totalorder %v1049, 0
        %v1052 = vxor.u32 %v1046, 2147483648
        %v1053 = vsel %vm1051, %v1045, %v1052
        %vm1054 = vcmp.eq.s32.totalorder %v1049, 2
        %v1055 = vxor.u32 %v1045, 2147483648
        %v1056 = vsel %vm1054, %v1055, %v1046
        %v1057 = vsel %vm1050, %v1053, %v1056
        %v1058 = vsel %vm1047, nan, %v1057
        %v1059 = vand.u32 2147483647, %v419
        %vm1060 = vcmp.le.f32.partialorder %v1059, 0.7853982
        %vm1061 = vcmp.lt.s32.totalorder %v419, 0
        %v1062 = vand.u32 %v419, 2139095040
        %v1063 = vshrl.u32 %v1062, 23
        %v1064 = vsub.s32 %v1063, 127
        %v1065 = vand.u32 2147483647, %v419
        %v1066 = vand.u32 %v1065, 8388607
        %v1067 = vor.u32 %v1066, 8388608
        %v1068 = vsub.s32 0, %v1067
        %v1069 = vadd.s32 %v1064, 1
        %vm1070 = vcmp.gt.s32.totalorder %v1069, 0
        %v1071 = vsel %vm1070, %v1069, 0
        %v1072 = vshrl.u32 %v1071, 5
        %v1073 = vand.u32 %v1071, 31
        %v1074 = vsub.s32 32, %v1073
        %v1075 = vshrl.u32 683565275, %v1074
        %v1076 = vshll.u32 683565275, %v1073
        %v1077 = vshrl.u32 2475754826, %v1074
        %v1078 = vor.u32 %v1076, %v1077
        %v1079 = vshll.u32 2475754826, %v1073
        %v1080 = vshrl.u32 2131351028, %v1074
        %v1081 = vor.u32 %v1079, %v1080
        %v1082 = vshll.u32 2131351028, %v1073
        %v1083 = vshrl.u32 2102212464, %v1074
        %v1084 = vor.u32 %v1082, %v1083
        %v1085 = vshll.u32 2102212464, %v1073
        %v1086 = vshrl.u32 920167782, %v1074
        %v1087 = vor.u32 %v1085, %v1086
        %v1088 = vshll.u32 920167782, %v1073
        %v1089 = vshrl.u32 1326507024, %v1074
        %v1090 = vor.u32 %v1088, %v1089
        %vm1091 = vcmp.lt.s32.totalorder %v1072, 1
        %vm1092 = vcmp.lt.s32.totalorder %v1072, 2
        %vm1093 = vcmp.lt.s32.totalorder %v1072, 3
        %vm1094 = vcmp.lt.s32.totalorder %v1072, 4
        %v1095 = vsel %vm1091, %v1075, %v1078
        %v1096 = vsel %vm1094, %v1084, 2102212464
        %v1097 = vsel %vm1093, %v1081, %v1096
        %v1098 = vsel %vm1092, %v1095, %v1097
        %v1099 = vsel %vm1091, %v1078, %v1081
        %v1100 = vsel %vm1094, %v1087, 920167782
        %v1101 = vsel %vm1093, %v1084, %v1100
        %v1102 = vsel %vm1092, %v1099, %v1101
        %v1103 = vsel %vm1091, %v1081, %v1084
        %v1104 = vsel %vm1094, %v1090, 1326507024
        %v1105 = vsel %vm1093, %v1087, %v1104
        %v1106 = vsel %vm1092, %v1103, %v1105
        %v1107 = vshll.u32 %v1067, 8
        %v1108 = vmul.u32.u64.compose %v1107, %v1106
        %v1109 = vextract.low.u32 %v1108
        %v1110 = vextract.high.u32 %v1108
        %v1111 = vmul.u32.u64.compose %v1107, %v1102
        %v1112 = vextract.low.u32 %v1111
        %v1113 = vextract.high.u32 %v1111
        %v1114 = vmul.u32 %v1107, %v1098
        %v1115 = vadd.s32 %v1110, %v1112
        %vm1116 = vc.u32 %v1110, %v1112
        %v1117 = vadd.s32 %v1113, 1
        %v1118 = vsel %vm1116, %v1117, %v1113
        %v1119 = vadd.s32 %v1114, %v1118
        %v1120 = vadd.s32 %v1119, 536870912
        %v1121 = vshrl.u32 %v1120, 30
        %v1122 = vshll.u32 %v1121, 30
        %v1123 = vsub.s32 %v1119, %v1122
        %vm1124 = vcmp.lt.s32.totalorder %v1123, 0
        %v1125 = vsub.s32 0, %v1123
        %v1126 = vsel %vm1124, %v1125, %v1123
        %v1127 = vclz %v1126
        %v1128 = vsub.s32 %v1127, 2
        %vm1129 = vcmp.gt.s32.totalorder 0, %v1128
        %v1130 = vsel %vm1129, 0, %v1128
        %v1131 = vsub.s32 32, %v1130
        %v1132 = vshll.u32 %v1123, %v1130
        %v1133 = vshrl.u32 %v1115, %v1131
        %v1134 = vor.u32 %v1132, %v1133
        %v1135 = vsub.s32 4294967266, %v1130
        %v1136 = vadd.s32 %v1135, 127
        %v1137 = vshll.u32 %v1136, 23
        %v1138 = vor.u32 4788187, %v1137
        %v1139 = vand.u32 2147483647, %v1138
        %v1141 = vcvt.s32.f32 %v1134
        %v1142 = vmul.f32 %v1141, %v1139
        %v1143 = vxor.u32 %v1142, 2147483648
        %v1144 = vsel %vm1061, %v1143, %v1142
        %v1145 = vsub.s32 4, %v1121
        %v1146 = vsel %vm1061, %v1145, %v1121
        %v1147 = vsel %vm1060, %v419, %v1144
        %v1148 = vsel %vm1060, 0, %v1146
        %v1149 = vcosq.f32.pop %v1147
        %v1150 = vsinq.f32.pop %v1147
        %vm1151 = vweird.f32 %v419
        %v1152 = vadd.s32 %v1148, 3
        %v1153 = vand.u32 %v1152, 3
        %vm1154 = vcmp.lt.s32.totalorder %v1153, 2
        %vm1155 = vcmp.eq.s32.totalorder %v1153, 0
        %v1156 = vxor.u32 %v1150, 2147483648
        %v1157 = vsel %vm1155, %v1149, %v1156
        %vm1158 = vcmp.eq.s32.totalorder %v1153, 2
        %v1159 = vxor.u32 %v1149, 2147483648
        %v1160 = vsel %vm1158, %v1159, %v1150
        %v1161 = vsel %vm1154, %v1157, %v1160
        %v1162 = vsel %vm1151, nan, %v1161
        %v1163 = vand.u32 2147483647, %v421
        %vm1164 = vcmp.le.f32.partialorder %v1163, 0.7853982
        %vm1165 = vcmp.lt.s32.totalorder %v421, 0
        %v1166 = vand.u32 %v421, 2139095040
        %v1167 = vshrl.u32 %v1166, 23
        %v1168 = vsub.s32 %v1167, 127
        %v1169 = vand.u32 2147483647, %v421
        %v1170 = vand.u32 %v1169, 8388607
        %v1171 = vor.u32 %v1170, 8388608
        %v1172 = vsub.s32 0, %v1171
        %v1173 = vadd.s32 %v1168, 1
        %vm1174 = vcmp.gt.s32.totalorder %v1173, 0
        %v1175 = vsel %vm1174, %v1173, 0
        %v1176 = vshrl.u32 %v1175, 5
        %v1177 = vand.u32 %v1175, 31
        %v1178 = vsub.s32 32, %v1177
        %v1179 = vshrl.u32 683565275, %v1178
        %v1180 = vshll.u32 683565275, %v1177
        %v1181 = vshrl.u32 2475754826, %v1178
        %v1182 = vor.u32 %v1180, %v1181
        %v1183 = vshll.u32 2475754826, %v1177
        %v1184 = vshrl.u32 2131351028, %v1178
        %v1185 = vor.u32 %v1183, %v1184
        %v1186 = vshll.u32 2131351028, %v1177
        %v1187 = vshrl.u32 2102212464, %v1178
        %v1188 = vor.u32 %v1186, %v1187
        %v1189 = vshll.u32 2102212464, %v1177
        %v1190 = vshrl.u32 920167782, %v1178
        %v1191 = vor.u32 %v1189, %v1190
        %v1192 = vshll.u32 920167782, %v1177
        %v1193 = vshrl.u32 1326507024, %v1178
        %v1194 = vor.u32 %v1192, %v1193
        %vm1195 = vcmp.lt.s32.totalorder %v1176, 1
        %vm1196 = vcmp.lt.s32.totalorder %v1176, 2
        %vm1197 = vcmp.lt.s32.totalorder %v1176, 3
        %vm1198 = vcmp.lt.s32.totalorder %v1176, 4
        %v1199 = vsel %vm1195, %v1179, %v1182
        %v1200 = vsel %vm1198, %v1188, 2102212464
        %v1201 = vsel %vm1197, %v1185, %v1200
        %v1202 = vsel %vm1196, %v1199, %v1201
        %v1203 = vsel %vm1195, %v1182, %v1185
        %v1204 = vsel %vm1198, %v1191, 920167782
        %v1205 = vsel %vm1197, %v1188, %v1204
        %v1206 = vsel %vm1196, %v1203, %v1205
        %v1207 = vsel %vm1195, %v1185, %v1188
        %v1208 = vsel %vm1198, %v1194, 1326507024
        %v1209 = vsel %vm1197, %v1191, %v1208
        %v1210 = vsel %vm1196, %v1207, %v1209
        %v1211 = vshll.u32 %v1171, 8
        %v1212 = vmul.u32.u64.compose %v1211, %v1210
        %v1213 = vextract.low.u32 %v1212
        %v1214 = vextract.high.u32 %v1212
        %v1215 = vmul.u32.u64.compose %v1211, %v1206
        %v1216 = vextract.low.u32 %v1215
        %v1217 = vextract.high.u32 %v1215
        %v1218 = vmul.u32 %v1211, %v1202
        %v1219 = vadd.s32 %v1214, %v1216
        %vm1220 = vc.u32 %v1214, %v1216
        %v1221 = vadd.s32 %v1217, 1
        %v1222 = vsel %vm1220, %v1221, %v1217
        %v1223 = vadd.s32 %v1218, %v1222
        %v1224 = vadd.s32 %v1223, 536870912
        %v1225 = vshrl.u32 %v1224, 30
        %v1226 = vshll.u32 %v1225, 30
        %v1227 = vsub.s32 %v1223, %v1226
        %vm1228 = vcmp.lt.s32.totalorder %v1227, 0
        %v1229 = vsub.s32 0, %v1227
        %v1230 = vsel %vm1228, %v1229, %v1227
        %v1231 = vclz %v1230
        %v1232 = vsub.s32 %v1231, 2
        %vm1233 = vcmp.gt.s32.totalorder 0, %v1232
        %v1234 = vsel %vm1233, 0, %v1232
        %v1235 = vsub.s32 32, %v1234
        %v1236 = vshll.u32 %v1227, %v1234
        %v1237 = vshrl.u32 %v1219, %v1235
        %v1238 = vor.u32 %v1236, %v1237
        %v1239 = vsub.s32 4294967266, %v1234
        %v1240 = vadd.s32 %v1239, 127
        %v1241 = vshll.u32 %v1240, 23
        %v1242 = vor.u32 4788187, %v1241
        %v1243 = vand.u32 2147483647, %v1242
        %v1245 = vcvt.s32.f32 %v1238
        %v1246 = vmul.f32 %v1245, %v1243
        %v1247 = vxor.u32 %v1246, 2147483648
        %v1248 = vsel %vm1165, %v1247, %v1246
        %v1249 = vsub.s32 4, %v1225
        %v1250 = vsel %vm1165, %v1249, %v1225
        %v1251 = vsel %vm1164, %v421, %v1248
        %v1252 = vsel %vm1164, 0, %v1250
        %v1253 = vcosq.f32.pop %v1251
        %v1254 = vsinq.f32.pop %v1251
        %vm1255 = vweird.f32 %v421
        %v1256 = vadd.s32 %v1252, 3
        %v1257 = vand.u32 %v1256, 3
        %vm1258 = vcmp.lt.s32.totalorder %v1257, 2
        %vm1259 = vcmp.eq.s32.totalorder %v1257, 0
        %v1260 = vxor.u32 %v1254, 2147483648
        %v1261 = vsel %vm1259, %v1253, %v1260
        %vm1262 = vcmp.eq.s32.totalorder %v1257, 2
        %v1263 = vxor.u32 %v1253, 2147483648
        %v1264 = vsel %vm1262, %v1263, %v1254
        %v1265 = vsel %vm1258, %v1261, %v1264
        %v1266 = vsel %vm1255, nan, %v1265
        %v1267 = vand.u32 2147483647, %v336
        %vm1268 = vcmp.le.f32.partialorder %v1267, 0.7853982
        %vm1269 = vcmp.lt.s32.totalorder %v336, 0
        %v1270 = vand.u32 %v336, 2139095040
        %v1271 = vshrl.u32 %v1270, 23
        %v1272 = vsub.s32 %v1271, 127
        %v1273 = vand.u32 2147483647, %v336
        %v1274 = vand.u32 %v1273, 8388607
        %v1275 = vor.u32 %v1274, 8388608
        %v1276 = vsub.s32 0, %v1275
        %v1277 = vadd.s32 %v1272, 1
        %vm1278 = vcmp.gt.s32.totalorder %v1277, 0
        %v1279 = vsel %vm1278, %v1277, 0
        %v1280 = vshrl.u32 %v1279, 5
        %v1281 = vand.u32 %v1279, 31
        %v1282 = vsub.s32 32, %v1281
        %v1283 = vshrl.u32 683565275, %v1282
        %v1284 = vshll.u32 683565275, %v1281
        %v1285 = vshrl.u32 2475754826, %v1282
        %v1286 = vor.u32 %v1284, %v1285
        %v1287 = vshll.u32 2475754826, %v1281
        %v1288 = vshrl.u32 2131351028, %v1282
        %v1289 = vor.u32 %v1287, %v1288
        %v1290 = vshll.u32 2131351028, %v1281
        %v1291 = vshrl.u32 2102212464, %v1282
        %v1292 = vor.u32 %v1290, %v1291
        %v1293 = vshll.u32 2102212464, %v1281
        %v1294 = vshrl.u32 920167782, %v1282
        %v1295 = vor.u32 %v1293, %v1294
        %v1296 = vshll.u32 920167782, %v1281
        %v1297 = vshrl.u32 1326507024, %v1282
        %v1298 = vor.u32 %v1296, %v1297
        %vm1299 = vcmp.lt.s32.totalorder %v1280, 1
        %vm1300 = vcmp.lt.s32.totalorder %v1280, 2
        %vm1301 = vcmp.lt.s32.totalorder %v1280, 3
        %vm1302 = vcmp.lt.s32.totalorder %v1280, 4
        %v1303 = vsel %vm1299, %v1283, %v1286
        %v1304 = vsel %vm1302, %v1292, 2102212464
        %v1305 = vsel %vm1301, %v1289, %v1304
        %v1306 = vsel %vm1300, %v1303, %v1305
        %v1307 = vsel %vm1299, %v1286, %v1289
        %v1308 = vsel %vm1302, %v1295, 920167782
        %v1309 = vsel %vm1301, %v1292, %v1308
        %v1310 = vsel %vm1300, %v1307, %v1309
        %v1311 = vsel %vm1299, %v1289, %v1292
        %v1312 = vsel %vm1302, %v1298, 1326507024
        %v1313 = vsel %vm1301, %v1295, %v1312
        %v1314 = vsel %vm1300, %v1311, %v1313
        %v1315 = vshll.u32 %v1275, 8
        %v1316 = vmul.u32.u64.compose %v1315, %v1314
        %v1317 = vextract.low.u32 %v1316
        %v1318 = vextract.high.u32 %v1316
        %v1319 = vmul.u32.u64.compose %v1315, %v1310
        %v1320 = vextract.low.u32 %v1319
        %v1321 = vextract.high.u32 %v1319
        %v1322 = vmul.u32 %v1315, %v1306
        %v1323 = vadd.s32 %v1318, %v1320
        %vm1324 = vc.u32 %v1318, %v1320
        %v1325 = vadd.s32 %v1321, 1
        %v1326 = vsel %vm1324, %v1325, %v1321
        %v1327 = vadd.s32 %v1322, %v1326
        %v1328 = vadd.s32 %v1327, 536870912
        %v1329 = vshrl.u32 %v1328, 30
        %v1330 = vshll.u32 %v1329, 30
        %v1331 = vsub.s32 %v1327, %v1330
        %vm1332 = vcmp.lt.s32.totalorder %v1331, 0
        %v1333 = vsub.s32 0, %v1331
        %v1334 = vsel %vm1332, %v1333, %v1331
        %v1335 = vclz %v1334
        %v1336 = vsub.s32 %v1335, 2
        %vm1337 = vcmp.gt.s32.totalorder 0, %v1336
        %v1338 = vsel %vm1337, 0, %v1336
        %v1339 = vsub.s32 32, %v1338
        %v1340 = vshll.u32 %v1331, %v1338
        %v1341 = vshrl.u32 %v1323, %v1339
        %v1342 = vor.u32 %v1340, %v1341
        %v1343 = vsub.s32 4294967266, %v1338
        %v1344 = vadd.s32 %v1343, 127
        %v1345 = vshll.u32 %v1344, 23
        %v1346 = vor.u32 4788187, %v1345
        %v1347 = vand.u32 2147483647, %v1346
        %v1349 = vcvt.s32.f32 %v1342
        %v1350 = vmul.f32 %v1349, %v1347
        %v1351 = vxor.u32 %v1350, 2147483648
        %v1352 = vsel %vm1269, %v1351, %v1350
        %v1353 = vsub.s32 4, %v1329
        %v1354 = vsel %vm1269, %v1353, %v1329
        %v1355 = vsel %vm1268, %v336, %v1352
        %v1356 = vsel %vm1268, 0, %v1354
        %v1357 = vcosq.f32.pop %v1355
        %v1358 = vsinq.f32.pop %v1355
        %vm1359 = vweird.f32 %v336
        %v1360 = vadd.s32 %v1356, 3
        %v1361 = vand.u32 %v1360, 3
        %vm1362 = vcmp.lt.s32.totalorder %v1361, 2
        %vm1363 = vcmp.eq.s32.totalorder %v1361, 0
        %v1364 = vxor.u32 %v1358, 2147483648
        %v1365 = vsel %vm1363, %v1357, %v1364
        %vm1366 = vcmp.eq.s32.totalorder %v1361, 2
        %v1367 = vxor.u32 %v1357, 2147483648
        %v1368 = vsel %vm1366, %v1367, %v1358
        %v1369 = vsel %vm1362, %v1365, %v1368
        %v1370 = vsel %vm1359, nan, %v1369
        %v1371 = vand.u32 2147483647, %v338
        %vm1372 = vcmp.le.f32.partialorder %v1371, 0.7853982
        %vm1373 = vcmp.lt.s32.totalorder %v338, 0
        %v1374 = vand.u32 %v338, 2139095040
        %v1375 = vshrl.u32 %v1374, 23
        %v1376 = vsub.s32 %v1375, 127
        %v1377 = vand.u32 2147483647, %v338
        %v1378 = vand.u32 %v1377, 8388607
        %v1379 = vor.u32 %v1378, 8388608
        %v1380 = vsub.s32 0, %v1379
        %v1381 = vadd.s32 %v1376, 1
        %vm1382 = vcmp.gt.s32.totalorder %v1381, 0
        %v1383 = vsel %vm1382, %v1381, 0
        %v1384 = vshrl.u32 %v1383, 5
        %v1385 = vand.u32 %v1383, 31
        %v1386 = vsub.s32 32, %v1385
        %v1387 = vshrl.u32 683565275, %v1386
        %v1388 = vshll.u32 683565275, %v1385
        %v1389 = vshrl.u32 2475754826, %v1386
        %v1390 = vor.u32 %v1388, %v1389
        %v1391 = vshll.u32 2475754826, %v1385
        %v1392 = vshrl.u32 2131351028, %v1386
        %v1393 = vor.u32 %v1391, %v1392
        %v1394 = vshll.u32 2131351028, %v1385
        %v1395 = vshrl.u32 2102212464, %v1386
        %v1396 = vor.u32 %v1394, %v1395
        %v1397 = vshll.u32 2102212464, %v1385
        %v1398 = vshrl.u32 920167782, %v1386
        %v1399 = vor.u32 %v1397, %v1398
        %v1400 = vshll.u32 920167782, %v1385
        %v1401 = vshrl.u32 1326507024, %v1386
        %v1402 = vor.u32 %v1400, %v1401
        %vm1403 = vcmp.lt.s32.totalorder %v1384, 1
        %vm1404 = vcmp.lt.s32.totalorder %v1384, 2
        %vm1405 = vcmp.lt.s32.totalorder %v1384, 3
        %vm1406 = vcmp.lt.s32.totalorder %v1384, 4
        %v1407 = vsel %vm1403, %v1387, %v1390
        %v1408 = vsel %vm1406, %v1396, 2102212464
        %v1409 = vsel %vm1405, %v1393, %v1408
        %v1410 = vsel %vm1404, %v1407, %v1409
        %v1411 = vsel %vm1403, %v1390, %v1393
        %v1412 = vsel %vm1406, %v1399, 920167782
        %v1413 = vsel %vm1405, %v1396, %v1412
        %v1414 = vsel %vm1404, %v1411, %v1413
        %v1415 = vsel %vm1403, %v1393, %v1396
        %v1416 = vsel %vm1406, %v1402, 1326507024
        %v1417 = vsel %vm1405, %v1399, %v1416
        %v1418 = vsel %vm1404, %v1415, %v1417
        %v1419 = vshll.u32 %v1379, 8
        %v1420 = vmul.u32.u64.compose %v1419, %v1418
        %v1421 = vextract.low.u32 %v1420
        %v1422 = vextract.high.u32 %v1420
        %v1423 = vmul.u32.u64.compose %v1419, %v1414
        %v1424 = vextract.low.u32 %v1423
        %v1425 = vextract.high.u32 %v1423
        %v1426 = vmul.u32 %v1419, %v1410
        %v1427 = vadd.s32 %v1422, %v1424
        %vm1428 = vc.u32 %v1422, %v1424
        %v1429 = vadd.s32 %v1425, 1
        %v1430 = vsel %vm1428, %v1429, %v1425
        %v1431 = vadd.s32 %v1426, %v1430
        %v1432 = vadd.s32 %v1431, 536870912
        %v1433 = vshrl.u32 %v1432, 30
        %v1434 = vshll.u32 %v1433, 30
        %v1435 = vsub.s32 %v1431, %v1434
        %vm1436 = vcmp.lt.s32.totalorder %v1435, 0
        %v1437 = vsub.s32 0, %v1435
        %v1438 = vsel %vm1436, %v1437, %v1435
        %v1439 = vclz %v1438
        %v1440 = vsub.s32 %v1439, 2
        %vm1441 = vcmp.gt.s32.totalorder 0, %v1440
        %v1442 = vsel %vm1441, 0, %v1440
        %v1443 = vsub.s32 32, %v1442
        %v1444 = vshll.u32 %v1435, %v1442
        %v1445 = vshrl.u32 %v1427, %v1443
        %v1446 = vor.u32 %v1444, %v1445
        %v1447 = vsub.s32 4294967266, %v1442
        %v1448 = vadd.s32 %v1447, 127
        %v1449 = vshll.u32 %v1448, 23
        %v1450 = vor.u32 4788187, %v1449
        %v1451 = vand.u32 2147483647, %v1450
        %v1453 = vcvt.s32.f32 %v1446
        %v1454 = vmul.f32 %v1453, %v1451
        %v1455 = vxor.u32 %v1454, 2147483648
        %v1456 = vsel %vm1373, %v1455, %v1454
        %v1457 = vsub.s32 4, %v1433
        %v1458 = vsel %vm1373, %v1457, %v1433
        %v1459 = vsel %vm1372, %v338, %v1456
        %v1460 = vsel %vm1372, 0, %v1458
        %v1461 = vcosq.f32.pop %v1459
        %v1462 = vsinq.f32.pop %v1459
        %vm1463 = vweird.f32 %v338
        %v1464 = vadd.s32 %v1460, 3
        %v1465 = vand.u32 %v1464, 3
        %vm1466 = vcmp.lt.s32.totalorder %v1465, 2
        %vm1467 = vcmp.eq.s32.totalorder %v1465, 0
        %v1468 = vxor.u32 %v1462, 2147483648
        %v1469 = vsel %vm1467, %v1461, %v1468
        %vm1470 = vcmp.eq.s32.totalorder %v1465, 2
        %v1471 = vxor.u32 %v1461, 2147483648
        %v1472 = vsel %vm1470, %v1471, %v1462
        %v1473 = vsel %vm1466, %v1469, %v1472
        %v1474 = vsel %vm1463, nan, %v1473
        %v1475 = vand.u32 2147483647, %v425
        %vm1476 = vcmp.le.f32.partialorder %v1475, 0.7853982
        %vm1477 = vcmp.lt.s32.totalorder %v425, 0
        %v1478 = vand.u32 %v425, 2139095040
        %v1479 = vshrl.u32 %v1478, 23
        %v1480 = vsub.s32 %v1479, 127
        %v1481 = vand.u32 2147483647, %v425
        %v1482 = vand.u32 %v1481, 8388607
        %v1483 = vor.u32 %v1482, 8388608
        %v1484 = vsub.s32 0, %v1483
        %v1485 = vadd.s32 %v1480, 1
        %vm1486 = vcmp.gt.s32.totalorder %v1485, 0
        %v1487 = vsel %vm1486, %v1485, 0
        %v1488 = vshrl.u32 %v1487, 5
        %v1489 = vand.u32 %v1487, 31
        %v1490 = vsub.s32 32, %v1489
        %v1491 = vshrl.u32 683565275, %v1490
        %v1492 = vshll.u32 683565275, %v1489
        %v1493 = vshrl.u32 2475754826, %v1490
        %v1494 = vor.u32 %v1492, %v1493
        %v1495 = vshll.u32 2475754826, %v1489
        %v1496 = vshrl.u32 2131351028, %v1490
        %v1497 = vor.u32 %v1495, %v1496
        %v1498 = vshll.u32 2131351028, %v1489
        %v1499 = vshrl.u32 2102212464, %v1490
        %v1500 = vor.u32 %v1498, %v1499
        %v1501 = vshll.u32 2102212464, %v1489
        %v1502 = vshrl.u32 920167782, %v1490
        %v1503 = vor.u32 %v1501, %v1502
        %v1504 = vshll.u32 920167782, %v1489
        %v1505 = vshrl.u32 1326507024, %v1490
        %v1506 = vor.u32 %v1504, %v1505
        %vm1507 = vcmp.lt.s32.totalorder %v1488, 1
        %vm1508 = vcmp.lt.s32.totalorder %v1488, 2
        %vm1509 = vcmp.lt.s32.totalorder %v1488, 3
        %vm1510 = vcmp.lt.s32.totalorder %v1488, 4
        %v1511 = vsel %vm1507, %v1491, %v1494
        %v1512 = vsel %vm1510, %v1500, 2102212464
        %v1513 = vsel %vm1509, %v1497, %v1512
        %v1514 = vsel %vm1508, %v1511, %v1513
        %v1515 = vsel %vm1507, %v1494, %v1497
        %v1516 = vsel %vm1510, %v1503, 920167782
        %v1517 = vsel %vm1509, %v1500, %v1516
        %v1518 = vsel %vm1508, %v1515, %v1517
        %v1519 = vsel %vm1507, %v1497, %v1500
        %v1520 = vsel %vm1510, %v1506, 1326507024
        %v1521 = vsel %vm1509, %v1503, %v1520
        %v1522 = vsel %vm1508, %v1519, %v1521
        %v1523 = vshll.u32 %v1483, 8
        %v1524 = vmul.u32.u64.compose %v1523, %v1522
        %v1525 = vextract.low.u32 %v1524
        %v1526 = vextract.high.u32 %v1524
        %v1527 = vmul.u32.u64.compose %v1523, %v1518
        %v1528 = vextract.low.u32 %v1527
        %v1529 = vextract.high.u32 %v1527
        %v1530 = vmul.u32 %v1523, %v1514
        %v1531 = vadd.s32 %v1526, %v1528
        %vm1532 = vc.u32 %v1526, %v1528
        %v1533 = vadd.s32 %v1529, 1
        %v1534 = vsel %vm1532, %v1533, %v1529
        %v1535 = vadd.s32 %v1530, %v1534
        %v1536 = vadd.s32 %v1535, 536870912
        %v1537 = vshrl.u32 %v1536, 30
        %v1538 = vshll.u32 %v1537, 30
        %v1539 = vsub.s32 %v1535, %v1538
        %vm1540 = vcmp.lt.s32.totalorder %v1539, 0
        %v1541 = vsub.s32 0, %v1539
        %v1542 = vsel %vm1540, %v1541, %v1539
        %v1543 = vclz %v1542
        %v1544 = vsub.s32 %v1543, 2
        %vm1545 = vcmp.gt.s32.totalorder 0, %v1544
        %v1546 = vsel %vm1545, 0, %v1544
        %v1547 = vsub.s32 32, %v1546
        %v1548 = vshll.u32 %v1539, %v1546
        %v1549 = vshrl.u32 %v1531, %v1547
        %v1550 = vor.u32 %v1548, %v1549
        %v1551 = vsub.s32 4294967266, %v1546
        %v1552 = vadd.s32 %v1551, 127
        %v1553 = vshll.u32 %v1552, 23
        %v1554 = vor.u32 4788187, %v1553
        %v1555 = vand.u32 2147483647, %v1554
        %v1557 = vcvt.s32.f32 %v1550
        %v1558 = vmul.f32 %v1557, %v1555
        %v1559 = vxor.u32 %v1558, 2147483648
        %v1560 = vsel %vm1477, %v1559, %v1558
        %v1561 = vsub.s32 4, %v1537
        %v1562 = vsel %vm1477, %v1561, %v1537
        %v1563 = vsel %vm1476, %v425, %v1560
        %v1564 = vsel %vm1476, 0, %v1562
        %v1565 = vcosq.f32.pop %v1563
        %v1566 = vsinq.f32.pop %v1563
        %vm1567 = vweird.f32 %v425
        %v1568 = vadd.s32 %v1564, 3
        %v1569 = vand.u32 %v1568, 3
        %vm1570 = vcmp.lt.s32.totalorder %v1569, 2
        %vm1571 = vcmp.eq.s32.totalorder %v1569, 0
        %v1572 = vxor.u32 %v1566, 2147483648
        %v1573 = vsel %vm1571, %v1565, %v1572
        %vm1574 = vcmp.eq.s32.totalorder %v1569, 2
        %v1575 = vxor.u32 %v1565, 2147483648
        %v1576 = vsel %vm1574, %v1575, %v1566
        %v1577 = vsel %vm1570, %v1573, %v1576
        %v1578 = vsel %vm1567, nan, %v1577
        %v1579 = vand.u32 2147483647, %v427
        %vm1580 = vcmp.le.f32.partialorder %v1579, 0.7853982
        %vm1581 = vcmp.lt.s32.totalorder %v427, 0
        %v1582 = vand.u32 %v427, 2139095040
        %v1583 = vshrl.u32 %v1582, 23
        %v1584 = vsub.s32 %v1583, 127
        %v1585 = vand.u32 2147483647, %v427
        %v1586 = vand.u32 %v1585, 8388607
        %v1587 = vor.u32 %v1586, 8388608
        %v1588 = vsub.s32 0, %v1587
        %v1589 = vadd.s32 %v1584, 1
        %vm1590 = vcmp.gt.s32.totalorder %v1589, 0
        %v1591 = vsel %vm1590, %v1589, 0
        %v1592 = vshrl.u32 %v1591, 5
        %v1593 = vand.u32 %v1591, 31
        %v1594 = vsub.s32 32, %v1593
        %v1595 = vshrl.u32 683565275, %v1594
        %v1596 = vshll.u32 683565275, %v1593
        %v1597 = vshrl.u32 2475754826, %v1594
        %v1598 = vor.u32 %v1596, %v1597
        %v1599 = vshll.u32 2475754826, %v1593
        %v1600 = vshrl.u32 2131351028, %v1594
        %v1601 = vor.u32 %v1599, %v1600
        %v1602 = vshll.u32 2131351028, %v1593
        %v1603 = vshrl.u32 2102212464, %v1594
        %v1604 = vor.u32 %v1602, %v1603
        %v1605 = vshll.u32 2102212464, %v1593
        %v1606 = vshrl.u32 920167782, %v1594
        %v1607 = vor.u32 %v1605, %v1606
        %v1608 = vshll.u32 920167782, %v1593
        %v1609 = vshrl.u32 1326507024, %v1594
        %v1610 = vor.u32 %v1608, %v1609
        %vm1611 = vcmp.lt.s32.totalorder %v1592, 1
        %vm1612 = vcmp.lt.s32.totalorder %v1592, 2
        %vm1613 = vcmp.lt.s32.totalorder %v1592, 3
        %vm1614 = vcmp.lt.s32.totalorder %v1592, 4
        %v1615 = vsel %vm1611, %v1595, %v1598
        %v1616 = vsel %vm1614, %v1604, 2102212464
        %v1617 = vsel %vm1613, %v1601, %v1616
        %v1618 = vsel %vm1612, %v1615, %v1617
        %v1619 = vsel %vm1611, %v1598, %v1601
        %v1620 = vsel %vm1614, %v1607, 920167782
        %v1621 = vsel %vm1613, %v1604, %v1620
        %v1622 = vsel %vm1612, %v1619, %v1621
        %v1623 = vsel %vm1611, %v1601, %v1604
        %v1624 = vsel %vm1614, %v1610, 1326507024
        %v1625 = vsel %vm1613, %v1607, %v1624
        %v1626 = vsel %vm1612, %v1623, %v1625
        %v1627 = vshll.u32 %v1587, 8
        %v1628 = vmul.u32.u64.compose %v1627, %v1626
        %v1629 = vextract.low.u32 %v1628
        %v1630 = vextract.high.u32 %v1628
        %v1631 = vmul.u32.u64.compose %v1627, %v1622
        %v1632 = vextract.low.u32 %v1631
        %v1633 = vextract.high.u32 %v1631
        %v1634 = vmul.u32 %v1627, %v1618
        %v1635 = vadd.s32 %v1630, %v1632
        %vm1636 = vc.u32 %v1630, %v1632
        %v1637 = vadd.s32 %v1633, 1
        %v1638 = vsel %vm1636, %v1637, %v1633
        %v1639 = vadd.s32 %v1634, %v1638
        %v1640 = vadd.s32 %v1639, 536870912
        %v1641 = vshrl.u32 %v1640, 30
        %v1642 = vshll.u32 %v1641, 30
        %v1643 = vsub.s32 %v1639, %v1642
        %vm1644 = vcmp.lt.s32.totalorder %v1643, 0
        %v1645 = vsub.s32 0, %v1643
        %v1646 = vsel %vm1644, %v1645, %v1643
        %v1647 = vclz %v1646
        %v1648 = vsub.s32 %v1647, 2
        %vm1649 = vcmp.gt.s32.totalorder 0, %v1648
        %v1650 = vsel %vm1649, 0, %v1648
        %v1651 = vsub.s32 32, %v1650
        %v1652 = vshll.u32 %v1643, %v1650
        %v1653 = vshrl.u32 %v1635, %v1651
        %v1654 = vor.u32 %v1652, %v1653
        %v1655 = vsub.s32 4294967266, %v1650
        %v1656 = vadd.s32 %v1655, 127
        %v1657 = vshll.u32 %v1656, 23
        %v1658 = vor.u32 4788187, %v1657
        %v1659 = vand.u32 2147483647, %v1658
        %v1661 = vcvt.s32.f32 %v1654
        %v1662 = vmul.f32 %v1661, %v1659
        %v1663 = vxor.u32 %v1662, 2147483648
        %v1664 = vsel %vm1581, %v1663, %v1662
        %v1665 = vsub.s32 4, %v1641
        %v1666 = vsel %vm1581, %v1665, %v1641
        %v1667 = vsel %vm1580, %v427, %v1664
        %v1668 = vsel %vm1580, 0, %v1666
        %v1669 = vcosq.f32.pop %v1667
        %v1670 = vsinq.f32.pop %v1667
        %vm1671 = vweird.f32 %v427
        %v1672 = vadd.s32 %v1668, 3
        %v1673 = vand.u32 %v1672, 3
        %vm1674 = vcmp.lt.s32.totalorder %v1673, 2
        %vm1675 = vcmp.eq.s32.totalorder %v1673, 0
        %v1676 = vxor.u32 %v1670, 2147483648
        %v1677 = vsel %vm1675, %v1669, %v1676
        %vm1678 = vcmp.eq.s32.totalorder %v1673, 2
        %v1679 = vxor.u32 %v1669, 2147483648
        %v1680 = vsel %vm1678, %v1679, %v1670
        %v1681 = vsel %vm1674, %v1677, %v1680
        %v1682 = vsel %vm1671, nan, %v1681
        %v1683 = vand.u32 2147483647, %v342
        %vm1684 = vcmp.le.f32.partialorder %v1683, 0.7853982
        %vm1685 = vcmp.lt.s32.totalorder %v342, 0
        %v1686 = vand.u32 %v342, 2139095040
        %v1687 = vshrl.u32 %v1686, 23
        %v1688 = vsub.s32 %v1687, 127
        %v1689 = vand.u32 2147483647, %v342
        %v1690 = vand.u32 %v1689, 8388607
        %v1691 = vor.u32 %v1690, 8388608
        %v1692 = vsub.s32 0, %v1691
        %v1693 = vadd.s32 %v1688, 1
        %vm1694 = vcmp.gt.s32.totalorder %v1693, 0
        %v1695 = vsel %vm1694, %v1693, 0
        %v1696 = vshrl.u32 %v1695, 5
        %v1697 = vand.u32 %v1695, 31
        %v1698 = vsub.s32 32, %v1697
        %v1699 = vshrl.u32 683565275, %v1698
        %v1700 = vshll.u32 683565275, %v1697
        %v1701 = vshrl.u32 2475754826, %v1698
        %v1702 = vor.u32 %v1700, %v1701
        %v1703 = vshll.u32 2475754826, %v1697
        %v1704 = vshrl.u32 2131351028, %v1698
        %v1705 = vor.u32 %v1703, %v1704
        %v1706 = vshll.u32 2131351028, %v1697
        %v1707 = vshrl.u32 2102212464, %v1698
        %v1708 = vor.u32 %v1706, %v1707
        %v1709 = vshll.u32 2102212464, %v1697
        %v1710 = vshrl.u32 920167782, %v1698
        %v1711 = vor.u32 %v1709, %v1710
        %v1712 = vshll.u32 920167782, %v1697
        %v1713 = vshrl.u32 1326507024, %v1698
        %v1714 = vor.u32 %v1712, %v1713
        %vm1715 = vcmp.lt.s32.totalorder %v1696, 1
        %vm1716 = vcmp.lt.s32.totalorder %v1696, 2
        %vm1717 = vcmp.lt.s32.totalorder %v1696, 3
        %vm1718 = vcmp.lt.s32.totalorder %v1696, 4
        %v1719 = vsel %vm1715, %v1699, %v1702
        %v1720 = vsel %vm1718, %v1708, 2102212464
        %v1721 = vsel %vm1717, %v1705, %v1720
        %v1722 = vsel %vm1716, %v1719, %v1721
        %v1723 = vsel %vm1715, %v1702, %v1705
        %v1724 = vsel %vm1718, %v1711, 920167782
        %v1725 = vsel %vm1717, %v1708, %v1724
        %v1726 = vsel %vm1716, %v1723, %v1725
        %v1727 = vsel %vm1715, %v1705, %v1708
        %v1728 = vsel %vm1718, %v1714, 1326507024
        %v1729 = vsel %vm1717, %v1711, %v1728
        %v1730 = vsel %vm1716, %v1727, %v1729
        %v1731 = vshll.u32 %v1691, 8
        %v1732 = vmul.u32.u64.compose %v1731, %v1730
        %v1733 = vextract.low.u32 %v1732
        %v1734 = vextract.high.u32 %v1732
        %v1735 = vmul.u32.u64.compose %v1731, %v1726
        %v1736 = vextract.low.u32 %v1735
        %v1737 = vextract.high.u32 %v1735
        %v1738 = vmul.u32 %v1731, %v1722
        %v1739 = vadd.s32 %v1734, %v1736
        %vm1740 = vc.u32 %v1734, %v1736
        %v1741 = vadd.s32 %v1737, 1
        %v1742 = vsel %vm1740, %v1741, %v1737
        %v1743 = vadd.s32 %v1738, %v1742
        %v1744 = vadd.s32 %v1743, 536870912
        %v1745 = vshrl.u32 %v1744, 30
        %v1746 = vshll.u32 %v1745, 30
        %v1747 = vsub.s32 %v1743, %v1746
        %vm1748 = vcmp.lt.s32.totalorder %v1747, 0
        %v1749 = vsub.s32 0, %v1747
        %v1750 = vsel %vm1748, %v1749, %v1747
        %v1751 = vclz %v1750
        %v1752 = vsub.s32 %v1751, 2
        %vm1753 = vcmp.gt.s32.totalorder 0, %v1752
        %v1754 = vsel %vm1753, 0, %v1752
        %v1755 = vsub.s32 32, %v1754
        %v1756 = vshll.u32 %v1747, %v1754
        %v1757 = vshrl.u32 %v1739, %v1755
        %v1758 = vor.u32 %v1756, %v1757
        %v1759 = vsub.s32 4294967266, %v1754
        %v1760 = vadd.s32 %v1759, 127
        %v1761 = vshll.u32 %v1760, 23
        %v1762 = vor.u32 4788187, %v1761
        %v1763 = vand.u32 2147483647, %v1762
        %v1765 = vcvt.s32.f32 %v1758
        %v1766 = vmul.f32 %v1765, %v1763
        %v1767 = vxor.u32 %v1766, 2147483648
        %v1768 = vsel %vm1685, %v1767, %v1766
        %v1769 = vsub.s32 4, %v1745
        %v1770 = vsel %vm1685, %v1769, %v1745
        %v1771 = vsel %vm1684, %v342, %v1768
        %v1772 = vsel %vm1684, 0, %v1770
        %v1773 = vcosq.f32.pop %v1771
        %v1774 = vsinq.f32.pop %v1771
        %vm1775 = vweird.f32 %v342
        %v1776 = vadd.s32 %v1772, 3
        %v1777 = vand.u32 %v1776, 3
        %vm1778 = vcmp.lt.s32.totalorder %v1777, 2
        %vm1779 = vcmp.eq.s32.totalorder %v1777, 0
        %v1780 = vxor.u32 %v1774, 2147483648
        %v1781 = vsel %vm1779, %v1773, %v1780
        %vm1782 = vcmp.eq.s32.totalorder %v1777, 2
        %v1783 = vxor.u32 %v1773, 2147483648
        %v1784 = vsel %vm1782, %v1783, %v1774
        %v1785 = vsel %vm1778, %v1781, %v1784
        %v1786 = vsel %vm1775, nan, %v1785
        %v1787 = vand.u32 2147483647, %v344
        %vm1788 = vcmp.le.f32.partialorder %v1787, 0.7853982
        %vm1789 = vcmp.lt.s32.totalorder %v344, 0
        %v1790 = vand.u32 %v344, 2139095040
        %v1791 = vshrl.u32 %v1790, 23
        %v1792 = vsub.s32 %v1791, 127
        %v1793 = vand.u32 2147483647, %v344
        %v1794 = vand.u32 %v1793, 8388607
        %v1795 = vor.u32 %v1794, 8388608
        %v1796 = vsub.s32 0, %v1795
        %v1797 = vadd.s32 %v1792, 1
        %vm1798 = vcmp.gt.s32.totalorder %v1797, 0
        %v1799 = vsel %vm1798, %v1797, 0
        %v1800 = vshrl.u32 %v1799, 5
        %v1801 = vand.u32 %v1799, 31
        %v1802 = vsub.s32 32, %v1801
        %v1803 = vshrl.u32 683565275, %v1802
        %v1804 = vshll.u32 683565275, %v1801
        %v1805 = vshrl.u32 2475754826, %v1802
        %v1806 = vor.u32 %v1804, %v1805
        %v1807 = vshll.u32 2475754826, %v1801
        %v1808 = vshrl.u32 2131351028, %v1802
        %v1809 = vor.u32 %v1807, %v1808
        %v1810 = vshll.u32 2131351028, %v1801
        %v1811 = vshrl.u32 2102212464, %v1802
        %v1812 = vor.u32 %v1810, %v1811
        %v1813 = vshll.u32 2102212464, %v1801
        %v1814 = vshrl.u32 920167782, %v1802
        %v1815 = vor.u32 %v1813, %v1814
        %v1816 = vshll.u32 920167782, %v1801
        %v1817 = vshrl.u32 1326507024, %v1802
        %v1818 = vor.u32 %v1816, %v1817
        %vm1819 = vcmp.lt.s32.totalorder %v1800, 1
        %vm1820 = vcmp.lt.s32.totalorder %v1800, 2
        %vm1821 = vcmp.lt.s32.totalorder %v1800, 3
        %vm1822 = vcmp.lt.s32.totalorder %v1800, 4
        %v1823 = vsel %vm1819, %v1803, %v1806
        %v1824 = vsel %vm1822, %v1812, 2102212464
        %v1825 = vsel %vm1821, %v1809, %v1824
        %v1826 = vsel %vm1820, %v1823, %v1825
        %v1827 = vsel %vm1819, %v1806, %v1809
        %v1828 = vsel %vm1822, %v1815, 920167782
        %v1829 = vsel %vm1821, %v1812, %v1828
        %v1830 = vsel %vm1820, %v1827, %v1829
        %v1831 = vsel %vm1819, %v1809, %v1812
        %v1832 = vsel %vm1822, %v1818, 1326507024
        %v1833 = vsel %vm1821, %v1815, %v1832
        %v1834 = vsel %vm1820, %v1831, %v1833
        %v1835 = vshll.u32 %v1795, 8
        %v1836 = vmul.u32.u64.compose %v1835, %v1834
        %v1837 = vextract.low.u32 %v1836
        %v1838 = vextract.high.u32 %v1836
        %v1839 = vmul.u32.u64.compose %v1835, %v1830
        %v1840 = vextract.low.u32 %v1839
        %v1841 = vextract.high.u32 %v1839
        %v1842 = vmul.u32 %v1835, %v1826
        %v1843 = vadd.s32 %v1838, %v1840
        %vm1844 = vc.u32 %v1838, %v1840
        %v1845 = vadd.s32 %v1841, 1
        %v1846 = vsel %vm1844, %v1845, %v1841
        %v1847 = vadd.s32 %v1842, %v1846
        %v1848 = vadd.s32 %v1847, 536870912
        %v1849 = vshrl.u32 %v1848, 30
        %v1850 = vshll.u32 %v1849, 30
        %v1851 = vsub.s32 %v1847, %v1850
        %vm1852 = vcmp.lt.s32.totalorder %v1851, 0
        %v1853 = vsub.s32 0, %v1851
        %v1854 = vsel %vm1852, %v1853, %v1851
        %v1855 = vclz %v1854
        %v1856 = vsub.s32 %v1855, 2
        %vm1857 = vcmp.gt.s32.totalorder 0, %v1856
        %v1858 = vsel %vm1857, 0, %v1856
        %v1859 = vsub.s32 32, %v1858
        %v1860 = vshll.u32 %v1851, %v1858
        %v1861 = vshrl.u32 %v1843, %v1859
        %v1862 = vor.u32 %v1860, %v1861
        %v1863 = vsub.s32 4294967266, %v1858
        %v1864 = vadd.s32 %v1863, 127
        %v1865 = vshll.u32 %v1864, 23
        %v1866 = vor.u32 4788187, %v1865
        %v1867 = vand.u32 2147483647, %v1866
        %v1869 = vcvt.s32.f32 %v1862
        %v1870 = vmul.f32 %v1869, %v1867
        %v1871 = vxor.u32 %v1870, 2147483648
        %v1872 = vsel %vm1789, %v1871, %v1870
        %v1873 = vsub.s32 4, %v1849
        %v1874 = vsel %vm1789, %v1873, %v1849
        %v1875 = vsel %vm1788, %v344, %v1872
        %v1876 = vsel %vm1788, 0, %v1874
        %v1877 = vcosq.f32.pop %v1875
        %v1878 = vsinq.f32.pop %v1875
        %vm1879 = vweird.f32 %v344
        %v1880 = vadd.s32 %v1876, 3
        %v1881 = vand.u32 %v1880, 3
        %vm1882 = vcmp.lt.s32.totalorder %v1881, 2
        %vm1883 = vcmp.eq.s32.totalorder %v1881, 0
        %v1884 = vxor.u32 %v1878, 2147483648
        %v1885 = vsel %vm1883, %v1877, %v1884
        %vm1886 = vcmp.eq.s32.totalorder %v1881, 2
        %v1887 = vxor.u32 %v1877, 2147483648
        %v1888 = vsel %vm1886, %v1887, %v1878
        %v1889 = vsel %vm1882, %v1885, %v1888
        %v1890 = vsel %vm1879, nan, %v1889
        %v1891 = vand.u32 2147483647, %v431
        %vm1892 = vcmp.le.f32.partialorder %v1891, 0.7853982
        %vm1893 = vcmp.lt.s32.totalorder %v431, 0
        %v1894 = vand.u32 %v431, 2139095040
        %v1895 = vshrl.u32 %v1894, 23
        %v1896 = vsub.s32 %v1895, 127
        %v1897 = vand.u32 2147483647, %v431
        %v1898 = vand.u32 %v1897, 8388607
        %v1899 = vor.u32 %v1898, 8388608
        %v1900 = vsub.s32 0, %v1899
        %v1901 = vadd.s32 %v1896, 1
        %vm1902 = vcmp.gt.s32.totalorder %v1901, 0
        %v1903 = vsel %vm1902, %v1901, 0
        %v1904 = vshrl.u32 %v1903, 5
        %v1905 = vand.u32 %v1903, 31
        %v1906 = vsub.s32 32, %v1905
        %v1907 = vshrl.u32 683565275, %v1906
        %v1908 = vshll.u32 683565275, %v1905
        %v1909 = vshrl.u32 2475754826, %v1906
        %v1910 = vor.u32 %v1908, %v1909
        %v1911 = vshll.u32 2475754826, %v1905
        %v1912 = vshrl.u32 2131351028, %v1906
        %v1913 = vor.u32 %v1911, %v1912
        %v1914 = vshll.u32 2131351028, %v1905
        %v1915 = vshrl.u32 2102212464, %v1906
        %v1916 = vor.u32 %v1914, %v1915
        %v1917 = vshll.u32 2102212464, %v1905
        %v1918 = vshrl.u32 920167782, %v1906
        %v1919 = vor.u32 %v1917, %v1918
        %v1920 = vshll.u32 920167782, %v1905
        %v1921 = vshrl.u32 1326507024, %v1906
        %v1922 = vor.u32 %v1920, %v1921
        %vm1923 = vcmp.lt.s32.totalorder %v1904, 1
        %vm1924 = vcmp.lt.s32.totalorder %v1904, 2
        %vm1925 = vcmp.lt.s32.totalorder %v1904, 3
        %vm1926 = vcmp.lt.s32.totalorder %v1904, 4
        %v1927 = vsel %vm1923, %v1907, %v1910
        %v1928 = vsel %vm1926, %v1916, 2102212464
        %v1929 = vsel %vm1925, %v1913, %v1928
        %v1930 = vsel %vm1924, %v1927, %v1929
        %v1931 = vsel %vm1923, %v1910, %v1913
        %v1932 = vsel %vm1926, %v1919, 920167782
        %v1933 = vsel %vm1925, %v1916, %v1932
        %v1934 = vsel %vm1924, %v1931, %v1933
        %v1935 = vsel %vm1923, %v1913, %v1916
        %v1936 = vsel %vm1926, %v1922, 1326507024
        %v1937 = vsel %vm1925, %v1919, %v1936
        %v1938 = vsel %vm1924, %v1935, %v1937
        %v1939 = vshll.u32 %v1899, 8
        %v1940 = vmul.u32.u64.compose %v1939, %v1938
        %v1941 = vextract.low.u32 %v1940
        %v1942 = vextract.high.u32 %v1940
        %v1943 = vmul.u32.u64.compose %v1939, %v1934
        %v1944 = vextract.low.u32 %v1943
        %v1945 = vextract.high.u32 %v1943
        %v1946 = vmul.u32 %v1939, %v1930
        %v1947 = vadd.s32 %v1942, %v1944
        %vm1948 = vc.u32 %v1942, %v1944
        %v1949 = vadd.s32 %v1945, 1
        %v1950 = vsel %vm1948, %v1949, %v1945
        %v1951 = vadd.s32 %v1946, %v1950
        %v1952 = vadd.s32 %v1951, 536870912
        %v1953 = vshrl.u32 %v1952, 30
        %v1954 = vshll.u32 %v1953, 30
        %v1955 = vsub.s32 %v1951, %v1954
        %vm1956 = vcmp.lt.s32.totalorder %v1955, 0
        %v1957 = vsub.s32 0, %v1955
        %v1958 = vsel %vm1956, %v1957, %v1955
        %v1959 = vclz %v1958
        %v1960 = vsub.s32 %v1959, 2
        %vm1961 = vcmp.gt.s32.totalorder 0, %v1960
        %v1962 = vsel %vm1961, 0, %v1960
        %v1963 = vsub.s32 32, %v1962
        %v1964 = vshll.u32 %v1955, %v1962
        %v1965 = vshrl.u32 %v1947, %v1963
        %v1966 = vor.u32 %v1964, %v1965
        %v1967 = vsub.s32 4294967266, %v1962
        %v1968 = vadd.s32 %v1967, 127
        %v1969 = vshll.u32 %v1968, 23
        %v1970 = vor.u32 4788187, %v1969
        %v1971 = vand.u32 2147483647, %v1970
        %v1973 = vcvt.s32.f32 %v1966
        %v1974 = vmul.f32 %v1973, %v1971
        %v1975 = vxor.u32 %v1974, 2147483648
        %v1976 = vsel %vm1893, %v1975, %v1974
        %v1977 = vsub.s32 4, %v1953
        %v1978 = vsel %vm1893, %v1977, %v1953
        %v1979 = vsel %vm1892, %v431, %v1976
        %v1980 = vsel %vm1892, 0, %v1978
        %v1981 = vcosq.f32.pop %v1979
        %v1982 = vsinq.f32.pop %v1979
        %vm1983 = vweird.f32 %v431
        %v1984 = vadd.s32 %v1980, 3
        %v1985 = vand.u32 %v1984, 3
        %vm1986 = vcmp.lt.s32.totalorder %v1985, 2
        %vm1987 = vcmp.eq.s32.totalorder %v1985, 0
        %v1988 = vxor.u32 %v1982, 2147483648
        %v1989 = vsel %vm1987, %v1981, %v1988
        %vm1990 = vcmp.eq.s32.totalorder %v1985, 2
        %v1991 = vxor.u32 %v1981, 2147483648
        %v1992 = vsel %vm1990, %v1991, %v1982
        %v1993 = vsel %vm1986, %v1989, %v1992
        %v1994 = vsel %vm1983, nan, %v1993
        %v1995 = vand.u32 2147483647, %v433
        %vm1996 = vcmp.le.f32.partialorder %v1995, 0.7853982
        %vm1997 = vcmp.lt.s32.totalorder %v433, 0
        %v1998 = vand.u32 %v433, 2139095040
        %v1999 = vshrl.u32 %v1998, 23
        %v2000 = vsub.s32 %v1999, 127
        %v2001 = vand.u32 2147483647, %v433
        %v2002 = vand.u32 %v2001, 8388607
        %v2003 = vor.u32 %v2002, 8388608
        %v2004 = vsub.s32 0, %v2003
        %v2005 = vadd.s32 %v2000, 1
        %vm2006 = vcmp.gt.s32.totalorder %v2005, 0
        %v2007 = vsel %vm2006, %v2005, 0
        %v2008 = vshrl.u32 %v2007, 5
        %v2009 = vand.u32 %v2007, 31
        %v2010 = vsub.s32 32, %v2009
        %v2011 = vshrl.u32 683565275, %v2010
        %v2012 = vshll.u32 683565275, %v2009
        %v2013 = vshrl.u32 2475754826, %v2010
        %v2014 = vor.u32 %v2012, %v2013
        %v2015 = vshll.u32 2475754826, %v2009
        %v2016 = vshrl.u32 2131351028, %v2010
        %v2017 = vor.u32 %v2015, %v2016
        %v2018 = vshll.u32 2131351028, %v2009
        %v2019 = vshrl.u32 2102212464, %v2010
        %v2020 = vor.u32 %v2018, %v2019
        %v2021 = vshll.u32 2102212464, %v2009
        %v2022 = vshrl.u32 920167782, %v2010
        %v2023 = vor.u32 %v2021, %v2022
        %v2024 = vshll.u32 920167782, %v2009
        %v2025 = vshrl.u32 1326507024, %v2010
        %v2026 = vor.u32 %v2024, %v2025
        %vm2027 = vcmp.lt.s32.totalorder %v2008, 1
        %vm2028 = vcmp.lt.s32.totalorder %v2008, 2
        %vm2029 = vcmp.lt.s32.totalorder %v2008, 3
        %vm2030 = vcmp.lt.s32.totalorder %v2008, 4
        %v2031 = vsel %vm2027, %v2011, %v2014
        %v2032 = vsel %vm2030, %v2020, 2102212464
        %v2033 = vsel %vm2029, %v2017, %v2032
        %v2034 = vsel %vm2028, %v2031, %v2033
        %v2035 = vsel %vm2027, %v2014, %v2017
        %v2036 = vsel %vm2030, %v2023, 920167782
        %v2037 = vsel %vm2029, %v2020, %v2036
        %v2038 = vsel %vm2028, %v2035, %v2037
        %v2039 = vsel %vm2027, %v2017, %v2020
        %v2040 = vsel %vm2030, %v2026, 1326507024
        %v2041 = vsel %vm2029, %v2023, %v2040
        %v2042 = vsel %vm2028, %v2039, %v2041
        %v2043 = vshll.u32 %v2003, 8
        %v2044 = vmul.u32.u64.compose %v2043, %v2042
        %v2045 = vextract.low.u32 %v2044
        %v2046 = vextract.high.u32 %v2044
        %v2047 = vmul.u32.u64.compose %v2043, %v2038
        %v2048 = vextract.low.u32 %v2047
        %v2049 = vextract.high.u32 %v2047
        %v2050 = vmul.u32 %v2043, %v2034
        %v2051 = vadd.s32 %v2046, %v2048
        %vm2052 = vc.u32 %v2046, %v2048
        %v2053 = vadd.s32 %v2049, 1
        %v2054 = vsel %vm2052, %v2053, %v2049
        %v2055 = vadd.s32 %v2050, %v2054
        %v2056 = vadd.s32 %v2055, 536870912
        %v2057 = vshrl.u32 %v2056, 30
        %v2058 = vshll.u32 %v2057, 30
        %v2059 = vsub.s32 %v2055, %v2058
        %vm2060 = vcmp.lt.s32.totalorder %v2059, 0
        %v2061 = vsub.s32 0, %v2059
        %v2062 = vsel %vm2060, %v2061, %v2059
        %v2063 = vclz %v2062
        %v2064 = vsub.s32 %v2063, 2
        %vm2065 = vcmp.gt.s32.totalorder 0, %v2064
        %v2066 = vsel %vm2065, 0, %v2064
        %v2067 = vsub.s32 32, %v2066
        %v2068 = vshll.u32 %v2059, %v2066
        %v2069 = vshrl.u32 %v2051, %v2067
        %v2070 = vor.u32 %v2068, %v2069
        %v2071 = vsub.s32 4294967266, %v2066
        %v2072 = vadd.s32 %v2071, 127
        %v2073 = vshll.u32 %v2072, 23
        %v2074 = vor.u32 4788187, %v2073
        %v2075 = vand.u32 2147483647, %v2074
        %v2077 = vcvt.s32.f32 %v2070
        %v2078 = vmul.f32 %v2077, %v2075
        %v2079 = vxor.u32 %v2078, 2147483648
        %v2080 = vsel %vm1997, %v2079, %v2078
        %v2081 = vsub.s32 4, %v2057
        %v2082 = vsel %vm1997, %v2081, %v2057
        %v2083 = vsel %vm1996, %v433, %v2080
        %v2084 = vsel %vm1996, 0, %v2082
        %v2085 = vcosq.f32.pop %v2083
        %v2086 = vsinq.f32.pop %v2083
        %vm2087 = vweird.f32 %v433
        %v2088 = vadd.s32 %v2084, 3
        %v2089 = vand.u32 %v2088, 3
        %vm2090 = vcmp.lt.s32.totalorder %v2089, 2
        %vm2091 = vcmp.eq.s32.totalorder %v2089, 0
        %v2092 = vxor.u32 %v2086, 2147483648
        %v2093 = vsel %vm2091, %v2085, %v2092
        %vm2094 = vcmp.eq.s32.totalorder %v2089, 2
        %v2095 = vxor.u32 %v2085, 2147483648
        %v2096 = vsel %vm2094, %v2095, %v2086
        %v2097 = vsel %vm2090, %v2093, %v2096
        %v2098 = vsel %vm2087, nan, %v2097
        %2099 = vst [vmem:[#allocation2 + $0x20] sm:$0xff] %v538
        %2100 = vst [vmem:[#allocation2 + $0x28] sm:$0xff] %v642
        %2101 = vst [vmem:[#allocation2 + $0x30] sm:$0xff] %v746
        %2102 = vst [vmem:[#allocation2 + $0x38] sm:$0xff] %v850
        %2103 = vst [vmem:[#allocation2 + $0x40] sm:$0xff] %v954
        %2104 = vst [vmem:[#allocation2 + $0x48] sm:$0xff] %v1058
        %2105 = vst [vmem:[#allocation2 + $0x50] sm:$0xff] %v1162
        %2106 = vst [vmem:[#allocation2 + $0x58] sm:$0xff] %v1266
        %2107 = vst [vmem:[#allocation2 + $0x60] sm:$0xff] %v1370
        %2108 = vst [vmem:[#allocation2 + $0x68] sm:$0xff] %v1474
        %2109 = vst [vmem:[#allocation2 + $0x70] sm:$0xff] %v1578
        %2110 = vst [vmem:[#allocation2 + $0x78] sm:$0xff] %v1682
        %2111 = vst [vmem:[#allocation2 + $0x80] sm:$0xff] %v1786
        %2112 = vst [vmem:[#allocation2 + $0x88] sm:$0xff] %v1890
        %2113 = vst [vmem:[#allocation2 + $0x90] sm:$0xff] %v1994
        %2114 = vst [vmem:[#allocation2 + $0x98] sm:$0xff] %v2098
        %s2115 = scalar_lea.vmem [#allocation6], 32
        %v2116 = vld [vmem:[%s2115] sm:$0xff]
        %v2117 = vld [vmem:[%s2115 + $0x8] sm:$0xff]
        %v2118 = vld [vmem:[%s2115 + $0x10] sm:$0xff]
        %v2119 = vld [vmem:[%s2115 + $0x18] sm:$0xff]
        %v2120 = vld [vmem:[#allocation2] sm:$0xff]
        %v2121 = vld [vmem:[#allocation2 + $0x8] sm:$0xff]
        %v2122 = vld [vmem:[#allocation2 + $0x10] sm:$0xff]
        %v2123 = vld [vmem:[#allocation2 + $0x18] sm:$0xff]
        %v2124 = vld [vmem:[#allocation2 + $0x20] sm:$0xff]
        %v2125 = vld [vmem:[#allocation2 + $0x28] sm:$0xff]
        %v2126 = vld [vmem:[#allocation2 + $0x30] sm:$0xff]
        %v2127 = vld [vmem:[#allocation2 + $0x38] sm:$0xff]
        %v2128 = vld [vmem:[#allocation2 + $0x40] sm:$0xff]
        %v2129 = vld [vmem:[#allocation2 + $0x48] sm:$0xff]
        %v2130 = vld [vmem:[#allocation2 + $0x50] sm:$0xff]
        %v2131 = vld [vmem:[#allocation2 + $0x58] sm:$0xff]
        %v2132 = vld [vmem:[#allocation2 + $0x60] sm:$0xff]
        %v2133 = vld [vmem:[#allocation2 + $0x68] sm:$0xff]
        %v2134 = vld [vmem:[#allocation2 + $0x70] sm:$0xff]
        %v2135 = vld [vmem:[#allocation2 + $0x78] sm:$0xff]
        %v2136 = vld [vmem:[#allocation2 + $0x80] sm:$0xff]
        %v2137 = vld [vmem:[#allocation2 + $0x88] sm:$0xff]
        %v2138 = vld [vmem:[#allocation2 + $0x90] sm:$0xff]
        %v2139 = vld [vmem:[#allocation2 + $0x98] sm:$0xff]
        %vm2140 = vcmask 326656
        %v2142 = vsel %vm2140, %v2116, 0
        %v2145 = vsel %vm2140, %v2117, 0
        %v2148 = vsel %vm2140, %v2118, 0
        %v2151 = vsel %vm2140, %v2119, 0
        %2153 = vmatprep.subr.mxu0 %v2121
        %2154 = vmatpush1.msra.mxu0 %v2120
        %2155 = vmatprep.subr.mxu0 %v2125
        %2156 = vmatpush1.msra.mxu0 %v2124
        %2157 = vmatprep.subr.mxu0 %v2129
        %2158 = vmatpush1.msra.mxu0 %v2128
        %2159 = vmatprep.subr.mxu0 %v2133
        %2160 = vmatpush1.msra.mxu0 %v2132
        %2161 = vmatprep.subr.mxu0 %v2137
        %2162 = vmatpush1.msra.mxu0 %v2136
        %2163 = vmatprep.subr.mxu0 0.0
        %2164 = vmatpush1.msra.mxu0 0.0
        %2165 = vmatprep.subr.mxu0 0.0
        %2166 = vmatpush1.msra.mxu0 0.0
        %2167 = vmatprep.subr.mxu0 0.0
        %2168 = vmatpush1.msra.mxu0 0.0
        %2169 = vmatprep.subr.mxu0 0.0
        %2170 = vmatpush1.msra.mxu0 0.0
        %2171 = vmatprep.subr.mxu0 0.0
        %2172 = vmatpush1.msra.mxu0 0.0
        %2173 = vmatprep.subr.mxu0 0.0
        %2174 = vmatpush1.msra.mxu0 0.0
        %2175 = vmatprep.subr.mxu0 0.0
        %2176 = vmatpush1.msra.mxu0 0.0
        %2177 = vmatprep.subr.mxu0 0.0
        %2178 = vmatpush1.msra.mxu0 0.0
        %2179 = vmatprep.subr.mxu0 0.0
        %2180 = vmatpush1.msra.mxu0 0.0
        %2181 = vmatprep.subr.mxu0 0.0
        %2182 = vmatpush1.msra.mxu0 0.0
        %2183 = vmatprep.subr.mxu0 0.0
        %2184 = vmatpush1.msra.mxu0 0.0
        %2185 = vmatprep.subr.mxu0 0.0
        %2186 = vmatpush1.msra.mxu0 0.0
        %2187 = vmatprep.subr.mxu0 0.0
        %2188 = vmatpush1.msra.mxu0 0.0
        %2189 = vmatprep.subr.mxu0 0.0
        %2190 = vmatpush1.msra.mxu0 0.0
        %2191 = vmatprep.subr.mxu0 0.0
        %2192 = vmatpush1.msra.mxu0 0.0
        %2193 = vmatprep.subr.mxu0 0.0
        %2194 = vmatpush1.msra.mxu0 0.0
        %2195 = vmatprep.subr.mxu0 0.0
        %2196 = vmatpush1.msra.mxu0 0.0
        %2197 = vmatprep.subr.mxu0 0.0
        %2198 = vmatpush1.msra.mxu0 0.0
        %2199 = vmatprep.subr.mxu0 0.0
        %2200 = vmatpush1.msra.mxu0 0.0
        %2201 = vmatprep.subr.mxu0 0.0
        %2202 = vmatpush1.msra.mxu0 0.0
        %2203 = vmatprep.subr.mxu0 0.0
        %2204 = vmatpush1.msra.mxu0 0.0
        %2205 = vmatprep.subr.mxu0 0.0
        %2206 = vmatpush1.msra.mxu0 0.0
        %2207 = vmatprep.subr.mxu0 0.0
        %2208 = vmatpush1.msra.mxu0 0.0
        %2209 = vmatprep.subr.mxu0 0.0
        %2210 = vmatpush1.msra.mxu0 0.0
        %2211 = vmatprep.subr.mxu0 0.0
        %2212 = vmatpush1.msra.mxu0 0.0
        %2213 = vmatprep.subr.mxu0 0.0
        %2214 = vmatpush1.msra.mxu0 0.0
        %2215 = vmatprep.subr.mxu0 0.0
        %2216 = vmatpush1.msra.mxu0 0.0
        %2217 = vmatprep.mubr.f32.mxu0 0.0
        %2218 = vmatmul.mubr.f32.gmra.mrb[0].mxu0 %v2142
        %v2219 = vpop.f32.mrb[0].mxu0
        %v2220 = vadd.f32 0.0, %v2219
        %v2221 = vpop.f32.mrb[0].mxu0
        %v2222 = vadd.f32 0.0, %v2221
        %2223 = vmatprep.mubr.f32.mxu0 0.0
        %2224 = vmatmul.mubr.f32.gmra.mrb[0].mxu0 %v2145
        %v2225 = vpop.f32.mrb[0].mxu0
        %v2226 = vadd.f32 0.0, %v2225
        %v2227 = vpop.f32.mrb[0].mxu0
        %v2228 = vadd.f32 0.0, %v2227
        %2229 = vmatprep.mubr.f32.mxu0 0.0
        %2230 = vmatmul.mubr.f32.gmra.mrb[0].mxu0 %v2148
        %v2231 = vpop.f32.mrb[0].mxu0
        %v2232 = vadd.f32 0.0, %v2231
        %v2233 = vpop.f32.mrb[0].mxu0
        %v2234 = vadd.f32 0.0, %v2233
        %2235 = vmatprep.mubr.f32.mxu0 0.0
        %2236 = vmatmul.mubr.f32.gmra.mrb[0].mxu0 %v2151
        %v2237 = vpop.f32.mrb[0].mxu0
        %v2238 = vadd.f32 0.0, %v2237
        %v2239 = vpop.f32.mrb[0].mxu0
        %v2240 = vadd.f32 0.0, %v2239
        %2241 = vdwg.mxu0
        %2242 = vmatprep.subr.mxu0 %v2123
        %2243 = vmatpush1.msra.mxu0 %v2122
        %2244 = vmatprep.subr.mxu0 %v2127
        %2245 = vmatpush1.msra.mxu0 %v2126
        %2246 = vmatprep.subr.mxu0 %v2131
        %2247 = vmatpush1.msra.mxu0 %v2130
        %2248 = vmatprep.subr.mxu0 %v2135
        %2249 = vmatpush1.msra.mxu0 %v2134
        %2250 = vmatprep.subr.mxu0 %v2139
        %2251 = vmatpush1.msra.mxu0 %v2138
        %2252 = vmatprep.subr.mxu0 0.0
        %2253 = vmatpush1.msra.mxu0 0.0
        %2254 = vmatprep.subr.mxu0 0.0
        %2255 = vmatpush1.msra.mxu0 0.0
        %2256 = vmatprep.subr.mxu0 0.0
        %2257 = vmatpush1.msra.mxu0 0.0
        %2258 = vmatprep.subr.mxu0 0.0
        %2259 = vmatpush1.msra.mxu0 0.0
        %2260 = vmatprep.subr.mxu0 0.0
        %2261 = vmatpush1.msra.mxu0 0.0
        %2262 = vmatprep.subr.mxu0 0.0
        %2263 = vmatpush1.msra.mxu0 0.0
        %2264 = vmatprep.subr.mxu0 0.0
        %2265 = vmatpush1.msra.mxu0 0.0
        %2266 = vmatprep.subr.mxu0 0.0
        %2267 = vmatpush1.msra.mxu0 0.0
        %2268 = vmatprep.subr.mxu0 0.0
        %2269 = vmatpush1.msra.mxu0 0.0
        %2270 = vmatprep.subr.mxu0 0.0
        %2271 = vmatpush1.msra.mxu0 0.0
        %2272 = vmatprep.subr.mxu0 0.0
        %2273 = vmatpush1.msra.mxu0 0.0
        %2274 = vmatprep.subr.mxu0 0.0
        %2275 = vmatpush1.msra.mxu0 0.0
        %2276 = vmatprep.subr.mxu0 0.0
        %2277 = vmatpush1.msra.mxu0 0.0
        %2278 = vmatprep.subr.mxu0 0.0
        %2279 = vmatpush1.msra.mxu0 0.0
        %2280 = vmatprep.subr.mxu0 0.0
        %2281 = vmatpush1.msra.mxu0 0.0
        %2282 = vmatprep.subr.mxu0 0.0
        %2283 = vmatpush1.msra.mxu0 0.0
        %2284 = vmatprep.subr.mxu0 0.0
        %2285 = vmatpush1.msra.mxu0 0.0
        %2286 = vmatprep.subr.mxu0 0.0
        %2287 = vmatpush1.msra.mxu0 0.0
        %2288 = vmatprep.subr.mxu0 0.0
        %2289 = vmatpush1.msra.mxu0 0.0
        %2290 = vmatprep.subr.mxu0 0.0
        %2291 = vmatpush1.msra.mxu0 0.0
        %2292 = vmatprep.subr.mxu0 0.0
        %2293 = vmatpush1.msra.mxu0 0.0
        %2294 = vmatprep.subr.mxu0 0.0
        %2295 = vmatpush1.msra.mxu0 0.0
        %2296 = vmatprep.subr.mxu0 0.0
        %2297 = vmatpush1.msra.mxu0 0.0
        %2298 = vmatprep.subr.mxu0 0.0
        %2299 = vmatpush1.msra.mxu0 0.0
        %2300 = vmatprep.subr.mxu0 0.0
        %2301 = vmatpush1.msra.mxu0 0.0
        %2302 = vmatprep.subr.mxu0 0.0
        %2303 = vmatpush1.msra.mxu0 0.0
        %2304 = vmatprep.subr.mxu0 0.0
        %2305 = vmatpush1.msra.mxu0 0.0
        %2306 = vmatprep.mubr.f32.mxu0 0.0
        %2307 = vmatmul.mubr.f32.gmra.mrb[0].mxu0 %v2142
        %v2308 = vpop.f32.mrb[0].mxu0
        %v2309 = vadd.f32 0.0, %v2308
        %v2310 = vpop.f32.mrb[0].mxu0
        %v2311 = vadd.f32 0.0, %v2310
        %2312 = vmatprep.mubr.f32.mxu0 0.0
        %2313 = vmatmul.mubr.f32.gmra.mrb[0].mxu0 %v2145
        %v2314 = vpop.f32.mrb[0].mxu0
        %v2315 = vadd.f32 0.0, %v2314
        %v2316 = vpop.f32.mrb[0].mxu0
        %v2317 = vadd.f32 0.0, %v2316
        %2318 = vmatprep.mubr.f32.mxu0 0.0
        %2319 = vmatmul.mubr.f32.gmra.mrb[0].mxu0 %v2148
        %v2320 = vpop.f32.mrb[0].mxu0
        %v2321 = vadd.f32 0.0, %v2320
        %v2322 = vpop.f32.mrb[0].mxu0
        %v2323 = vadd.f32 0.0, %v2322
        %2324 = vmatprep.mubr.f32.mxu0 0.0
        %2325 = vmatmul.mubr.f32.gmra.mrb[0].mxu0 %v2151
        %v2326 = vpop.f32.mrb[0].mxu0
        %v2327 = vadd.f32 0.0, %v2326
        %v2328 = vpop.f32.mrb[0].mxu0
        %v2329 = vadd.f32 0.0, %v2328
        %2330 = vdwg.mxu0
        %v2331 = vand.u32 2147483647, %v2220
        %vm2332 = vcmp.le.f32.partialorder %v2331, 0.7853982
        %vm2333 = vcmp.lt.s32.totalorder %v2220, 0
        %v2334 = vand.u32 %v2220, 2139095040
        %v2335 = vshrl.u32 %v2334, 23
        %v2336 = vsub.s32 %v2335, 127
        %v2337 = vand.u32 2147483647, %v2220
        %v2338 = vand.u32 %v2337, 8388607
        %v2339 = vor.u32 %v2338, 8388608
        %v2340 = vsub.s32 0, %v2339
        %v2341 = vadd.s32 %v2336, 1
        %vm2342 = vcmp.gt.s32.totalorder %v2341, 0
        %v2343 = vsel %vm2342, %v2341, 0
        %v2344 = vshrl.u32 %v2343, 5
        %v2345 = vand.u32 %v2343, 31
        %v2346 = vsub.s32 32, %v2345
        %v2347 = vshrl.u32 683565275, %v2346
        %v2348 = vshll.u32 683565275, %v2345
        %v2349 = vshrl.u32 2475754826, %v2346
        %v2350 = vor.u32 %v2348, %v2349
        %v2351 = vshll.u32 2475754826, %v2345
        %v2352 = vshrl.u32 2131351028, %v2346
        %v2353 = vor.u32 %v2351, %v2352
        %v2354 = vshll.u32 2131351028, %v2345
        %v2355 = vshrl.u32 2102212464, %v2346
        %v2356 = vor.u32 %v2354, %v2355
        %v2357 = vshll.u32 2102212464, %v2345
        %v2358 = vshrl.u32 920167782, %v2346
        %v2359 = vor.u32 %v2357, %v2358
        %v2360 = vshll.u32 920167782, %v2345
        %v2361 = vshrl.u32 1326507024, %v2346
        %v2362 = vor.u32 %v2360, %v2361
        %vm2363 = vcmp.lt.s32.totalorder %v2344, 1
        %vm2364 = vcmp.lt.s32.totalorder %v2344, 2
        %vm2365 = vcmp.lt.s32.totalorder %v2344, 3
        %vm2366 = vcmp.lt.s32.totalorder %v2344, 4
        %v2367 = vsel %vm2363, %v2347, %v2350
        %v2368 = vsel %vm2366, %v2356, 2102212464
        %v2369 = vsel %vm2365, %v2353, %v2368
        %v2370 = vsel %vm2364, %v2367, %v2369
        %v2371 = vsel %vm2363, %v2350, %v2353
        %v2372 = vsel %vm2366, %v2359, 920167782
        %v2373 = vsel %vm2365, %v2356, %v2372
        %v2374 = vsel %vm2364, %v2371, %v2373
        %v2375 = vsel %vm2363, %v2353, %v2356
        %v2376 = vsel %vm2366, %v2362, 1326507024
        %v2377 = vsel %vm2365, %v2359, %v2376
        %v2378 = vsel %vm2364, %v2375, %v2377
        %v2379 = vshll.u32 %v2339, 8
        %v2380 = vmul.u32.u64.compose %v2379, %v2378
        %v2381 = vextract.low.u32 %v2380
        %v2382 = vextract.high.u32 %v2380
        %v2383 = vmul.u32.u64.compose %v2379, %v2374
        %v2384 = vextract.low.u32 %v2383
        %v2385 = vextract.high.u32 %v2383
        %v2386 = vmul.u32 %v2379, %v2370
        %v2387 = vadd.s32 %v2382, %v2384
        %vm2388 = vc.u32 %v2382, %v2384
        %v2389 = vadd.s32 %v2385, 1
        %v2390 = vsel %vm2388, %v2389, %v2385
        %v2391 = vadd.s32 %v2386, %v2390
        %v2392 = vadd.s32 %v2391, 536870912
        %v2393 = vshrl.u32 %v2392, 30
        %v2394 = vshll.u32 %v2393, 30
        %v2395 = vsub.s32 %v2391, %v2394
        %vm2396 = vcmp.lt.s32.totalorder %v2395, 0
        %v2397 = vsub.s32 0, %v2395
        %v2398 = vsel %vm2396, %v2397, %v2395
        %v2399 = vclz %v2398
        %v2400 = vsub.s32 %v2399, 2
        %vm2401 = vcmp.gt.s32.totalorder 0, %v2400
        %v2402 = vsel %vm2401, 0, %v2400
        %v2403 = vsub.s32 32, %v2402
        %v2404 = vshll.u32 %v2395, %v2402
        %v2405 = vshrl.u32 %v2387, %v2403
        %v2406 = vor.u32 %v2404, %v2405
        %v2407 = vsub.s32 4294967266, %v2402
        %v2408 = vadd.s32 %v2407, 127
        %v2409 = vshll.u32 %v2408, 23
        %v2410 = vor.u32 4788187, %v2409
        %v2411 = vand.u32 2147483647, %v2410
        %v2413 = vcvt.s32.f32 %v2406
        %v2414 = vmul.f32 %v2413, %v2411
        %v2415 = vxor.u32 %v2414, 2147483648
        %v2416 = vsel %vm2333, %v2415, %v2414
        %v2417 = vsub.s32 4, %v2393
        %v2418 = vsel %vm2333, %v2417, %v2393
        %v2419 = vsel %vm2332, %v2220, %v2416
        %v2420 = vsel %vm2332, 0, %v2418
        %v2421 = vcosq.f32.pop %v2419
        %v2422 = vsinq.f32.pop %v2419
        %vm2423 = vweird.f32 %v2220
        %v2424 = vadd.s32 %v2420, 3
        %v2425 = vand.u32 %v2424, 3
        %vm2426 = vcmp.lt.s32.totalorder %v2425, 2
        %vm2427 = vcmp.eq.s32.totalorder %v2425, 0
        %v2428 = vxor.u32 %v2422, 2147483648
        %v2429 = vsel %vm2427, %v2421, %v2428
        %vm2430 = vcmp.eq.s32.totalorder %v2425, 2
        %v2431 = vxor.u32 %v2421, 2147483648
        %v2432 = vsel %vm2430, %v2431, %v2422
        %v2433 = vsel %vm2426, %v2429, %v2432
        %v2434 = vsel %vm2423, nan, %v2433
        %v2435 = vand.u32 2147483647, %v2222
        %vm2436 = vcmp.le.f32.partialorder %v2435, 0.7853982
        %vm2437 = vcmp.lt.s32.totalorder %v2222, 0
        %v2438 = vand.u32 %v2222, 2139095040
        %v2439 = vshrl.u32 %v2438, 23
        %v2440 = vsub.s32 %v2439, 127
        %v2441 = vand.u32 2147483647, %v2222
        %v2442 = vand.u32 %v2441, 8388607
        %v2443 = vor.u32 %v2442, 8388608
        %v2444 = vsub.s32 0, %v2443
        %v2445 = vadd.s32 %v2440, 1
        %vm2446 = vcmp.gt.s32.totalorder %v2445, 0
        %v2447 = vsel %vm2446, %v2445, 0
        %v2448 = vshrl.u32 %v2447, 5
        %v2449 = vand.u32 %v2447, 31
        %v2450 = vsub.s32 32, %v2449
        %v2451 = vshrl.u32 683565275, %v2450
        %v2452 = vshll.u32 683565275, %v2449
        %v2453 = vshrl.u32 2475754826, %v2450
        %v2454 = vor.u32 %v2452, %v2453
        %v2455 = vshll.u32 2475754826, %v2449
        %v2456 = vshrl.u32 2131351028, %v2450
        %v2457 = vor.u32 %v2455, %v2456
        %v2458 = vshll.u32 2131351028, %v2449
        %v2459 = vshrl.u32 2102212464, %v2450
        %v2460 = vor.u32 %v2458, %v2459
        %v2461 = vshll.u32 2102212464, %v2449
        %v2462 = vshrl.u32 920167782, %v2450
        %v2463 = vor.u32 %v2461, %v2462
        %v2464 = vshll.u32 920167782, %v2449
        %v2465 = vshrl.u32 1326507024, %v2450
        %v2466 = vor.u32 %v2464, %v2465
        %vm2467 = vcmp.lt.s32.totalorder %v2448, 1
        %vm2468 = vcmp.lt.s32.totalorder %v2448, 2
        %vm2469 = vcmp.lt.s32.totalorder %v2448, 3
        %vm2470 = vcmp.lt.s32.totalorder %v2448, 4
        %v2471 = vsel %vm2467, %v2451, %v2454
        %v2472 = vsel %vm2470, %v2460, 2102212464
        %v2473 = vsel %vm2469, %v2457, %v2472
        %v2474 = vsel %vm2468, %v2471, %v2473
        %v2475 = vsel %vm2467, %v2454, %v2457
        %v2476 = vsel %vm2470, %v2463, 920167782
        %v2477 = vsel %vm2469, %v2460, %v2476
        %v2478 = vsel %vm2468, %v2475, %v2477
        %v2479 = vsel %vm2467, %v2457, %v2460
        %v2480 = vsel %vm2470, %v2466, 1326507024
        %v2481 = vsel %vm2469, %v2463, %v2480
        %v2482 = vsel %vm2468, %v2479, %v2481
        %v2483 = vshll.u32 %v2443, 8
        %v2484 = vmul.u32.u64.compose %v2483, %v2482
        %v2485 = vextract.low.u32 %v2484
        %v2486 = vextract.high.u32 %v2484
        %v2487 = vmul.u32.u64.compose %v2483, %v2478
        %v2488 = vextract.low.u32 %v2487
        %v2489 = vextract.high.u32 %v2487
        %v2490 = vmul.u32 %v2483, %v2474
        %v2491 = vadd.s32 %v2486, %v2488
        %vm2492 = vc.u32 %v2486, %v2488
        %v2493 = vadd.s32 %v2489, 1
        %v2494 = vsel %vm2492, %v2493, %v2489
        %v2495 = vadd.s32 %v2490, %v2494
        %v2496 = vadd.s32 %v2495, 536870912
        %v2497 = vshrl.u32 %v2496, 30
        %v2498 = vshll.u32 %v2497, 30
        %v2499 = vsub.s32 %v2495, %v2498
        %vm2500 = vcmp.lt.s32.totalorder %v2499, 0
        %v2501 = vsub.s32 0, %v2499
        %v2502 = vsel %vm2500, %v2501, %v2499
        %v2503 = vclz %v2502
        %v2504 = vsub.s32 %v2503, 2
        %vm2505 = vcmp.gt.s32.totalorder 0, %v2504
        %v2506 = vsel %vm2505, 0, %v2504
        %v2507 = vsub.s32 32, %v2506
        %v2508 = vshll.u32 %v2499, %v2506
        %v2509 = vshrl.u32 %v2491, %v2507
        %v2510 = vor.u32 %v2508, %v2509
        %v2511 = vsub.s32 4294967266, %v2506
        %v2512 = vadd.s32 %v2511, 127
        %v2513 = vshll.u32 %v2512, 23
        %v2514 = vor.u32 4788187, %v2513
        %v2515 = vand.u32 2147483647, %v2514
        %v2517 = vcvt.s32.f32 %v2510
        %v2518 = vmul.f32 %v2517, %v2515
        %v2519 = vxor.u32 %v2518, 2147483648
        %v2520 = vsel %vm2437, %v2519, %v2518
        %v2521 = vsub.s32 4, %v2497
        %v2522 = vsel %vm2437, %v2521, %v2497
        %v2523 = vsel %vm2436, %v2222, %v2520
        %v2524 = vsel %vm2436, 0, %v2522
        %v2525 = vcosq.f32.pop %v2523
        %v2526 = vsinq.f32.pop %v2523
        %vm2527 = vweird.f32 %v2222
        %v2528 = vadd.s32 %v2524, 3
        %v2529 = vand.u32 %v2528, 3
        %vm2530 = vcmp.lt.s32.totalorder %v2529, 2
        %vm2531 = vcmp.eq.s32.totalorder %v2529, 0
        %v2532 = vxor.u32 %v2526, 2147483648
        %v2533 = vsel %vm2531, %v2525, %v2532
        %vm2534 = vcmp.eq.s32.totalorder %v2529, 2
        %v2535 = vxor.u32 %v2525, 2147483648
        %v2536 = vsel %vm2534, %v2535, %v2526
        %v2537 = vsel %vm2530, %v2533, %v2536
        %v2538 = vsel %vm2527, nan, %v2537
        %v2539 = vand.u32 2147483647, %v2309
        %vm2540 = vcmp.le.f32.partialorder %v2539, 0.7853982
        %vm2541 = vcmp.lt.s32.totalorder %v2309, 0
        %v2542 = vand.u32 %v2309, 2139095040
        %v2543 = vshrl.u32 %v2542, 23
        %v2544 = vsub.s32 %v2543, 127
        %v2545 = vand.u32 2147483647, %v2309
        %v2546 = vand.u32 %v2545, 8388607
        %v2547 = vor.u32 %v2546, 8388608
        %v2548 = vsub.s32 0, %v2547
        %v2549 = vadd.s32 %v2544, 1
        %vm2550 = vcmp.gt.s32.totalorder %v2549, 0
        %v2551 = vsel %vm2550, %v2549, 0
        %v2552 = vshrl.u32 %v2551, 5
        %v2553 = vand.u32 %v2551, 31
        %v2554 = vsub.s32 32, %v2553
        %v2555 = vshrl.u32 683565275, %v2554
        %v2556 = vshll.u32 683565275, %v2553
        %v2557 = vshrl.u32 2475754826, %v2554
        %v2558 = vor.u32 %v2556, %v2557
        %v2559 = vshll.u32 2475754826, %v2553
        %v2560 = vshrl.u32 2131351028, %v2554
        %v2561 = vor.u32 %v2559, %v2560
        %v2562 = vshll.u32 2131351028, %v2553
        %v2563 = vshrl.u32 2102212464, %v2554
        %v2564 = vor.u32 %v2562, %v2563
        %v2565 = vshll.u32 2102212464, %v2553
        %v2566 = vshrl.u32 920167782, %v2554
        %v2567 = vor.u32 %v2565, %v2566
        %v2568 = vshll.u32 920167782, %v2553
        %v2569 = vshrl.u32 1326507024, %v2554
        %v2570 = vor.u32 %v2568, %v2569
        %vm2571 = vcmp.lt.s32.totalorder %v2552, 1
        %vm2572 = vcmp.lt.s32.totalorder %v2552, 2
        %vm2573 = vcmp.lt.s32.totalorder %v2552, 3
        %vm2574 = vcmp.lt.s32.totalorder %v2552, 4
        %v2575 = vsel %vm2571, %v2555, %v2558
        %v2576 = vsel %vm2574, %v2564, 2102212464
        %v2577 = vsel %vm2573, %v2561, %v2576
        %v2578 = vsel %vm2572, %v2575, %v2577
        %v2579 = vsel %vm2571, %v2558, %v2561
        %v2580 = vsel %vm2574, %v2567, 920167782
        %v2581 = vsel %vm2573, %v2564, %v2580
        %v2582 = vsel %vm2572, %v2579, %v2581
        %v2583 = vsel %vm2571, %v2561, %v2564
        %v2584 = vsel %vm2574, %v2570, 1326507024
        %v2585 = vsel %vm2573, %v2567, %v2584
        %v2586 = vsel %vm2572, %v2583, %v2585
        %v2587 = vshll.u32 %v2547, 8
        %v2588 = vmul.u32.u64.compose %v2587, %v2586
        %v2589 = vextract.low.u32 %v2588
        %v2590 = vextract.high.u32 %v2588
        %v2591 = vmul.u32.u64.compose %v2587, %v2582
        %v2592 = vextract.low.u32 %v2591
        %v2593 = vextract.high.u32 %v2591
        %v2594 = vmul.u32 %v2587, %v2578
        %v2595 = vadd.s32 %v2590, %v2592
        %vm2596 = vc.u32 %v2590, %v2592
        %v2597 = vadd.s32 %v2593, 1
        %v2598 = vsel %vm2596, %v2597, %v2593
        %v2599 = vadd.s32 %v2594, %v2598
        %v2600 = vadd.s32 %v2599, 536870912
        %v2601 = vshrl.u32 %v2600, 30
        %v2602 = vshll.u32 %v2601, 30
        %v2603 = vsub.s32 %v2599, %v2602
        %vm2604 = vcmp.lt.s32.totalorder %v2603, 0
        %v2605 = vsub.s32 0, %v2603
        %v2606 = vsel %vm2604, %v2605, %v2603
        %v2607 = vclz %v2606
        %v2608 = vsub.s32 %v2607, 2
        %vm2609 = vcmp.gt.s32.totalorder 0, %v2608
        %v2610 = vsel %vm2609, 0, %v2608
        %v2611 = vsub.s32 32, %v2610
        %v2612 = vshll.u32 %v2603, %v2610
        %v2613 = vshrl.u32 %v2595, %v2611
        %v2614 = vor.u32 %v2612, %v2613
        %v2615 = vsub.s32 4294967266, %v2610
        %v2616 = vadd.s32 %v2615, 127
        %v2617 = vshll.u32 %v2616, 23
        %v2618 = vor.u32 4788187, %v2617
        %v2619 = vand.u32 2147483647, %v2618
        %v2621 = vcvt.s32.f32 %v2614
        %v2622 = vmul.f32 %v2621, %v2619
        %v2623 = vxor.u32 %v2622, 2147483648
        %v2624 = vsel %vm2541, %v2623, %v2622
        %v2625 = vsub.s32 4, %v2601
        %v2626 = vsel %vm2541, %v2625, %v2601
        %v2627 = vsel %vm2540, %v2309, %v2624
        %v2628 = vsel %vm2540, 0, %v2626
        %v2629 = vcosq.f32.pop %v2627
        %v2630 = vsinq.f32.pop %v2627
        %vm2631 = vweird.f32 %v2309
        %v2632 = vadd.s32 %v2628, 3
        %v2633 = vand.u32 %v2632, 3
        %vm2634 = vcmp.lt.s32.totalorder %v2633, 2
        %vm2635 = vcmp.eq.s32.totalorder %v2633, 0
        %v2636 = vxor.u32 %v2630, 2147483648
        %v2637 = vsel %vm2635, %v2629, %v2636
        %vm2638 = vcmp.eq.s32.totalorder %v2633, 2
        %v2639 = vxor.u32 %v2629, 2147483648
        %v2640 = vsel %vm2638, %v2639, %v2630
        %v2641 = vsel %vm2634, %v2637, %v2640
        %v2642 = vsel %vm2631, nan, %v2641
        %v2643 = vand.u32 2147483647, %v2311
        %vm2644 = vcmp.le.f32.partialorder %v2643, 0.7853982
        %vm2645 = vcmp.lt.s32.totalorder %v2311, 0
        %v2646 = vand.u32 %v2311, 2139095040
        %v2647 = vshrl.u32 %v2646, 23
        %v2648 = vsub.s32 %v2647, 127
        %v2649 = vand.u32 2147483647, %v2311
        %v2650 = vand.u32 %v2649, 8388607
        %v2651 = vor.u32 %v2650, 8388608
        %v2652 = vsub.s32 0, %v2651
        %v2653 = vadd.s32 %v2648, 1
        %vm2654 = vcmp.gt.s32.totalorder %v2653, 0
        %v2655 = vsel %vm2654, %v2653, 0
        %v2656 = vshrl.u32 %v2655, 5
        %v2657 = vand.u32 %v2655, 31
        %v2658 = vsub.s32 32, %v2657
        %v2659 = vshrl.u32 683565275, %v2658
        %v2660 = vshll.u32 683565275, %v2657
        %v2661 = vshrl.u32 2475754826, %v2658
        %v2662 = vor.u32 %v2660, %v2661
        %v2663 = vshll.u32 2475754826, %v2657
        %v2664 = vshrl.u32 2131351028, %v2658
        %v2665 = vor.u32 %v2663, %v2664
        %v2666 = vshll.u32 2131351028, %v2657
        %v2667 = vshrl.u32 2102212464, %v2658
        %v2668 = vor.u32 %v2666, %v2667
        %v2669 = vshll.u32 2102212464, %v2657
        %v2670 = vshrl.u32 920167782, %v2658
        %v2671 = vor.u32 %v2669, %v2670
        %v2672 = vshll.u32 920167782, %v2657
        %v2673 = vshrl.u32 1326507024, %v2658
        %v2674 = vor.u32 %v2672, %v2673
        %vm2675 = vcmp.lt.s32.totalorder %v2656, 1
        %vm2676 = vcmp.lt.s32.totalorder %v2656, 2
        %vm2677 = vcmp.lt.s32.totalorder %v2656, 3
        %vm2678 = vcmp.lt.s32.totalorder %v2656, 4
        %v2679 = vsel %vm2675, %v2659, %v2662
        %v2680 = vsel %vm2678, %v2668, 2102212464
        %v2681 = vsel %vm2677, %v2665, %v2680
        %v2682 = vsel %vm2676, %v2679, %v2681
        %v2683 = vsel %vm2675, %v2662, %v2665
        %v2684 = vsel %vm2678, %v2671, 920167782
        %v2685 = vsel %vm2677, %v2668, %v2684
        %v2686 = vsel %vm2676, %v2683, %v2685
        %v2687 = vsel %vm2675, %v2665, %v2668
        %v2688 = vsel %vm2678, %v2674, 1326507024
        %v2689 = vsel %vm2677, %v2671, %v2688
        %v2690 = vsel %vm2676, %v2687, %v2689
        %v2691 = vshll.u32 %v2651, 8
        %v2692 = vmul.u32.u64.compose %v2691, %v2690
        %v2693 = vextract.low.u32 %v2692
        %v2694 = vextract.high.u32 %v2692
        %v2695 = vmul.u32.u64.compose %v2691, %v2686
        %v2696 = vextract.low.u32 %v2695
        %v2697 = vextract.high.u32 %v2695
        %v2698 = vmul.u32 %v2691, %v2682
        %v2699 = vadd.s32 %v2694, %v2696
        %vm2700 = vc.u32 %v2694, %v2696
        %v2701 = vadd.s32 %v2697, 1
        %v2702 = vsel %vm2700, %v2701, %v2697
        %v2703 = vadd.s32 %v2698, %v2702
        %v2704 = vadd.s32 %v2703, 536870912
        %v2705 = vshrl.u32 %v2704, 30
        %v2706 = vshll.u32 %v2705, 30
        %v2707 = vsub.s32 %v2703, %v2706
        %vm2708 = vcmp.lt.s32.totalorder %v2707, 0
        %v2709 = vsub.s32 0, %v2707
        %v2710 = vsel %vm2708, %v2709, %v2707
        %v2711 = vclz %v2710
        %v2712 = vsub.s32 %v2711, 2
        %vm2713 = vcmp.gt.s32.totalorder 0, %v2712
        %v2714 = vsel %vm2713, 0, %v2712
        %v2715 = vsub.s32 32, %v2714
        %v2716 = vshll.u32 %v2707, %v2714
        %v2717 = vshrl.u32 %v2699, %v2715
        %v2718 = vor.u32 %v2716, %v2717
        %v2719 = vsub.s32 4294967266, %v2714
        %v2720 = vadd.s32 %v2719, 127
        %v2721 = vshll.u32 %v2720, 23
        %v2722 = vor.u32 4788187, %v2721
        %v2723 = vand.u32 2147483647, %v2722
        %v2725 = vcvt.s32.f32 %v2718
        %v2726 = vmul.f32 %v2725, %v2723
        %v2727 = vxor.u32 %v2726, 2147483648
        %v2728 = vsel %vm2645, %v2727, %v2726
        %v2729 = vsub.s32 4, %v2705
        %v2730 = vsel %vm2645, %v2729, %v2705
        %v2731 = vsel %vm2644, %v2311, %v2728
        %v2732 = vsel %vm2644, 0, %v2730
        %v2733 = vcosq.f32.pop %v2731
        %v2734 = vsinq.f32.pop %v2731
        %vm2735 = vweird.f32 %v2311
        %v2736 = vadd.s32 %v2732, 3
        %v2737 = vand.u32 %v2736, 3
        %vm2738 = vcmp.lt.s32.totalorder %v2737, 2
        %vm2739 = vcmp.eq.s32.totalorder %v2737, 0
        %v2740 = vxor.u32 %v2734, 2147483648
        %v2741 = vsel %vm2739, %v2733, %v2740
        %vm2742 = vcmp.eq.s32.totalorder %v2737, 2
        %v2743 = vxor.u32 %v2733, 2147483648
        %v2744 = vsel %vm2742, %v2743, %v2734
        %v2745 = vsel %vm2738, %v2741, %v2744
        %v2746 = vsel %vm2735, nan, %v2745
        %v2747 = vand.u32 2147483647, %v2226
        %vm2748 = vcmp.le.f32.partialorder %v2747, 0.7853982
        %vm2749 = vcmp.lt.s32.totalorder %v2226, 0
        %v2750 = vand.u32 %v2226, 2139095040
        %v2751 = vshrl.u32 %v2750, 23
        %v2752 = vsub.s32 %v2751, 127
        %v2753 = vand.u32 2147483647, %v2226
        %v2754 = vand.u32 %v2753, 8388607
        %v2755 = vor.u32 %v2754, 8388608
        %v2756 = vsub.s32 0, %v2755
        %v2757 = vadd.s32 %v2752, 1
        %vm2758 = vcmp.gt.s32.totalorder %v2757, 0
        %v2759 = vsel %vm2758, %v2757, 0
        %v2760 = vshrl.u32 %v2759, 5
        %v2761 = vand.u32 %v2759, 31
        %v2762 = vsub.s32 32, %v2761
        %v2763 = vshrl.u32 683565275, %v2762
        %v2764 = vshll.u32 683565275, %v2761
        %v2765 = vshrl.u32 2475754826, %v2762
        %v2766 = vor.u32 %v2764, %v2765
        %v2767 = vshll.u32 2475754826, %v2761
        %v2768 = vshrl.u32 2131351028, %v2762
        %v2769 = vor.u32 %v2767, %v2768
        %v2770 = vshll.u32 2131351028, %v2761
        %v2771 = vshrl.u32 2102212464, %v2762
        %v2772 = vor.u32 %v2770, %v2771
        %v2773 = vshll.u32 2102212464, %v2761
        %v2774 = vshrl.u32 920167782, %v2762
        %v2775 = vor.u32 %v2773, %v2774
        %v2776 = vshll.u32 920167782, %v2761
        %v2777 = vshrl.u32 1326507024, %v2762
        %v2778 = vor.u32 %v2776, %v2777
        %vm2779 = vcmp.lt.s32.totalorder %v2760, 1
        %vm2780 = vcmp.lt.s32.totalorder %v2760, 2
        %vm2781 = vcmp.lt.s32.totalorder %v2760, 3
        %vm2782 = vcmp.lt.s32.totalorder %v2760, 4
        %v2783 = vsel %vm2779, %v2763, %v2766
        %v2784 = vsel %vm2782, %v2772, 2102212464
        %v2785 = vsel %vm2781, %v2769, %v2784
        %v2786 = vsel %vm2780, %v2783, %v2785
        %v2787 = vsel %vm2779, %v2766, %v2769
        %v2788 = vsel %vm2782, %v2775, 920167782
        %v2789 = vsel %vm2781, %v2772, %v2788
        %v2790 = vsel %vm2780, %v2787, %v2789
        %v2791 = vsel %vm2779, %v2769, %v2772
        %v2792 = vsel %vm2782, %v2778, 1326507024
        %v2793 = vsel %vm2781, %v2775, %v2792
        %v2794 = vsel %vm2780, %v2791, %v2793
        %v2795 = vshll.u32 %v2755, 8
        %v2796 = vmul.u32.u64.compose %v2795, %v2794
        %v2797 = vextract.low.u32 %v2796
        %v2798 = vextract.high.u32 %v2796
        %v2799 = vmul.u32.u64.compose %v2795, %v2790
        %v2800 = vextract.low.u32 %v2799
        %v2801 = vextract.high.u32 %v2799
        %v2802 = vmul.u32 %v2795, %v2786
        %v2803 = vadd.s32 %v2798, %v2800
        %vm2804 = vc.u32 %v2798, %v2800
        %v2805 = vadd.s32 %v2801, 1
        %v2806 = vsel %vm2804, %v2805, %v2801
        %v2807 = vadd.s32 %v2802, %v2806
        %v2808 = vadd.s32 %v2807, 536870912
        %v2809 = vshrl.u32 %v2808, 30
        %v2810 = vshll.u32 %v2809, 30
        %v2811 = vsub.s32 %v2807, %v2810
        %vm2812 = vcmp.lt.s32.totalorder %v2811, 0
        %v2813 = vsub.s32 0, %v2811
        %v2814 = vsel %vm2812, %v2813, %v2811
        %v2815 = vclz %v2814
        %v2816 = vsub.s32 %v2815, 2
        %vm2817 = vcmp.gt.s32.totalorder 0, %v2816
        %v2818 = vsel %vm2817, 0, %v2816
        %v2819 = vsub.s32 32, %v2818
        %v2820 = vshll.u32 %v2811, %v2818
        %v2821 = vshrl.u32 %v2803, %v2819
        %v2822 = vor.u32 %v2820, %v2821
        %v2823 = vsub.s32 4294967266, %v2818
        %v2824 = vadd.s32 %v2823, 127
        %v2825 = vshll.u32 %v2824, 23
        %v2826 = vor.u32 4788187, %v2825
        %v2827 = vand.u32 2147483647, %v2826
        %v2829 = vcvt.s32.f32 %v2822
        %v2830 = vmul.f32 %v2829, %v2827
        %v2831 = vxor.u32 %v2830, 2147483648
        %v2832 = vsel %vm2749, %v2831, %v2830
        %v2833 = vsub.s32 4, %v2809
        %v2834 = vsel %vm2749, %v2833, %v2809
        %v2835 = vsel %vm2748, %v2226, %v2832
        %v2836 = vsel %vm2748, 0, %v2834
        %v2837 = vcosq.f32.pop %v2835
        %v2838 = vsinq.f32.pop %v2835
        %vm2839 = vweird.f32 %v2226
        %v2840 = vadd.s32 %v2836, 3
        %v2841 = vand.u32 %v2840, 3
        %vm2842 = vcmp.lt.s32.totalorder %v2841, 2
        %vm2843 = vcmp.eq.s32.totalorder %v2841, 0
        %v2844 = vxor.u32 %v2838, 2147483648
        %v2845 = vsel %vm2843, %v2837, %v2844
        %vm2846 = vcmp.eq.s32.totalorder %v2841, 2
        %v2847 = vxor.u32 %v2837, 2147483648
        %v2848 = vsel %vm2846, %v2847, %v2838
        %v2849 = vsel %vm2842, %v2845, %v2848
        %v2850 = vsel %vm2839, nan, %v2849
        %v2851 = vand.u32 2147483647, %v2228
        %vm2852 = vcmp.le.f32.partialorder %v2851, 0.7853982
        %vm2853 = vcmp.lt.s32.totalorder %v2228, 0
        %v2854 = vand.u32 %v2228, 2139095040
        %v2855 = vshrl.u32 %v2854, 23
        %v2856 = vsub.s32 %v2855, 127
        %v2857 = vand.u32 2147483647, %v2228
        %v2858 = vand.u32 %v2857, 8388607
        %v2859 = vor.u32 %v2858, 8388608
        %v2860 = vsub.s32 0, %v2859
        %v2861 = vadd.s32 %v2856, 1
        %vm2862 = vcmp.gt.s32.totalorder %v2861, 0
        %v2863 = vsel %vm2862, %v2861, 0
        %v2864 = vshrl.u32 %v2863, 5
        %v2865 = vand.u32 %v2863, 31
        %v2866 = vsub.s32 32, %v2865
        %v2867 = vshrl.u32 683565275, %v2866
        %v2868 = vshll.u32 683565275, %v2865
        %v2869 = vshrl.u32 2475754826, %v2866
        %v2870 = vor.u32 %v2868, %v2869
        %v2871 = vshll.u32 2475754826, %v2865
        %v2872 = vshrl.u32 2131351028, %v2866
        %v2873 = vor.u32 %v2871, %v2872
        %v2874 = vshll.u32 2131351028, %v2865
        %v2875 = vshrl.u32 2102212464, %v2866
        %v2876 = vor.u32 %v2874, %v2875
        %v2877 = vshll.u32 2102212464, %v2865
        %v2878 = vshrl.u32 920167782, %v2866
        %v2879 = vor.u32 %v2877, %v2878
        %v2880 = vshll.u32 920167782, %v2865
        %v2881 = vshrl.u32 1326507024, %v2866
        %v2882 = vor.u32 %v2880, %v2881
        %vm2883 = vcmp.lt.s32.totalorder %v2864, 1
        %vm2884 = vcmp.lt.s32.totalorder %v2864, 2
        %vm2885 = vcmp.lt.s32.totalorder %v2864, 3
        %vm2886 = vcmp.lt.s32.totalorder %v2864, 4
        %v2887 = vsel %vm2883, %v2867, %v2870
        %v2888 = vsel %vm2886, %v2876, 2102212464
        %v2889 = vsel %vm2885, %v2873, %v2888
        %v2890 = vsel %vm2884, %v2887, %v2889
        %v2891 = vsel %vm2883, %v2870, %v2873
        %v2892 = vsel %vm2886, %v2879, 920167782
        %v2893 = vsel %vm2885, %v2876, %v2892
        %v2894 = vsel %vm2884, %v2891, %v2893
        %v2895 = vsel %vm2883, %v2873, %v2876
        %v2896 = vsel %vm2886, %v2882, 1326507024
        %v2897 = vsel %vm2885, %v2879, %v2896
        %v2898 = vsel %vm2884, %v2895, %v2897
        %v2899 = vshll.u32 %v2859, 8
        %v2900 = vmul.u32.u64.compose %v2899, %v2898
        %v2901 = vextract.low.u32 %v2900
        %v2902 = vextract.high.u32 %v2900
        %v2903 = vmul.u32.u64.compose %v2899, %v2894
        %v2904 = vextract.low.u32 %v2903
        %v2905 = vextract.high.u32 %v2903
        %v2906 = vmul.u32 %v2899, %v2890
        %v2907 = vadd.s32 %v2902, %v2904
        %vm2908 = vc.u32 %v2902, %v2904
        %v2909 = vadd.s32 %v2905, 1
        %v2910 = vsel %vm2908, %v2909, %v2905
        %v2911 = vadd.s32 %v2906, %v2910
        %v2912 = vadd.s32 %v2911, 536870912
        %v2913 = vshrl.u32 %v2912, 30
        %v2914 = vshll.u32 %v2913, 30
        %v2915 = vsub.s32 %v2911, %v2914
        %vm2916 = vcmp.lt.s32.totalorder %v2915, 0
        %v2917 = vsub.s32 0, %v2915
        %v2918 = vsel %vm2916, %v2917, %v2915
        %v2919 = vclz %v2918
        %v2920 = vsub.s32 %v2919, 2
        %vm2921 = vcmp.gt.s32.totalorder 0, %v2920
        %v2922 = vsel %vm2921, 0, %v2920
        %v2923 = vsub.s32 32, %v2922
        %v2924 = vshll.u32 %v2915, %v2922
        %v2925 = vshrl.u32 %v2907, %v2923
        %v2926 = vor.u32 %v2924, %v2925
        %v2927 = vsub.s32 4294967266, %v2922
        %v2928 = vadd.s32 %v2927, 127
        %v2929 = vshll.u32 %v2928, 23
        %v2930 = vor.u32 4788187, %v2929
        %v2931 = vand.u32 2147483647, %v2930
        %v2933 = vcvt.s32.f32 %v2926
        %v2934 = vmul.f32 %v2933, %v2931
        %v2935 = vxor.u32 %v2934, 2147483648
        %v2936 = vsel %vm2853, %v2935, %v2934
        %v2937 = vsub.s32 4, %v2913
        %v2938 = vsel %vm2853, %v2937, %v2913
        %v2939 = vsel %vm2852, %v2228, %v2936
        %v2940 = vsel %vm2852, 0, %v2938
        %v2941 = vcosq.f32.pop %v2939
        %v2942 = vsinq.f32.pop %v2939
        %vm2943 = vweird.f32 %v2228
        %v2944 = vadd.s32 %v2940, 3
        %v2945 = vand.u32 %v2944, 3
        %vm2946 = vcmp.lt.s32.totalorder %v2945, 2
        %vm2947 = vcmp.eq.s32.totalorder %v2945, 0
        %v2948 = vxor.u32 %v2942, 2147483648
        %v2949 = vsel %vm2947, %v2941, %v2948
        %vm2950 = vcmp.eq.s32.totalorder %v2945, 2
        %v2951 = vxor.u32 %v2941, 2147483648
        %v2952 = vsel %vm2950, %v2951, %v2942
        %v2953 = vsel %vm2946, %v2949, %v2952
        %v2954 = vsel %vm2943, nan, %v2953
        %v2955 = vand.u32 2147483647, %v2315
        %vm2956 = vcmp.le.f32.partialorder %v2955, 0.7853982
        %vm2957 = vcmp.lt.s32.totalorder %v2315, 0
        %v2958 = vand.u32 %v2315, 2139095040
        %v2959 = vshrl.u32 %v2958, 23
        %v2960 = vsub.s32 %v2959, 127
        %v2961 = vand.u32 2147483647, %v2315
        %v2962 = vand.u32 %v2961, 8388607
        %v2963 = vor.u32 %v2962, 8388608
        %v2964 = vsub.s32 0, %v2963
        %v2965 = vadd.s32 %v2960, 1
        %vm2966 = vcmp.gt.s32.totalorder %v2965, 0
        %v2967 = vsel %vm2966, %v2965, 0
        %v2968 = vshrl.u32 %v2967, 5
        %v2969 = vand.u32 %v2967, 31
        %v2970 = vsub.s32 32, %v2969
        %v2971 = vshrl.u32 683565275, %v2970
        %v2972 = vshll.u32 683565275, %v2969
        %v2973 = vshrl.u32 2475754826, %v2970
        %v2974 = vor.u32 %v2972, %v2973
        %v2975 = vshll.u32 2475754826, %v2969
        %v2976 = vshrl.u32 2131351028, %v2970
        %v2977 = vor.u32 %v2975, %v2976
        %v2978 = vshll.u32 2131351028, %v2969
        %v2979 = vshrl.u32 2102212464, %v2970
        %v2980 = vor.u32 %v2978, %v2979
        %v2981 = vshll.u32 2102212464, %v2969
        %v2982 = vshrl.u32 920167782, %v2970
        %v2983 = vor.u32 %v2981, %v2982
        %v2984 = vshll.u32 920167782, %v2969
        %v2985 = vshrl.u32 1326507024, %v2970
        %v2986 = vor.u32 %v2984, %v2985
        %vm2987 = vcmp.lt.s32.totalorder %v2968, 1
        %vm2988 = vcmp.lt.s32.totalorder %v2968, 2
        %vm2989 = vcmp.lt.s32.totalorder %v2968, 3
        %vm2990 = vcmp.lt.s32.totalorder %v2968, 4
        %v2991 = vsel %vm2987, %v2971, %v2974
        %v2992 = vsel %vm2990, %v2980, 2102212464
        %v2993 = vsel %vm2989, %v2977, %v2992
        %v2994 = vsel %vm2988, %v2991, %v2993
        %v2995 = vsel %vm2987, %v2974, %v2977
        %v2996 = vsel %vm2990, %v2983, 920167782
        %v2997 = vsel %vm2989, %v2980, %v2996
        %v2998 = vsel %vm2988, %v2995, %v2997
        %v2999 = vsel %vm2987, %v2977, %v2980
        %v3000 = vsel %vm2990, %v2986, 1326507024
        %v3001 = vsel %vm2989, %v2983, %v3000
        %v3002 = vsel %vm2988, %v2999, %v3001
        %v3003 = vshll.u32 %v2963, 8
        %v3004 = vmul.u32.u64.compose %v3003, %v3002
        %v3005 = vextract.low.u32 %v3004
        %v3006 = vextract.high.u32 %v3004
        %v3007 = vmul.u32.u64.compose %v3003, %v2998
        %v3008 = vextract.low.u32 %v3007
        %v3009 = vextract.high.u32 %v3007
        %v3010 = vmul.u32 %v3003, %v2994
        %v3011 = vadd.s32 %v3006, %v3008
        %vm3012 = vc.u32 %v3006, %v3008
        %v3013 = vadd.s32 %v3009, 1
        %v3014 = vsel %vm3012, %v3013, %v3009
        %v3015 = vadd.s32 %v3010, %v3014
        %v3016 = vadd.s32 %v3015, 536870912
        %v3017 = vshrl.u32 %v3016, 30
        %v3018 = vshll.u32 %v3017, 30
        %v3019 = vsub.s32 %v3015, %v3018
        %vm3020 = vcmp.lt.s32.totalorder %v3019, 0
        %v3021 = vsub.s32 0, %v3019
        %v3022 = vsel %vm3020, %v3021, %v3019
        %v3023 = vclz %v3022
        %v3024 = vsub.s32 %v3023, 2
        %vm3025 = vcmp.gt.s32.totalorder 0, %v3024
        %v3026 = vsel %vm3025, 0, %v3024
        %v3027 = vsub.s32 32, %v3026
        %v3028 = vshll.u32 %v3019, %v3026
        %v3029 = vshrl.u32 %v3011, %v3027
        %v3030 = vor.u32 %v3028, %v3029
        %v3031 = vsub.s32 4294967266, %v3026
        %v3032 = vadd.s32 %v3031, 127
        %v3033 = vshll.u32 %v3032, 23
        %v3034 = vor.u32 4788187, %v3033
        %v3035 = vand.u32 2147483647, %v3034
        %v3037 = vcvt.s32.f32 %v3030
        %v3038 = vmul.f32 %v3037, %v3035
        %v3039 = vxor.u32 %v3038, 2147483648
        %v3040 = vsel %vm2957, %v3039, %v3038
        %v3041 = vsub.s32 4, %v3017
        %v3042 = vsel %vm2957, %v3041, %v3017
        %v3043 = vsel %vm2956, %v2315, %v3040
        %v3044 = vsel %vm2956, 0, %v3042
        %v3045 = vcosq.f32.pop %v3043
        %v3046 = vsinq.f32.pop %v3043
        %vm3047 = vweird.f32 %v2315
        %v3048 = vadd.s32 %v3044, 3
        %v3049 = vand.u32 %v3048, 3
        %vm3050 = vcmp.lt.s32.totalorder %v3049, 2
        %vm3051 = vcmp.eq.s32.totalorder %v3049, 0
        %v3052 = vxor.u32 %v3046, 2147483648
        %v3053 = vsel %vm3051, %v3045, %v3052
        %vm3054 = vcmp.eq.s32.totalorder %v3049, 2
        %v3055 = vxor.u32 %v3045, 2147483648
        %v3056 = vsel %vm3054, %v3055, %v3046
        %v3057 = vsel %vm3050, %v3053, %v3056
        %v3058 = vsel %vm3047, nan, %v3057
        %v3059 = vand.u32 2147483647, %v2317
        %vm3060 = vcmp.le.f32.partialorder %v3059, 0.7853982
        %vm3061 = vcmp.lt.s32.totalorder %v2317, 0
        %v3062 = vand.u32 %v2317, 2139095040
        %v3063 = vshrl.u32 %v3062, 23
        %v3064 = vsub.s32 %v3063, 127
        %v3065 = vand.u32 2147483647, %v2317
        %v3066 = vand.u32 %v3065, 8388607
        %v3067 = vor.u32 %v3066, 8388608
        %v3068 = vsub.s32 0, %v3067
        %v3069 = vadd.s32 %v3064, 1
        %vm3070 = vcmp.gt.s32.totalorder %v3069, 0
        %v3071 = vsel %vm3070, %v3069, 0
        %v3072 = vshrl.u32 %v3071, 5
        %v3073 = vand.u32 %v3071, 31
        %v3074 = vsub.s32 32, %v3073
        %v3075 = vshrl.u32 683565275, %v3074
        %v3076 = vshll.u32 683565275, %v3073
        %v3077 = vshrl.u32 2475754826, %v3074
        %v3078 = vor.u32 %v3076, %v3077
        %v3079 = vshll.u32 2475754826, %v3073
        %v3080 = vshrl.u32 2131351028, %v3074
        %v3081 = vor.u32 %v3079, %v3080
        %v3082 = vshll.u32 2131351028, %v3073
        %v3083 = vshrl.u32 2102212464, %v3074
        %v3084 = vor.u32 %v3082, %v3083
        %v3085 = vshll.u32 2102212464, %v3073
        %v3086 = vshrl.u32 920167782, %v3074
        %v3087 = vor.u32 %v3085, %v3086
        %v3088 = vshll.u32 920167782, %v3073
        %v3089 = vshrl.u32 1326507024, %v3074
        %v3090 = vor.u32 %v3088, %v3089
        %vm3091 = vcmp.lt.s32.totalorder %v3072, 1
        %vm3092 = vcmp.lt.s32.totalorder %v3072, 2
        %vm3093 = vcmp.lt.s32.totalorder %v3072, 3
        %vm3094 = vcmp.lt.s32.totalorder %v3072, 4
        %v3095 = vsel %vm3091, %v3075, %v3078
        %v3096 = vsel %vm3094, %v3084, 2102212464
        %v3097 = vsel %vm3093, %v3081, %v3096
        %v3098 = vsel %vm3092, %v3095, %v3097
        %v3099 = vsel %vm3091, %v3078, %v3081
        %v3100 = vsel %vm3094, %v3087, 920167782
        %v3101 = vsel %vm3093, %v3084, %v3100
        %v3102 = vsel %vm3092, %v3099, %v3101
        %v3103 = vsel %vm3091, %v3081, %v3084
        %v3104 = vsel %vm3094, %v3090, 1326507024
        %v3105 = vsel %vm3093, %v3087, %v3104
        %v3106 = vsel %vm3092, %v3103, %v3105
        %v3107 = vshll.u32 %v3067, 8
        %v3108 = vmul.u32.u64.compose %v3107, %v3106
        %v3109 = vextract.low.u32 %v3108
        %v3110 = vextract.high.u32 %v3108
        %v3111 = vmul.u32.u64.compose %v3107, %v3102
        %v3112 = vextract.low.u32 %v3111
        %v3113 = vextract.high.u32 %v3111
        %v3114 = vmul.u32 %v3107, %v3098
        %v3115 = vadd.s32 %v3110, %v3112
        %vm3116 = vc.u32 %v3110, %v3112
        %v3117 = vadd.s32 %v3113, 1
        %v3118 = vsel %vm3116, %v3117, %v3113
        %v3119 = vadd.s32 %v3114, %v3118
        %v3120 = vadd.s32 %v3119, 536870912
        %v3121 = vshrl.u32 %v3120, 30
        %v3122 = vshll.u32 %v3121, 30
        %v3123 = vsub.s32 %v3119, %v3122
        %vm3124 = vcmp.lt.s32.totalorder %v3123, 0
        %v3125 = vsub.s32 0, %v3123
        %v3126 = vsel %vm3124, %v3125, %v3123
        %v3127 = vclz %v3126
        %v3128 = vsub.s32 %v3127, 2
        %vm3129 = vcmp.gt.s32.totalorder 0, %v3128
        %v3130 = vsel %vm3129, 0, %v3128
        %v3131 = vsub.s32 32, %v3130
        %v3132 = vshll.u32 %v3123, %v3130
        %v3133 = vshrl.u32 %v3115, %v3131
        %v3134 = vor.u32 %v3132, %v3133
        %v3135 = vsub.s32 4294967266, %v3130
        %v3136 = vadd.s32 %v3135, 127
        %v3137 = vshll.u32 %v3136, 23
        %v3138 = vor.u32 4788187, %v3137
        %v3139 = vand.u32 2147483647, %v3138
        %v3141 = vcvt.s32.f32 %v3134
        %v3142 = vmul.f32 %v3141, %v3139
        %v3143 = vxor.u32 %v3142, 2147483648
        %v3144 = vsel %vm3061, %v3143, %v3142
        %v3145 = vsub.s32 4, %v3121
        %v3146 = vsel %vm3061, %v3145, %v3121
        %v3147 = vsel %vm3060, %v2317, %v3144
        %v3148 = vsel %vm3060, 0, %v3146
        %v3149 = vcosq.f32.pop %v3147
        %v3150 = vsinq.f32.pop %v3147
        %vm3151 = vweird.f32 %v2317
        %v3152 = vadd.s32 %v3148, 3
        %v3153 = vand.u32 %v3152, 3
        %vm3154 = vcmp.lt.s32.totalorder %v3153, 2
        %vm3155 = vcmp.eq.s32.totalorder %v3153, 0
        %v3156 = vxor.u32 %v3150, 2147483648
        %v3157 = vsel %vm3155, %v3149, %v3156
        %vm3158 = vcmp.eq.s32.totalorder %v3153, 2
        %v3159 = vxor.u32 %v3149, 2147483648
        %v3160 = vsel %vm3158, %v3159, %v3150
        %v3161 = vsel %vm3154, %v3157, %v3160
        %v3162 = vsel %vm3151, nan, %v3161
        %v3163 = vand.u32 2147483647, %v2232
        %vm3164 = vcmp.le.f32.partialorder %v3163, 0.7853982
        %vm3165 = vcmp.lt.s32.totalorder %v2232, 0
        %v3166 = vand.u32 %v2232, 2139095040
        %v3167 = vshrl.u32 %v3166, 23
        %v3168 = vsub.s32 %v3167, 127
        %v3169 = vand.u32 2147483647, %v2232
        %v3170 = vand.u32 %v3169, 8388607
        %v3171 = vor.u32 %v3170, 8388608
        %v3172 = vsub.s32 0, %v3171
        %v3173 = vadd.s32 %v3168, 1
        %vm3174 = vcmp.gt.s32.totalorder %v3173, 0
        %v3175 = vsel %vm3174, %v3173, 0
        %v3176 = vshrl.u32 %v3175, 5
        %v3177 = vand.u32 %v3175, 31
        %v3178 = vsub.s32 32, %v3177
        %v3179 = vshrl.u32 683565275, %v3178
        %v3180 = vshll.u32 683565275, %v3177
        %v3181 = vshrl.u32 2475754826, %v3178
        %v3182 = vor.u32 %v3180, %v3181
        %v3183 = vshll.u32 2475754826, %v3177
        %v3184 = vshrl.u32 2131351028, %v3178
        %v3185 = vor.u32 %v3183, %v3184
        %v3186 = vshll.u32 2131351028, %v3177
        %v3187 = vshrl.u32 2102212464, %v3178
        %v3188 = vor.u32 %v3186, %v3187
        %v3189 = vshll.u32 2102212464, %v3177
        %v3190 = vshrl.u32 920167782, %v3178
        %v3191 = vor.u32 %v3189, %v3190
        %v3192 = vshll.u32 920167782, %v3177
        %v3193 = vshrl.u32 1326507024, %v3178
        %v3194 = vor.u32 %v3192, %v3193
        %vm3195 = vcmp.lt.s32.totalorder %v3176, 1
        %vm3196 = vcmp.lt.s32.totalorder %v3176, 2
        %vm3197 = vcmp.lt.s32.totalorder %v3176, 3
        %vm3198 = vcmp.lt.s32.totalorder %v3176, 4
        %v3199 = vsel %vm3195, %v3179, %v3182
        %v3200 = vsel %vm3198, %v3188, 2102212464
        %v3201 = vsel %vm3197, %v3185, %v3200
        %v3202 = vsel %vm3196, %v3199, %v3201
        %v3203 = vsel %vm3195, %v3182, %v3185
        %v3204 = vsel %vm3198, %v3191, 920167782
        %v3205 = vsel %vm3197, %v3188, %v3204
        %v3206 = vsel %vm3196, %v3203, %v3205
        %v3207 = vsel %vm3195, %v3185, %v3188
        %v3208 = vsel %vm3198, %v3194, 1326507024
        %v3209 = vsel %vm3197, %v3191, %v3208
        %v3210 = vsel %vm3196, %v3207, %v3209
        %v3211 = vshll.u32 %v3171, 8
        %v3212 = vmul.u32.u64.compose %v3211, %v3210
        %v3213 = vextract.low.u32 %v3212
        %v3214 = vextract.high.u32 %v3212
        %v3215 = vmul.u32.u64.compose %v3211, %v3206
        %v3216 = vextract.low.u32 %v3215
        %v3217 = vextract.high.u32 %v3215
        %v3218 = vmul.u32 %v3211, %v3202
        %v3219 = vadd.s32 %v3214, %v3216
        %vm3220 = vc.u32 %v3214, %v3216
        %v3221 = vadd.s32 %v3217, 1
        %v3222 = vsel %vm3220, %v3221, %v3217
        %v3223 = vadd.s32 %v3218, %v3222
        %v3224 = vadd.s32 %v3223, 536870912
        %v3225 = vshrl.u32 %v3224, 30
        %v3226 = vshll.u32 %v3225, 30
        %v3227 = vsub.s32 %v3223, %v3226
        %vm3228 = vcmp.lt.s32.totalorder %v3227, 0
        %v3229 = vsub.s32 0, %v3227
        %v3230 = vsel %vm3228, %v3229, %v3227
        %v3231 = vclz %v3230
        %v3232 = vsub.s32 %v3231, 2
        %vm3233 = vcmp.gt.s32.totalorder 0, %v3232
        %v3234 = vsel %vm3233, 0, %v3232
        %v3235 = vsub.s32 32, %v3234
        %v3236 = vshll.u32 %v3227, %v3234
        %v3237 = vshrl.u32 %v3219, %v3235
        %v3238 = vor.u32 %v3236, %v3237
        %v3239 = vsub.s32 4294967266, %v3234
        %v3240 = vadd.s32 %v3239, 127
        %v3241 = vshll.u32 %v3240, 23
        %v3242 = vor.u32 4788187, %v3241
        %v3243 = vand.u32 2147483647, %v3242
        %v3245 = vcvt.s32.f32 %v3238
        %v3246 = vmul.f32 %v3245, %v3243
        %v3247 = vxor.u32 %v3246, 2147483648
        %v3248 = vsel %vm3165, %v3247, %v3246
        %v3249 = vsub.s32 4, %v3225
        %v3250 = vsel %vm3165, %v3249, %v3225
        %v3251 = vsel %vm3164, %v2232, %v3248
        %v3252 = vsel %vm3164, 0, %v3250
        %v3253 = vcosq.f32.pop %v3251
        %v3254 = vsinq.f32.pop %v3251
        %vm3255 = vweird.f32 %v2232
        %v3256 = vadd.s32 %v3252, 3
        %v3257 = vand.u32 %v3256, 3
        %vm3258 = vcmp.lt.s32.totalorder %v3257, 2
        %vm3259 = vcmp.eq.s32.totalorder %v3257, 0
        %v3260 = vxor.u32 %v3254, 2147483648
        %v3261 = vsel %vm3259, %v3253, %v3260
        %vm3262 = vcmp.eq.s32.totalorder %v3257, 2
        %v3263 = vxor.u32 %v3253, 2147483648
        %v3264 = vsel %vm3262, %v3263, %v3254
        %v3265 = vsel %vm3258, %v3261, %v3264
        %v3266 = vsel %vm3255, nan, %v3265
        %v3267 = vand.u32 2147483647, %v2234
        %vm3268 = vcmp.le.f32.partialorder %v3267, 0.7853982
        %vm3269 = vcmp.lt.s32.totalorder %v2234, 0
        %v3270 = vand.u32 %v2234, 2139095040
        %v3271 = vshrl.u32 %v3270, 23
        %v3272 = vsub.s32 %v3271, 127
        %v3273 = vand.u32 2147483647, %v2234
        %v3274 = vand.u32 %v3273, 8388607
        %v3275 = vor.u32 %v3274, 8388608
        %v3276 = vsub.s32 0, %v3275
        %v3277 = vadd.s32 %v3272, 1
        %vm3278 = vcmp.gt.s32.totalorder %v3277, 0
        %v3279 = vsel %vm3278, %v3277, 0
        %v3280 = vshrl.u32 %v3279, 5
        %v3281 = vand.u32 %v3279, 31
        %v3282 = vsub.s32 32, %v3281
        %v3283 = vshrl.u32 683565275, %v3282
        %v3284 = vshll.u32 683565275, %v3281
        %v3285 = vshrl.u32 2475754826, %v3282
        %v3286 = vor.u32 %v3284, %v3285
        %v3287 = vshll.u32 2475754826, %v3281
        %v3288 = vshrl.u32 2131351028, %v3282
        %v3289 = vor.u32 %v3287, %v3288
        %v3290 = vshll.u32 2131351028, %v3281
        %v3291 = vshrl.u32 2102212464, %v3282
        %v3292 = vor.u32 %v3290, %v3291
        %v3293 = vshll.u32 2102212464, %v3281
        %v3294 = vshrl.u32 920167782, %v3282
        %v3295 = vor.u32 %v3293, %v3294
        %v3296 = vshll.u32 920167782, %v3281
        %v3297 = vshrl.u32 1326507024, %v3282
        %v3298 = vor.u32 %v3296, %v3297
        %vm3299 = vcmp.lt.s32.totalorder %v3280, 1
        %vm3300 = vcmp.lt.s32.totalorder %v3280, 2
        %vm3301 = vcmp.lt.s32.totalorder %v3280, 3
        %vm3302 = vcmp.lt.s32.totalorder %v3280, 4
        %v3303 = vsel %vm3299, %v3283, %v3286
        %v3304 = vsel %vm3302, %v3292, 2102212464
        %v3305 = vsel %vm3301, %v3289, %v3304
        %v3306 = vsel %vm3300, %v3303, %v3305
        %v3307 = vsel %vm3299, %v3286, %v3289
        %v3308 = vsel %vm3302, %v3295, 920167782
        %v3309 = vsel %vm3301, %v3292, %v3308
        %v3310 = vsel %vm3300, %v3307, %v3309
        %v3311 = vsel %vm3299, %v3289, %v3292
        %v3312 = vsel %vm3302, %v3298, 1326507024
        %v3313 = vsel %vm3301, %v3295, %v3312
        %v3314 = vsel %vm3300, %v3311, %v3313
        %v3315 = vshll.u32 %v3275, 8
        %v3316 = vmul.u32.u64.compose %v3315, %v3314
        %v3317 = vextract.low.u32 %v3316
        %v3318 = vextract.high.u32 %v3316
        %v3319 = vmul.u32.u64.compose %v3315, %v3310
        %v3320 = vextract.low.u32 %v3319
        %v3321 = vextract.high.u32 %v3319
        %v3322 = vmul.u32 %v3315, %v3306
        %v3323 = vadd.s32 %v3318, %v3320
        %vm3324 = vc.u32 %v3318, %v3320
        %v3325 = vadd.s32 %v3321, 1
        %v3326 = vsel %vm3324, %v3325, %v3321
        %v3327 = vadd.s32 %v3322, %v3326
        %v3328 = vadd.s32 %v3327, 536870912
        %v3329 = vshrl.u32 %v3328, 30
        %v3330 = vshll.u32 %v3329, 30
        %v3331 = vsub.s32 %v3327, %v3330
        %vm3332 = vcmp.lt.s32.totalorder %v3331, 0
        %v3333 = vsub.s32 0, %v3331
        %v3334 = vsel %vm3332, %v3333, %v3331
        %v3335 = vclz %v3334
        %v3336 = vsub.s32 %v3335, 2
        %vm3337 = vcmp.gt.s32.totalorder 0, %v3336
        %v3338 = vsel %vm3337, 0, %v3336
        %v3339 = vsub.s32 32, %v3338
        %v3340 = vshll.u32 %v3331, %v3338
        %v3341 = vshrl.u32 %v3323, %v3339
        %v3342 = vor.u32 %v3340, %v3341
        %v3343 = vsub.s32 4294967266, %v3338
        %v3344 = vadd.s32 %v3343, 127
        %v3345 = vshll.u32 %v3344, 23
        %v3346 = vor.u32 4788187, %v3345
        %v3347 = vand.u32 2147483647, %v3346
        %v3349 = vcvt.s32.f32 %v3342
        %v3350 = vmul.f32 %v3349, %v3347
        %v3351 = vxor.u32 %v3350, 2147483648
        %v3352 = vsel %vm3269, %v3351, %v3350
        %v3353 = vsub.s32 4, %v3329
        %v3354 = vsel %vm3269, %v3353, %v3329
        %v3355 = vsel %vm3268, %v2234, %v3352
        %v3356 = vsel %vm3268, 0, %v3354
        %v3357 = vcosq.f32.pop %v3355
        %v3358 = vsinq.f32.pop %v3355
        %vm3359 = vweird.f32 %v2234
        %v3360 = vadd.s32 %v3356, 3
        %v3361 = vand.u32 %v3360, 3
        %vm3362 = vcmp.lt.s32.totalorder %v3361, 2
        %vm3363 = vcmp.eq.s32.totalorder %v3361, 0
        %v3364 = vxor.u32 %v3358, 2147483648
        %v3365 = vsel %vm3363, %v3357, %v3364
        %vm3366 = vcmp.eq.s32.totalorder %v3361, 2
        %v3367 = vxor.u32 %v3357, 2147483648
        %v3368 = vsel %vm3366, %v3367, %v3358
        %v3369 = vsel %vm3362, %v3365, %v3368
        %v3370 = vsel %vm3359, nan, %v3369
        %v3371 = vand.u32 2147483647, %v2321
        %vm3372 = vcmp.le.f32.partialorder %v3371, 0.7853982
        %vm3373 = vcmp.lt.s32.totalorder %v2321, 0
        %v3374 = vand.u32 %v2321, 2139095040
        %v3375 = vshrl.u32 %v3374, 23
        %v3376 = vsub.s32 %v3375, 127
        %v3377 = vand.u32 2147483647, %v2321
        %v3378 = vand.u32 %v3377, 8388607
        %v3379 = vor.u32 %v3378, 8388608
        %v3380 = vsub.s32 0, %v3379
        %v3381 = vadd.s32 %v3376, 1
        %vm3382 = vcmp.gt.s32.totalorder %v3381, 0
        %v3383 = vsel %vm3382, %v3381, 0
        %v3384 = vshrl.u32 %v3383, 5
        %v3385 = vand.u32 %v3383, 31
        %v3386 = vsub.s32 32, %v3385
        %v3387 = vshrl.u32 683565275, %v3386
        %v3388 = vshll.u32 683565275, %v3385
        %v3389 = vshrl.u32 2475754826, %v3386
        %v3390 = vor.u32 %v3388, %v3389
        %v3391 = vshll.u32 2475754826, %v3385
        %v3392 = vshrl.u32 2131351028, %v3386
        %v3393 = vor.u32 %v3391, %v3392
        %v3394 = vshll.u32 2131351028, %v3385
        %v3395 = vshrl.u32 2102212464, %v3386
        %v3396 = vor.u32 %v3394, %v3395
        %v3397 = vshll.u32 2102212464, %v3385
        %v3398 = vshrl.u32 920167782, %v3386
        %v3399 = vor.u32 %v3397, %v3398
        %v3400 = vshll.u32 920167782, %v3385
        %v3401 = vshrl.u32 1326507024, %v3386
        %v3402 = vor.u32 %v3400, %v3401
        %vm3403 = vcmp.lt.s32.totalorder %v3384, 1
        %vm3404 = vcmp.lt.s32.totalorder %v3384, 2
        %vm3405 = vcmp.lt.s32.totalorder %v3384, 3
        %vm3406 = vcmp.lt.s32.totalorder %v3384, 4
        %v3407 = vsel %vm3403, %v3387, %v3390
        %v3408 = vsel %vm3406, %v3396, 2102212464
        %v3409 = vsel %vm3405, %v3393, %v3408
        %v3410 = vsel %vm3404, %v3407, %v3409
        %v3411 = vsel %vm3403, %v3390, %v3393
        %v3412 = vsel %vm3406, %v3399, 920167782
        %v3413 = vsel %vm3405, %v3396, %v3412
        %v3414 = vsel %vm3404, %v3411, %v3413
        %v3415 = vsel %vm3403, %v3393, %v3396
        %v3416 = vsel %vm3406, %v3402, 1326507024
        %v3417 = vsel %vm3405, %v3399, %v3416
        %v3418 = vsel %vm3404, %v3415, %v3417
        %v3419 = vshll.u32 %v3379, 8
        %v3420 = vmul.u32.u64.compose %v3419, %v3418
        %v3421 = vextract.low.u32 %v3420
        %v3422 = vextract.high.u32 %v3420
        %v3423 = vmul.u32.u64.compose %v3419, %v3414
        %v3424 = vextract.low.u32 %v3423
        %v3425 = vextract.high.u32 %v3423
        %v3426 = vmul.u32 %v3419, %v3410
        %v3427 = vadd.s32 %v3422, %v3424
        %vm3428 = vc.u32 %v3422, %v3424
        %v3429 = vadd.s32 %v3425, 1
        %v3430 = vsel %vm3428, %v3429, %v3425
        %v3431 = vadd.s32 %v3426, %v3430
        %v3432 = vadd.s32 %v3431, 536870912
        %v3433 = vshrl.u32 %v3432, 30
        %v3434 = vshll.u32 %v3433, 30
        %v3435 = vsub.s32 %v3431, %v3434
        %vm3436 = vcmp.lt.s32.totalorder %v3435, 0
        %v3437 = vsub.s32 0, %v3435
        %v3438 = vsel %vm3436, %v3437, %v3435
        %v3439 = vclz %v3438
        %v3440 = vsub.s32 %v3439, 2
        %vm3441 = vcmp.gt.s32.totalorder 0, %v3440
        %v3442 = vsel %vm3441, 0, %v3440
        %v3443 = vsub.s32 32, %v3442
        %v3444 = vshll.u32 %v3435, %v3442
        %v3445 = vshrl.u32 %v3427, %v3443
        %v3446 = vor.u32 %v3444, %v3445
        %v3447 = vsub.s32 4294967266, %v3442
        %v3448 = vadd.s32 %v3447, 127
        %v3449 = vshll.u32 %v3448, 23
        %v3450 = vor.u32 4788187, %v3449
        %v3451 = vand.u32 2147483647, %v3450
        %v3453 = vcvt.s32.f32 %v3446
        %v3454 = vmul.f32 %v3453, %v3451
        %v3455 = vxor.u32 %v3454, 2147483648
        %v3456 = vsel %vm3373, %v3455, %v3454
        %v3457 = vsub.s32 4, %v3433
        %v3458 = vsel %vm3373, %v3457, %v3433
        %v3459 = vsel %vm3372, %v2321, %v3456
        %v3460 = vsel %vm3372, 0, %v3458
        %v3461 = vcosq.f32.pop %v3459
        %v3462 = vsinq.f32.pop %v3459
        %vm3463 = vweird.f32 %v2321
        %v3464 = vadd.s32 %v3460, 3
        %v3465 = vand.u32 %v3464, 3
        %vm3466 = vcmp.lt.s32.totalorder %v3465, 2
        %vm3467 = vcmp.eq.s32.totalorder %v3465, 0
        %v3468 = vxor.u32 %v3462, 2147483648
        %v3469 = vsel %vm3467, %v3461, %v3468
        %vm3470 = vcmp.eq.s32.totalorder %v3465, 2
        %v3471 = vxor.u32 %v3461, 2147483648
        %v3472 = vsel %vm3470, %v3471, %v3462
        %v3473 = vsel %vm3466, %v3469, %v3472
        %v3474 = vsel %vm3463, nan, %v3473
        %v3475 = vand.u32 2147483647, %v2323
        %vm3476 = vcmp.le.f32.partialorder %v3475, 0.7853982
        %vm3477 = vcmp.lt.s32.totalorder %v2323, 0
        %v3478 = vand.u32 %v2323, 2139095040
        %v3479 = vshrl.u32 %v3478, 23
        %v3480 = vsub.s32 %v3479, 127
        %v3481 = vand.u32 2147483647, %v2323
        %v3482 = vand.u32 %v3481, 8388607
        %v3483 = vor.u32 %v3482, 8388608
        %v3484 = vsub.s32 0, %v3483
        %v3485 = vadd.s32 %v3480, 1
        %vm3486 = vcmp.gt.s32.totalorder %v3485, 0
        %v3487 = vsel %vm3486, %v3485, 0
        %v3488 = vshrl.u32 %v3487, 5
        %v3489 = vand.u32 %v3487, 31
        %v3490 = vsub.s32 32, %v3489
        %v3491 = vshrl.u32 683565275, %v3490
        %v3492 = vshll.u32 683565275, %v3489
        %v3493 = vshrl.u32 2475754826, %v3490
        %v3494 = vor.u32 %v3492, %v3493
        %v3495 = vshll.u32 2475754826, %v3489
        %v3496 = vshrl.u32 2131351028, %v3490
        %v3497 = vor.u32 %v3495, %v3496
        %v3498 = vshll.u32 2131351028, %v3489
        %v3499 = vshrl.u32 2102212464, %v3490
        %v3500 = vor.u32 %v3498, %v3499
        %v3501 = vshll.u32 2102212464, %v3489
        %v3502 = vshrl.u32 920167782, %v3490
        %v3503 = vor.u32 %v3501, %v3502
        %v3504 = vshll.u32 920167782, %v3489
        %v3505 = vshrl.u32 1326507024, %v3490
        %v3506 = vor.u32 %v3504, %v3505
        %vm3507 = vcmp.lt.s32.totalorder %v3488, 1
        %vm3508 = vcmp.lt.s32.totalorder %v3488, 2
        %vm3509 = vcmp.lt.s32.totalorder %v3488, 3
        %vm3510 = vcmp.lt.s32.totalorder %v3488, 4
        %v3511 = vsel %vm3507, %v3491, %v3494
        %v3512 = vsel %vm3510, %v3500, 2102212464
        %v3513 = vsel %vm3509, %v3497, %v3512
        %v3514 = vsel %vm3508, %v3511, %v3513
        %v3515 = vsel %vm3507, %v3494, %v3497
        %v3516 = vsel %vm3510, %v3503, 920167782
        %v3517 = vsel %vm3509, %v3500, %v3516
        %v3518 = vsel %vm3508, %v3515, %v3517
        %v3519 = vsel %vm3507, %v3497, %v3500
        %v3520 = vsel %vm3510, %v3506, 1326507024
        %v3521 = vsel %vm3509, %v3503, %v3520
        %v3522 = vsel %vm3508, %v3519, %v3521
        %v3523 = vshll.u32 %v3483, 8
        %v3524 = vmul.u32.u64.compose %v3523, %v3522
        %v3525 = vextract.low.u32 %v3524
        %v3526 = vextract.high.u32 %v3524
        %v3527 = vmul.u32.u64.compose %v3523, %v3518
        %v3528 = vextract.low.u32 %v3527
        %v3529 = vextract.high.u32 %v3527
        %v3530 = vmul.u32 %v3523, %v3514
        %v3531 = vadd.s32 %v3526, %v3528
        %vm3532 = vc.u32 %v3526, %v3528
        %v3533 = vadd.s32 %v3529, 1
        %v3534 = vsel %vm3532, %v3533, %v3529
        %v3535 = vadd.s32 %v3530, %v3534
        %v3536 = vadd.s32 %v3535, 536870912
        %v3537 = vshrl.u32 %v3536, 30
        %v3538 = vshll.u32 %v3537, 30
        %v3539 = vsub.s32 %v3535, %v3538
        %vm3540 = vcmp.lt.s32.totalorder %v3539, 0
        %v3541 = vsub.s32 0, %v3539
        %v3542 = vsel %vm3540, %v3541, %v3539
        %v3543 = vclz %v3542
        %v3544 = vsub.s32 %v3543, 2
        %vm3545 = vcmp.gt.s32.totalorder 0, %v3544
        %v3546 = vsel %vm3545, 0, %v3544
        %v3547 = vsub.s32 32, %v3546
        %v3548 = vshll.u32 %v3539, %v3546
        %v3549 = vshrl.u32 %v3531, %v3547
        %v3550 = vor.u32 %v3548, %v3549
        %v3551 = vsub.s32 4294967266, %v3546
        %v3552 = vadd.s32 %v3551, 127
        %v3553 = vshll.u32 %v3552, 23
        %v3554 = vor.u32 4788187, %v3553
        %v3555 = vand.u32 2147483647, %v3554
        %v3557 = vcvt.s32.f32 %v3550
        %v3558 = vmul.f32 %v3557, %v3555
        %v3559 = vxor.u32 %v3558, 2147483648
        %v3560 = vsel %vm3477, %v3559, %v3558
        %v3561 = vsub.s32 4, %v3537
        %v3562 = vsel %vm3477, %v3561, %v3537
        %v3563 = vsel %vm3476, %v2323, %v3560
        %v3564 = vsel %vm3476, 0, %v3562
        %v3565 = vcosq.f32.pop %v3563
        %v3566 = vsinq.f32.pop %v3563
        %vm3567 = vweird.f32 %v2323
        %v3568 = vadd.s32 %v3564, 3
        %v3569 = vand.u32 %v3568, 3
        %vm3570 = vcmp.lt.s32.totalorder %v3569, 2
        %vm3571 = vcmp.eq.s32.totalorder %v3569, 0
        %v3572 = vxor.u32 %v3566, 2147483648
        %v3573 = vsel %vm3571, %v3565, %v3572
        %vm3574 = vcmp.eq.s32.totalorder %v3569, 2
        %v3575 = vxor.u32 %v3565, 2147483648
        %v3576 = vsel %vm3574, %v3575, %v3566
        %v3577 = vsel %vm3570, %v3573, %v3576
        %v3578 = vsel %vm3567, nan, %v3577
        %v3579 = vand.u32 2147483647, %v2238
        %vm3580 = vcmp.le.f32.partialorder %v3579, 0.7853982
        %vm3581 = vcmp.lt.s32.totalorder %v2238, 0
        %v3582 = vand.u32 %v2238, 2139095040
        %v3583 = vshrl.u32 %v3582, 23
        %v3584 = vsub.s32 %v3583, 127
        %v3585 = vand.u32 2147483647, %v2238
        %v3586 = vand.u32 %v3585, 8388607
        %v3587 = vor.u32 %v3586, 8388608
        %v3588 = vsub.s32 0, %v3587
        %v3589 = vadd.s32 %v3584, 1
        %vm3590 = vcmp.gt.s32.totalorder %v3589, 0
        %v3591 = vsel %vm3590, %v3589, 0
        %v3592 = vshrl.u32 %v3591, 5
        %v3593 = vand.u32 %v3591, 31
        %v3594 = vsub.s32 32, %v3593
        %v3595 = vshrl.u32 683565275, %v3594
        %v3596 = vshll.u32 683565275, %v3593
        %v3597 = vshrl.u32 2475754826, %v3594
        %v3598 = vor.u32 %v3596, %v3597
        %v3599 = vshll.u32 2475754826, %v3593
        %v3600 = vshrl.u32 2131351028, %v3594
        %v3601 = vor.u32 %v3599, %v3600
        %v3602 = vshll.u32 2131351028, %v3593
        %v3603 = vshrl.u32 2102212464, %v3594
        %v3604 = vor.u32 %v3602, %v3603
        %v3605 = vshll.u32 2102212464, %v3593
        %v3606 = vshrl.u32 920167782, %v3594
        %v3607 = vor.u32 %v3605, %v3606
        %v3608 = vshll.u32 920167782, %v3593
        %v3609 = vshrl.u32 1326507024, %v3594
        %v3610 = vor.u32 %v3608, %v3609
        %vm3611 = vcmp.lt.s32.totalorder %v3592, 1
        %vm3612 = vcmp.lt.s32.totalorder %v3592, 2
        %vm3613 = vcmp.lt.s32.totalorder %v3592, 3
        %vm3614 = vcmp.lt.s32.totalorder %v3592, 4
        %v3615 = vsel %vm3611, %v3595, %v3598
        %v3616 = vsel %vm3614, %v3604, 2102212464
        %v3617 = vsel %vm3613, %v3601, %v3616
        %v3618 = vsel %vm3612, %v3615, %v3617
        %v3619 = vsel %vm3611, %v3598, %v3601
        %v3620 = vsel %vm3614, %v3607, 920167782
        %v3621 = vsel %vm3613, %v3604, %v3620
        %v3622 = vsel %vm3612, %v3619, %v3621
        %v3623 = vsel %vm3611, %v3601, %v3604
        %v3624 = vsel %vm3614, %v3610, 1326507024
        %v3625 = vsel %vm3613, %v3607, %v3624
        %v3626 = vsel %vm3612, %v3623, %v3625
        %v3627 = vshll.u32 %v3587, 8
        %v3628 = vmul.u32.u64.compose %v3627, %v3626
        %v3629 = vextract.low.u32 %v3628
        %v3630 = vextract.high.u32 %v3628
        %v3631 = vmul.u32.u64.compose %v3627, %v3622
        %v3632 = vextract.low.u32 %v3631
        %v3633 = vextract.high.u32 %v3631
        %v3634 = vmul.u32 %v3627, %v3618
        %v3635 = vadd.s32 %v3630, %v3632
        %vm3636 = vc.u32 %v3630, %v3632
        %v3637 = vadd.s32 %v3633, 1
        %v3638 = vsel %vm3636, %v3637, %v3633
        %v3639 = vadd.s32 %v3634, %v3638
        %v3640 = vadd.s32 %v3639, 536870912
        %v3641 = vshrl.u32 %v3640, 30
        %v3642 = vshll.u32 %v3641, 30
        %v3643 = vsub.s32 %v3639, %v3642
        %vm3644 = vcmp.lt.s32.totalorder %v3643, 0
        %v3645 = vsub.s32 0, %v3643
        %v3646 = vsel %vm3644, %v3645, %v3643
        %v3647 = vclz %v3646
        %v3648 = vsub.s32 %v3647, 2
        %vm3649 = vcmp.gt.s32.totalorder 0, %v3648
        %v3650 = vsel %vm3649, 0, %v3648
        %v3651 = vsub.s32 32, %v3650
        %v3652 = vshll.u32 %v3643, %v3650
        %v3653 = vshrl.u32 %v3635, %v3651
        %v3654 = vor.u32 %v3652, %v3653
        %v3655 = vsub.s32 4294967266, %v3650
        %v3656 = vadd.s32 %v3655, 127
        %v3657 = vshll.u32 %v3656, 23
        %v3658 = vor.u32 4788187, %v3657
        %v3659 = vand.u32 2147483647, %v3658
        %v3661 = vcvt.s32.f32 %v3654
        %v3662 = vmul.f32 %v3661, %v3659
        %v3663 = vxor.u32 %v3662, 2147483648
        %v3664 = vsel %vm3581, %v3663, %v3662
        %v3665 = vsub.s32 4, %v3641
        %v3666 = vsel %vm3581, %v3665, %v3641
        %v3667 = vsel %vm3580, %v2238, %v3664
        %v3668 = vsel %vm3580, 0, %v3666
        %v3669 = vcosq.f32.pop %v3667
        %v3670 = vsinq.f32.pop %v3667
        %vm3671 = vweird.f32 %v2238
        %v3672 = vadd.s32 %v3668, 3
        %v3673 = vand.u32 %v3672, 3
        %vm3674 = vcmp.lt.s32.totalorder %v3673, 2
        %vm3675 = vcmp.eq.s32.totalorder %v3673, 0
        %v3676 = vxor.u32 %v3670, 2147483648
        %v3677 = vsel %vm3675, %v3669, %v3676
        %vm3678 = vcmp.eq.s32.totalorder %v3673, 2
        %v3679 = vxor.u32 %v3669, 2147483648
        %v3680 = vsel %vm3678, %v3679, %v3670
        %v3681 = vsel %vm3674, %v3677, %v3680
        %v3682 = vsel %vm3671, nan, %v3681
        %v3683 = vand.u32 2147483647, %v2240
        %vm3684 = vcmp.le.f32.partialorder %v3683, 0.7853982
        %vm3685 = vcmp.lt.s32.totalorder %v2240, 0
        %v3686 = vand.u32 %v2240, 2139095040
        %v3687 = vshrl.u32 %v3686, 23
        %v3688 = vsub.s32 %v3687, 127
        %v3689 = vand.u32 2147483647, %v2240
        %v3690 = vand.u32 %v3689, 8388607
        %v3691 = vor.u32 %v3690, 8388608
        %v3692 = vsub.s32 0, %v3691
        %v3693 = vadd.s32 %v3688, 1
        %vm3694 = vcmp.gt.s32.totalorder %v3693, 0
        %v3695 = vsel %vm3694, %v3693, 0
        %v3696 = vshrl.u32 %v3695, 5
        %v3697 = vand.u32 %v3695, 31
        %v3698 = vsub.s32 32, %v3697
        %v3699 = vshrl.u32 683565275, %v3698
        %v3700 = vshll.u32 683565275, %v3697
        %v3701 = vshrl.u32 2475754826, %v3698
        %v3702 = vor.u32 %v3700, %v3701
        %v3703 = vshll.u32 2475754826, %v3697
        %v3704 = vshrl.u32 2131351028, %v3698
        %v3705 = vor.u32 %v3703, %v3704
        %v3706 = vshll.u32 2131351028, %v3697
        %v3707 = vshrl.u32 2102212464, %v3698
        %v3708 = vor.u32 %v3706, %v3707
        %v3709 = vshll.u32 2102212464, %v3697
        %v3710 = vshrl.u32 920167782, %v3698
        %v3711 = vor.u32 %v3709, %v3710
        %v3712 = vshll.u32 920167782, %v3697
        %v3713 = vshrl.u32 1326507024, %v3698
        %v3714 = vor.u32 %v3712, %v3713
        %vm3715 = vcmp.lt.s32.totalorder %v3696, 1
        %vm3716 = vcmp.lt.s32.totalorder %v3696, 2
        %vm3717 = vcmp.lt.s32.totalorder %v3696, 3
        %vm3718 = vcmp.lt.s32.totalorder %v3696, 4
        %v3719 = vsel %vm3715, %v3699, %v3702
        %v3720 = vsel %vm3718, %v3708, 2102212464
        %v3721 = vsel %vm3717, %v3705, %v3720
        %v3722 = vsel %vm3716, %v3719, %v3721
        %v3723 = vsel %vm3715, %v3702, %v3705
        %v3724 = vsel %vm3718, %v3711, 920167782
        %v3725 = vsel %vm3717, %v3708, %v3724
        %v3726 = vsel %vm3716, %v3723, %v3725
        %v3727 = vsel %vm3715, %v3705, %v3708
        %v3728 = vsel %vm3718, %v3714, 1326507024
        %v3729 = vsel %vm3717, %v3711, %v3728
        %v3730 = vsel %vm3716, %v3727, %v3729
        %v3731 = vshll.u32 %v3691, 8
        %v3732 = vmul.u32.u64.compose %v3731, %v3730
        %v3733 = vextract.low.u32 %v3732
        %v3734 = vextract.high.u32 %v3732
        %v3735 = vmul.u32.u64.compose %v3731, %v3726
        %v3736 = vextract.low.u32 %v3735
        %v3737 = vextract.high.u32 %v3735
        %v3738 = vmul.u32 %v3731, %v3722
        %v3739 = vadd.s32 %v3734, %v3736
        %vm3740 = vc.u32 %v3734, %v3736
        %v3741 = vadd.s32 %v3737, 1
        %v3742 = vsel %vm3740, %v3741, %v3737
        %v3743 = vadd.s32 %v3738, %v3742
        %v3744 = vadd.s32 %v3743, 536870912
        %v3745 = vshrl.u32 %v3744, 30
        %v3746 = vshll.u32 %v3745, 30
        %v3747 = vsub.s32 %v3743, %v3746
        %vm3748 = vcmp.lt.s32.totalorder %v3747, 0
        %v3749 = vsub.s32 0, %v3747
        %v3750 = vsel %vm3748, %v3749, %v3747
        %v3751 = vclz %v3750
        %v3752 = vsub.s32 %v3751, 2
        %vm3753 = vcmp.gt.s32.totalorder 0, %v3752
        %v3754 = vsel %vm3753, 0, %v3752
        %v3755 = vsub.s32 32, %v3754
        %v3756 = vshll.u32 %v3747, %v3754
        %v3757 = vshrl.u32 %v3739, %v3755
        %v3758 = vor.u32 %v3756, %v3757
        %v3759 = vsub.s32 4294967266, %v3754
        %v3760 = vadd.s32 %v3759, 127
        %v3761 = vshll.u32 %v3760, 23
        %v3762 = vor.u32 4788187, %v3761
        %v3763 = vand.u32 2147483647, %v3762
        %v3765 = vcvt.s32.f32 %v3758
        %v3766 = vmul.f32 %v3765, %v3763
        %v3767 = vxor.u32 %v3766, 2147483648
        %v3768 = vsel %vm3685, %v3767, %v3766
        %v3769 = vsub.s32 4, %v3745
        %v3770 = vsel %vm3685, %v3769, %v3745
        %v3771 = vsel %vm3684, %v2240, %v3768
        %v3772 = vsel %vm3684, 0, %v3770
        %v3773 = vcosq.f32.pop %v3771
        %v3774 = vsinq.f32.pop %v3771
        %vm3775 = vweird.f32 %v2240
        %v3776 = vadd.s32 %v3772, 3
        %v3777 = vand.u32 %v3776, 3
        %vm3778 = vcmp.lt.s32.totalorder %v3777, 2
        %vm3779 = vcmp.eq.s32.totalorder %v3777, 0
        %v3780 = vxor.u32 %v3774, 2147483648
        %v3781 = vsel %vm3779, %v3773, %v3780
        %vm3782 = vcmp.eq.s32.totalorder %v3777, 2
        %v3783 = vxor.u32 %v3773, 2147483648
        %v3784 = vsel %vm3782, %v3783, %v3774
        %v3785 = vsel %vm3778, %v3781, %v3784
        %v3786 = vsel %vm3775, nan, %v3785
        %v3787 = vand.u32 2147483647, %v2327
        %vm3788 = vcmp.le.f32.partialorder %v3787, 0.7853982
        %vm3789 = vcmp.lt.s32.totalorder %v2327, 0
        %v3790 = vand.u32 %v2327, 2139095040
        %v3791 = vshrl.u32 %v3790, 23
        %v3792 = vsub.s32 %v3791, 127
        %v3793 = vand.u32 2147483647, %v2327
        %v3794 = vand.u32 %v3793, 8388607
        %v3795 = vor.u32 %v3794, 8388608
        %v3796 = vsub.s32 0, %v3795
        %v3797 = vadd.s32 %v3792, 1
        %vm3798 = vcmp.gt.s32.totalorder %v3797, 0
        %v3799 = vsel %vm3798, %v3797, 0
        %v3800 = vshrl.u32 %v3799, 5
        %v3801 = vand.u32 %v3799, 31
        %v3802 = vsub.s32 32, %v3801
        %v3803 = vshrl.u32 683565275, %v3802
        %v3804 = vshll.u32 683565275, %v3801
        %v3805 = vshrl.u32 2475754826, %v3802
        %v3806 = vor.u32 %v3804, %v3805
        %v3807 = vshll.u32 2475754826, %v3801
        %v3808 = vshrl.u32 2131351028, %v3802
        %v3809 = vor.u32 %v3807, %v3808
        %v3810 = vshll.u32 2131351028, %v3801
        %v3811 = vshrl.u32 2102212464, %v3802
        %v3812 = vor.u32 %v3810, %v3811
        %v3813 = vshll.u32 2102212464, %v3801
        %v3814 = vshrl.u32 920167782, %v3802
        %v3815 = vor.u32 %v3813, %v3814
        %v3816 = vshll.u32 920167782, %v3801
        %v3817 = vshrl.u32 1326507024, %v3802
        %v3818 = vor.u32 %v3816, %v3817
        %vm3819 = vcmp.lt.s32.totalorder %v3800, 1
        %vm3820 = vcmp.lt.s32.totalorder %v3800, 2
        %vm3821 = vcmp.lt.s32.totalorder %v3800, 3
        %vm3822 = vcmp.lt.s32.totalorder %v3800, 4
        %v3823 = vsel %vm3819, %v3803, %v3806
        %v3824 = vsel %vm3822, %v3812, 2102212464
        %v3825 = vsel %vm3821, %v3809, %v3824
        %v3826 = vsel %vm3820, %v3823, %v3825
        %v3827 = vsel %vm3819, %v3806, %v3809
        %v3828 = vsel %vm3822, %v3815, 920167782
        %v3829 = vsel %vm3821, %v3812, %v3828
        %v3830 = vsel %vm3820, %v3827, %v3829
        %v3831 = vsel %vm3819, %v3809, %v3812
        %v3832 = vsel %vm3822, %v3818, 1326507024
        %v3833 = vsel %vm3821, %v3815, %v3832
        %v3834 = vsel %vm3820, %v3831, %v3833
        %v3835 = vshll.u32 %v3795, 8
        %v3836 = vmul.u32.u64.compose %v3835, %v3834
        %v3837 = vextract.low.u32 %v3836
        %v3838 = vextract.high.u32 %v3836
        %v3839 = vmul.u32.u64.compose %v3835, %v3830
        %v3840 = vextract.low.u32 %v3839
        %v3841 = vextract.high.u32 %v3839
        %v3842 = vmul.u32 %v3835, %v3826
        %v3843 = vadd.s32 %v3838, %v3840
        %vm3844 = vc.u32 %v3838, %v3840
        %v3845 = vadd.s32 %v3841, 1
        %v3846 = vsel %vm3844, %v3845, %v3841
        %v3847 = vadd.s32 %v3842, %v3846
        %v3848 = vadd.s32 %v3847, 536870912
        %v3849 = vshrl.u32 %v3848, 30
        %v3850 = vshll.u32 %v3849, 30
        %v3851 = vsub.s32 %v3847, %v3850
        %vm3852 = vcmp.lt.s32.totalorder %v3851, 0
        %v3853 = vsub.s32 0, %v3851
        %v3854 = vsel %vm3852, %v3853, %v3851
        %v3855 = vclz %v3854
        %v3856 = vsub.s32 %v3855, 2
        %vm3857 = vcmp.gt.s32.totalorder 0, %v3856
        %v3858 = vsel %vm3857, 0, %v3856
        %v3859 = vsub.s32 32, %v3858
        %v3860 = vshll.u32 %v3851, %v3858
        %v3861 = vshrl.u32 %v3843, %v3859
        %v3862 = vor.u32 %v3860, %v3861
        %v3863 = vsub.s32 4294967266, %v3858
        %v3864 = vadd.s32 %v3863, 127
        %v3865 = vshll.u32 %v3864, 23
        %v3866 = vor.u32 4788187, %v3865
        %v3867 = vand.u32 2147483647, %v3866
        %v3869 = vcvt.s32.f32 %v3862
        %v3870 = vmul.f32 %v3869, %v3867
        %v3871 = vxor.u32 %v3870, 2147483648
        %v3872 = vsel %vm3789, %v3871, %v3870
        %v3873 = vsub.s32 4, %v3849
        %v3874 = vsel %vm3789, %v3873, %v3849
        %v3875 = vsel %vm3788, %v2327, %v3872
        %v3876 = vsel %vm3788, 0, %v3874
        %v3877 = vcosq.f32.pop %v3875
        %v3878 = vsinq.f32.pop %v3875
        %vm3879 = vweird.f32 %v2327
        %v3880 = vadd.s32 %v3876, 3
        %v3881 = vand.u32 %v3880, 3
        %vm3882 = vcmp.lt.s32.totalorder %v3881, 2
        %vm3883 = vcmp.eq.s32.totalorder %v3881, 0
        %v3884 = vxor.u32 %v3878, 2147483648
        %v3885 = vsel %vm3883, %v3877, %v3884
        %vm3886 = vcmp.eq.s32.totalorder %v3881, 2
        %v3887 = vxor.u32 %v3877, 2147483648
        %v3888 = vsel %vm3886, %v3887, %v3878
        %v3889 = vsel %vm3882, %v3885, %v3888
        %v3890 = vsel %vm3879, nan, %v3889
        %v3891 = vand.u32 2147483647, %v2329
        %vm3892 = vcmp.le.f32.partialorder %v3891, 0.7853982
        %vm3893 = vcmp.lt.s32.totalorder %v2329, 0
        %v3894 = vand.u32 %v2329, 2139095040
        %v3895 = vshrl.u32 %v3894, 23
        %v3896 = vsub.s32 %v3895, 127
        %v3897 = vand.u32 2147483647, %v2329
        %v3898 = vand.u32 %v3897, 8388607
        %v3899 = vor.u32 %v3898, 8388608
        %v3900 = vsub.s32 0, %v3899
        %v3901 = vadd.s32 %v3896, 1
        %vm3902 = vcmp.gt.s32.totalorder %v3901, 0
        %v3903 = vsel %vm3902, %v3901, 0
        %v3904 = vshrl.u32 %v3903, 5
        %v3905 = vand.u32 %v3903, 31
        %v3906 = vsub.s32 32, %v3905
        %v3907 = vshrl.u32 683565275, %v3906
        %v3908 = vshll.u32 683565275, %v3905
        %v3909 = vshrl.u32 2475754826, %v3906
        %v3910 = vor.u32 %v3908, %v3909
        %v3911 = vshll.u32 2475754826, %v3905
        %v3912 = vshrl.u32 2131351028, %v3906
        %v3913 = vor.u32 %v3911, %v3912
        %v3914 = vshll.u32 2131351028, %v3905
        %v3915 = vshrl.u32 2102212464, %v3906
        %v3916 = vor.u32 %v3914, %v3915
        %v3917 = vshll.u32 2102212464, %v3905
        %v3918 = vshrl.u32 920167782, %v3906
        %v3919 = vor.u32 %v3917, %v3918
        %v3920 = vshll.u32 920167782, %v3905
        %v3921 = vshrl.u32 1326507024, %v3906
        %v3922 = vor.u32 %v3920, %v3921
        %vm3923 = vcmp.lt.s32.totalorder %v3904, 1
        %vm3924 = vcmp.lt.s32.totalorder %v3904, 2
        %vm3925 = vcmp.lt.s32.totalorder %v3904, 3
        %vm3926 = vcmp.lt.s32.totalorder %v3904, 4
        %v3927 = vsel %vm3923, %v3907, %v3910
        %v3928 = vsel %vm3926, %v3916, 2102212464
        %v3929 = vsel %vm3925, %v3913, %v3928
        %v3930 = vsel %vm3924, %v3927, %v3929
        %v3931 = vsel %vm3923, %v3910, %v3913
        %v3932 = vsel %vm3926, %v3919, 920167782
        %v3933 = vsel %vm3925, %v3916, %v3932
        %v3934 = vsel %vm3924, %v3931, %v3933
        %v3935 = vsel %vm3923, %v3913, %v3916
        %v3936 = vsel %vm3926, %v3922, 1326507024
        %v3937 = vsel %vm3925, %v3919, %v3936
        %v3938 = vsel %vm3924, %v3935, %v3937
        %v3939 = vshll.u32 %v3899, 8
        %v3940 = vmul.u32.u64.compose %v3939, %v3938
        %v3941 = vextract.low.u32 %v3940
        %v3942 = vextract.high.u32 %v3940
        %v3943 = vmul.u32.u64.compose %v3939, %v3934
        %v3944 = vextract.low.u32 %v3943
        %v3945 = vextract.high.u32 %v3943
        %v3946 = vmul.u32 %v3939, %v3930
        %v3947 = vadd.s32 %v3942, %v3944
        %vm3948 = vc.u32 %v3942, %v3944
        %v3949 = vadd.s32 %v3945, 1
        %v3950 = vsel %vm3948, %v3949, %v3945
        %v3951 = vadd.s32 %v3946, %v3950
        %v3952 = vadd.s32 %v3951, 536870912
        %v3953 = vshrl.u32 %v3952, 30
        %v3954 = vshll.u32 %v3953, 30
        %v3955 = vsub.s32 %v3951, %v3954
        %vm3956 = vcmp.lt.s32.totalorder %v3955, 0
        %v3957 = vsub.s32 0, %v3955
        %v3958 = vsel %vm3956, %v3957, %v3955
        %v3959 = vclz %v3958
        %v3960 = vsub.s32 %v3959, 2
        %vm3961 = vcmp.gt.s32.totalorder 0, %v3960
        %v3962 = vsel %vm3961, 0, %v3960
        %v3963 = vsub.s32 32, %v3962
        %v3964 = vshll.u32 %v3955, %v3962
        %v3965 = vshrl.u32 %v3947, %v3963
        %v3966 = vor.u32 %v3964, %v3965
        %v3967 = vsub.s32 4294967266, %v3962
        %v3968 = vadd.s32 %v3967, 127
        %v3969 = vshll.u32 %v3968, 23
        %v3970 = vor.u32 4788187, %v3969
        %v3971 = vand.u32 2147483647, %v3970
        %v3973 = vcvt.s32.f32 %v3966
        %v3974 = vmul.f32 %v3973, %v3971
        %v3975 = vxor.u32 %v3974, 2147483648
        %v3976 = vsel %vm3893, %v3975, %v3974
        %v3977 = vsub.s32 4, %v3953
        %v3978 = vsel %vm3893, %v3977, %v3953
        %v3979 = vsel %vm3892, %v2329, %v3976
        %v3980 = vsel %vm3892, 0, %v3978
        %v3981 = vcosq.f32.pop %v3979
        %v3982 = vsinq.f32.pop %v3979
        %vm3983 = vweird.f32 %v2329
        %v3984 = vadd.s32 %v3980, 3
        %v3985 = vand.u32 %v3984, 3
        %vm3986 = vcmp.lt.s32.totalorder %v3985, 2
        %vm3987 = vcmp.eq.s32.totalorder %v3985, 0
        %v3988 = vxor.u32 %v3982, 2147483648
        %v3989 = vsel %vm3987, %v3981, %v3988
        %vm3990 = vcmp.eq.s32.totalorder %v3985, 2
        %v3991 = vxor.u32 %v3981, 2147483648
        %v3992 = vsel %vm3990, %v3991, %v3982
        %v3993 = vsel %vm3986, %v3989, %v3992
        %v3994 = vsel %vm3983, nan, %v3993
        %3995 = vst [vmem:[#allocation2 + $0xa0] sm:$0xff] %v2434
        %3996 = vst [vmem:[#allocation2 + $0xa8] sm:$0xff] %v2538
        %3997 = vst [vmem:[#allocation2 + $0xb0] sm:$0xff] %v2642
        %3998 = vst [vmem:[#allocation2 + $0xb8] sm:$0xff] %v2746
        %3999 = vst [vmem:[#allocation2 + $0xc0] sm:$0xff] %v2850
        %4000 = vst [vmem:[#allocation2 + $0xc8] sm:$0xff] %v2954
        %4001 = vst [vmem:[#allocation2 + $0xd0] sm:$0xff] %v3058
        %4002 = vst [vmem:[#allocation2 + $0xd8] sm:$0xff] %v3162
        %4003 = vst [vmem:[#allocation2 + $0xe0] sm:$0xff] %v3266
        %4004 = vst [vmem:[#allocation2 + $0xe8] sm:$0xff] %v3370
        %4005 = vst [vmem:[#allocation2 + $0xf0] sm:$0xff] %v3474
        %4006 = vst [vmem:[#allocation2 + $0xf8] sm:$0xff] %v3578
        %4007 = vst [vmem:[#allocation2 + $0x100] sm:$0xff] %v3682
        %4008 = vst [vmem:[#allocation2 + $0x108] sm:$0xff] %v3786
        %4009 = vst [vmem:[#allocation2 + $0x110] sm:$0xff] %v3890
        %4010 = vst [vmem:[#allocation2 + $0x118] sm:$0xff] %v3994
        %s4011 = scalar_lea.vmem [#allocation6], 64
        %v4012 = vld [vmem:[%s4011] sm:$0xff]
        %v4013 = vld [vmem:[%s4011 + $0x8] sm:$0xff]
        %v4014 = vld [vmem:[%s4011 + $0x10] sm:$0xff]
        %v4015 = vld [vmem:[%s4011 + $0x18] sm:$0xff]
        %v4016 = vld [vmem:[#allocation2] sm:$0xff]
        %v4017 = vld [vmem:[#allocation2 + $0x8] sm:$0xff]
        %v4018 = vld [vmem:[#allocation2 + $0x10] sm:$0xff]
        %v4019 = vld [vmem:[#allocation2 + $0x18] sm:$0xff]
        %v4020 = vld [vmem:[#allocation2 + $0x20] sm:$0xff]
        %v4021 = vld [vmem:[#allocation2 + $0x28] sm:$0xff]
        %v4022 = vld [vmem:[#allocation2 + $0x30] sm:$0xff]
        %v4023 = vld [vmem:[#allocation2 + $0x38] sm:$0xff]
        %v4024 = vld [vmem:[#allocation2 + $0x40] sm:$0xff]
        %v4025 = vld [vmem:[#allocation2 + $0x48] sm:$0xff]
        %v4026 = vld [vmem:[#allocation2 + $0x50] sm:$0xff]
        %v4027 = vld [vmem:[#allocation2 + $0x58] sm:$0xff]
        %v4028 = vld [vmem:[#allocation2 + $0x60] sm:$0xff]
        %v4029 = vld [vmem:[#allocation2 + $0x68] sm:$0xff]
        %v4030 = vld [vmem:[#allocation2 + $0x70] sm:$0xff]
        %v4031 = vld [vmem:[#allocation2 + $0x78] sm:$0xff]
        %v4032 = vld [vmem:[#allocation2 + $0x80] sm:$0xff]
        %v4033 = vld [vmem:[#allocation2 + $0x88] sm:$0xff]
        %v4034 = vld [vmem:[#allocation2 + $0x90] sm:$0xff]
        %v4035 = vld [vmem:[#allocation2 + $0x98] sm:$0xff]
        %v4036 = vld [vmem:[#allocation2 + $0xa0] sm:$0xff]
        %v4037 = vld [vmem:[#allocation2 + $0xa8] sm:$0xff]
        %v4038 = vld [vmem:[#allocation2 + $0xb0] sm:$0xff]
        %v4039 = vld [vmem:[#allocation2 + $0xb8] sm:$0xff]
        %v4040 = vld [vmem:[#allocation2 + $0xc0] sm:$0xff]
        %v4041 = vld [vmem:[#allocation2 + $0xc8] sm:$0xff]
        %v4042 = vld [vmem:[#allocation2 + $0xd0] sm:$0xff]
        %v4043 = vld [vmem:[#allocation2 + $0xd8] sm:$0xff]
        %v4044 = vld [vmem:[#allocation2 + $0xe0] sm:$0xff]
        %v4045 = vld [vmem:[#allocation2 + $0xe8] sm:$0xff]
        %v4046 = vld [vmem:[#allocation2 + $0xf0] sm:$0xff]
        %v4047 = vld [vmem:[#allocation2 + $0xf8] sm:$0xff]
        %v4048 = vld [vmem:[#allocation2 + $0x100] sm:$0xff]
        %v4049 = vld [vmem:[#allocation2 + $0x108] sm:$0xff]
        %v4050 = vld [vmem:[#allocation2 + $0x110] sm:$0xff]
        %v4051 = vld [vmem:[#allocation2 + $0x118] sm:$0xff]
        %vm4052 = vcmask 588800
        %v4054 = vsel %vm4052, %v4012, 0
        %v4057 = vsel %vm4052, %v4013, 0
        %v4060 = vsel %vm4052, %v4014, 0
        %v4063 = vsel %vm4052, %v4015, 0
        %4065 = vmatprep.subr.mxu0 %v4017
        %4066 = vmatpush1.msra.mxu0 %v4016
        %4067 = vmatprep.subr.mxu0 %v4021
        %4068 = vmatpush1.msra.mxu0 %v4020
        %4069 = vmatprep.subr.mxu0 %v4025
        %4070 = vmatpush1.msra.mxu0 %v4024
        %4071 = vmatprep.subr.mxu0 %v4029
        %4072 = vmatpush1.msra.mxu0 %v4028
        %4073 = vmatprep.subr.mxu0 %v4033
        %4074 = vmatpush1.msra.mxu0 %v4032
        %4075 = vmatprep.subr.mxu0 %v4037
        %4076 = vmatpush1.msra.mxu0 %v4036
        %4077 = vmatprep.subr.mxu0 %v4041
        %4078 = vmatpush1.msra.mxu0 %v4040
        %4079 = vmatprep.subr.mxu0 %v4045
        %4080 = vmatpush1.msra.mxu0 %v4044
        %4081 = vmatprep.subr.mxu0 %v4049
        %4082 = vmatpush1.msra.mxu0 %v4048
        %4083 = vmatprep.subr.mxu0 0.0
        %4084 = vmatpush1.msra.mxu0 0.0
        %4085 = vmatprep.subr.mxu0 0.0
        %4086 = vmatpush1.msra.mxu0 0.0
        %4087 = vmatprep.subr.mxu0 0.0
        %4088 = vmatpush1.msra.mxu0 0.0
        %4089 = vmatprep.subr.mxu0 0.0
        %4090 = vmatpush1.msra.mxu0 0.0
        %4091 = vmatprep.subr.mxu0 0.0
        %4092 = vmatpush1.msra.mxu0 0.0
        %4093 = vmatprep.subr.mxu0 0.0
        %4094 = vmatpush1.msra.mxu0 0.0
        %4095 = vmatprep.subr.mxu0 0.0
        %4096 = vmatpush1.msra.mxu0 0.0
        %4097 = vmatprep.subr.mxu0 0.0
        %4098 = vmatpush1.msra.mxu0 0.0
        %4099 = vmatprep.subr.mxu0 0.0
        %4100 = vmatpush1.msra.mxu0 0.0
        %4101 = vmatprep.subr.mxu0 0.0
        %4102 = vmatpush1.msra.mxu0 0.0
        %4103 = vmatprep.subr.mxu0 0.0
        %4104 = vmatpush1.msra.mxu0 0.0
        %4105 = vmatprep.subr.mxu0 0.0
        %4106 = vmatpush1.msra.mxu0 0.0
        %4107 = vmatprep.subr.mxu0 0.0
        %4108 = vmatpush1.msra.mxu0 0.0
        %4109 = vmatprep.subr.mxu0 0.0
        %4110 = vmatpush1.msra.mxu0 0.0
        %4111 = vmatprep.subr.mxu0 0.0
        %4112 = vmatpush1.msra.mxu0 0.0
        %4113 = vmatprep.subr.mxu0 0.0
        %4114 = vmatpush1.msra.mxu0 0.0
        %4115 = vmatprep.subr.mxu0 0.0
        %4116 = vmatpush1.msra.mxu0 0.0
        %4117 = vmatprep.subr.mxu0 0.0
        %4118 = vmatpush1.msra.mxu0 0.0
        %4119 = vmatprep.subr.mxu0 0.0
        %4120 = vmatpush1.msra.mxu0 0.0
        %4121 = vmatprep.subr.mxu0 0.0
        %4122 = vmatpush1.msra.mxu0 0.0
        %4123 = vmatprep.subr.mxu0 0.0
        %4124 = vmatpush1.msra.mxu0 0.0
        %4125 = vmatprep.subr.mxu0 0.0
        %4126 = vmatpush1.msra.mxu0 0.0
        %4127 = vmatprep.subr.mxu0 0.0
        %4128 = vmatpush1.msra.mxu0 0.0
        %4129 = vmatprep.mubr.f32.mxu0 0.0
        %4130 = vmatmul.mubr.f32.gmra.mrb[0].mxu0 %v4054
        %v4131 = vpop.f32.mrb[0].mxu0
        %v4132 = vadd.f32 0.0, %v4131
        %v4133 = vpop.f32.mrb[0].mxu0
        %v4134 = vadd.f32 0.0, %v4133
        %4135 = vmatprep.mubr.f32.mxu0 0.0
        %4136 = vmatmul.mubr.f32.gmra.mrb[0].mxu0 %v4057
        %v4137 = vpop.f32.mrb[0].mxu0
        %v4138 = vadd.f32 0.0, %v4137
        %v4139 = vpop.f32.mrb[0].mxu0
        %v4140 = vadd.f32 0.0, %v4139
        %4141 = vmatprep.mubr.f32.mxu0 0.0
        %4142 = vmatmul.mubr.f32.gmra.mrb[0].mxu0 %v4060
        %v4143 = vpop.f32.mrb[0].mxu0
        %v4144 = vadd.f32 0.0, %v4143
        %v4145 = vpop.f32.mrb[0].mxu0
        %v4146 = vadd.f32 0.0, %v4145
        %4147 = vmatprep.mubr.f32.mxu0 0.0
        %4148 = vmatmul.mubr.f32.gmra.mrb[0].mxu0 %v4063
        %v4149 = vpop.f32.mrb[0].mxu0
        %v4150 = vadd.f32 0.0, %v4149
        %v4151 = vpop.f32.mrb[0].mxu0
        %v4152 = vadd.f32 0.0, %v4151
        %4153 = vdwg.mxu0
        %4154 = vmatprep.subr.mxu0 %v4019
        %4155 = vmatpush1.msra.mxu0 %v4018
        %4156 = vmatprep.subr.mxu0 %v4023
        %4157 = vmatpush1.msra.mxu0 %v4022
        %4158 = vmatprep.subr.mxu0 %v4027
        %4159 = vmatpush1.msra.mxu0 %v4026
        %4160 = vmatprep.subr.mxu0 %v4031
        %4161 = vmatpush1.msra.mxu0 %v4030
        %4162 = vmatprep.subr.mxu0 %v4035
        %4163 = vmatpush1.msra.mxu0 %v4034
        %4164 = vmatprep.subr.mxu0 %v4039
        %4165 = vmatpush1.msra.mxu0 %v4038
        %4166 = vmatprep.subr.mxu0 %v4043
        %4167 = vmatpush1.msra.mxu0 %v4042
        %4168 = vmatprep.subr.mxu0 %v4047
        %4169 = vmatpush1.msra.mxu0 %v4046
        %4170 = vmatprep.subr.mxu0 %v4051
        %4171 = vmatpush1.msra.mxu0 %v4050
        %4172 = vmatprep.subr.mxu0 0.0
        %4173 = vmatpush1.msra.mxu0 0.0
        %4174 = vmatprep.subr.mxu0 0.0
        %4175 = vmatpush1.msra.mxu0 0.0
        %4176 = vmatprep.subr.mxu0 0.0
        %4177 = vmatpush1.msra.mxu0 0.0
        %4178 = vmatprep.subr.mxu0 0.0
        %4179 = vmatpush1.msra.mxu0 0.0
        %4180 = vmatprep.subr.mxu0 0.0
        %4181 = vmatpush1.msra.mxu0 0.0
        %4182 = vmatprep.subr.mxu0 0.0
        %4183 = vmatpush1.msra.mxu0 0.0
        %4184 = vmatprep.subr.mxu0 0.0
        %4185 = vmatpush1.msra.mxu0 0.0
        %4186 = vmatprep.subr.mxu0 0.0
        %4187 = vmatpush1.msra.mxu0 0.0
        %4188 = vmatprep.subr.mxu0 0.0
        %4189 = vmatpush1.msra.mxu0 0.0
        %4190 = vmatprep.subr.mxu0 0.0
        %4191 = vmatpush1.msra.mxu0 0.0
        %4192 = vmatprep.subr.mxu0 0.0
        %4193 = vmatpush1.msra.mxu0 0.0
        %4194 = vmatprep.subr.mxu0 0.0
        %4195 = vmatpush1.msra.mxu0 0.0
        %4196 = vmatprep.subr.mxu0 0.0
        %4197 = vmatpush1.msra.mxu0 0.0
        %4198 = vmatprep.subr.mxu0 0.0
        %4199 = vmatpush1.msra.mxu0 0.0
        %4200 = vmatprep.subr.mxu0 0.0
        %4201 = vmatpush1.msra.mxu0 0.0
        %4202 = vmatprep.subr.mxu0 0.0
        %4203 = vmatpush1.msra.mxu0 0.0
        %4204 = vmatprep.subr.mxu0 0.0
        %4205 = vmatpush1.msra.mxu0 0.0
        %4206 = vmatprep.subr.mxu0 0.0
        %4207 = vmatpush1.msra.mxu0 0.0
        %4208 = vmatprep.subr.mxu0 0.0
        %4209 = vmatpush1.msra.mxu0 0.0
        %4210 = vmatprep.subr.mxu0 0.0
        %4211 = vmatpush1.msra.mxu0 0.0
        %4212 = vmatprep.subr.mxu0 0.0
        %4213 = vmatpush1.msra.mxu0 0.0
        %4214 = vmatprep.subr.mxu0 0.0
        %4215 = vmatpush1.msra.mxu0 0.0
        %4216 = vmatprep.subr.mxu0 0.0
        %4217 = vmatpush1.msra.mxu0 0.0
        %4218 = vmatprep.mubr.f32.mxu0 0.0
        %4219 = vmatmul.mubr.f32.gmra.mrb[0].mxu0 %v4054
        %v4220 = vpop.f32.mrb[0].mxu0
        %v4221 = vadd.f32 0.0, %v4220
        %v4222 = vpop.f32.mrb[0].mxu0
        %v4223 = vadd.f32 0.0, %v4222
        %4224 = vmatprep.mubr.f32.mxu0 0.0
        %4225 = vmatmul.mubr.f32.gmra.mrb[0].mxu0 %v4057
        %v4226 = vpop.f32.mrb[0].mxu0
        %v4227 = vadd.f32 0.0, %v4226
        %v4228 = vpop.f32.mrb[0].mxu0
        %v4229 = vadd.f32 0.0, %v4228
        %4230 = vmatprep.mubr.f32.mxu0 0.0
        %4231 = vmatmul.mubr.f32.gmra.mrb[0].mxu0 %v4060
        %v4232 = vpop.f32.mrb[0].mxu0
        %v4233 = vadd.f32 0.0, %v4232
        %v4234 = vpop.f32.mrb[0].mxu0
        %v4235 = vadd.f32 0.0, %v4234
        %4236 = vmatprep.mubr.f32.mxu0 0.0
        %4237 = vmatmul.mubr.f32.gmra.mrb[0].mxu0 %v4063
        %v4238 = vpop.f32.mrb[0].mxu0
        %v4239 = vadd.f32 0.0, %v4238
        %v4240 = vpop.f32.mrb[0].mxu0
        %v4241 = vadd.f32 0.0, %v4240
        %4242 = vdwg.mxu0
        %v4243 = vand.u32 2147483647, %v4132
        %vm4244 = vcmp.le.f32.partialorder %v4243, 0.7853982
        %vm4245 = vcmp.lt.s32.totalorder %v4132, 0
        %v4246 = vand.u32 %v4132, 2139095040
        %v4247 = vshrl.u32 %v4246, 23
        %v4248 = vsub.s32 %v4247, 127
        %v4249 = vand.u32 2147483647, %v4132
        %v4250 = vand.u32 %v4249, 8388607
        %v4251 = vor.u32 %v4250, 8388608
        %v4252 = vsub.s32 0, %v4251
        %v4253 = vadd.s32 %v4248, 1
        %vm4254 = vcmp.gt.s32.totalorder %v4253, 0
        %v4255 = vsel %vm4254, %v4253, 0
        %v4256 = vshrl.u32 %v4255, 5
        %v4257 = vand.u32 %v4255, 31
        %v4258 = vsub.s32 32, %v4257
        %v4259 = vshrl.u32 683565275, %v4258
        %v4260 = vshll.u32 683565275, %v4257
        %v4261 = vshrl.u32 2475754826, %v4258
        %v4262 = vor.u32 %v4260, %v4261
        %v4263 = vshll.u32 2475754826, %v4257
        %v4264 = vshrl.u32 2131351028, %v4258
        %v4265 = vor.u32 %v4263, %v4264
        %v4266 = vshll.u32 2131351028, %v4257
        %v4267 = vshrl.u32 2102212464, %v4258
        %v4268 = vor.u32 %v4266, %v4267
        %v4269 = vshll.u32 2102212464, %v4257
        %v4270 = vshrl.u32 920167782, %v4258
        %v4271 = vor.u32 %v4269, %v4270
        %v4272 = vshll.u32 920167782, %v4257
        %v4273 = vshrl.u32 1326507024, %v4258
        %v4274 = vor.u32 %v4272, %v4273
        %vm4275 = vcmp.lt.s32.totalorder %v4256, 1
        %vm4276 = vcmp.lt.s32.totalorder %v4256, 2
        %vm4277 = vcmp.lt.s32.totalorder %v4256, 3
        %vm4278 = vcmp.lt.s32.totalorder %v4256, 4
        %v4279 = vsel %vm4275, %v4259, %v4262
        %v4280 = vsel %vm4278, %v4268, 2102212464
        %v4281 = vsel %vm4277, %v4265, %v4280
        %v4282 = vsel %vm4276, %v4279, %v4281
        %v4283 = vsel %vm4275, %v4262, %v4265
        %v4284 = vsel %vm4278, %v4271, 920167782
        %v4285 = vsel %vm4277, %v4268, %v4284
        %v4286 = vsel %vm4276, %v4283, %v4285
        %v4287 = vsel %vm4275, %v4265, %v4268
        %v4288 = vsel %vm4278, %v4274, 1326507024
        %v4289 = vsel %vm4277, %v4271, %v4288
        %v4290 = vsel %vm4276, %v4287, %v4289
        %v4291 = vshll.u32 %v4251, 8
        %v4292 = vmul.u32.u64.compose %v4291, %v4290
        %v4293 = vextract.low.u32 %v4292
        %v4294 = vextract.high.u32 %v4292
        %v4295 = vmul.u32.u64.compose %v4291, %v4286
        %v4296 = vextract.low.u32 %v4295
        %v4297 = vextract.high.u32 %v4295
        %v4298 = vmul.u32 %v4291, %v4282
        %v4299 = vadd.s32 %v4294, %v4296
        %vm4300 = vc.u32 %v4294, %v4296
        %v4301 = vadd.s32 %v4297, 1
        %v4302 = vsel %vm4300, %v4301, %v4297
        %v4303 = vadd.s32 %v4298, %v4302
        %v4304 = vadd.s32 %v4303, 536870912
        %v4305 = vshrl.u32 %v4304, 30
        %v4306 = vshll.u32 %v4305, 30
        %v4307 = vsub.s32 %v4303, %v4306
        %vm4308 = vcmp.lt.s32.totalorder %v4307, 0
        %v4309 = vsub.s32 0, %v4307
        %v4310 = vsel %vm4308, %v4309, %v4307
        %v4311 = vclz %v4310
        %v4312 = vsub.s32 %v4311, 2
        %vm4313 = vcmp.gt.s32.totalorder 0, %v4312
        %v4314 = vsel %vm4313, 0, %v4312
        %v4315 = vsub.s32 32, %v4314
        %v4316 = vshll.u32 %v4307, %v4314
        %v4317 = vshrl.u32 %v4299, %v4315
        %v4318 = vor.u32 %v4316, %v4317
        %v4319 = vsub.s32 4294967266, %v4314
        %v4320 = vadd.s32 %v4319, 127
        %v4321 = vshll.u32 %v4320, 23
        %v4322 = vor.u32 4788187, %v4321
        %v4323 = vand.u32 2147483647, %v4322
        %v4325 = vcvt.s32.f32 %v4318
        %v4326 = vmul.f32 %v4325, %v4323
        %v4327 = vxor.u32 %v4326, 2147483648
        %v4328 = vsel %vm4245, %v4327, %v4326
        %v4329 = vsub.s32 4, %v4305
        %v4330 = vsel %vm4245, %v4329, %v4305
        %v4331 = vsel %vm4244, %v4132, %v4328
        %v4332 = vsel %vm4244, 0, %v4330
        %v4333 = vcosq.f32.pop %v4331
        %v4334 = vsinq.f32.pop %v4331
        %vm4335 = vweird.f32 %v4132
        %v4336 = vadd.s32 %v4332, 3
        %v4337 = vand.u32 %v4336, 3
        %vm4338 = vcmp.lt.s32.totalorder %v4337, 2
        %vm4339 = vcmp.eq.s32.totalorder %v4337, 0
        %v4340 = vxor.u32 %v4334, 2147483648
        %v4341 = vsel %vm4339, %v4333, %v4340
        %vm4342 = vcmp.eq.s32.totalorder %v4337, 2
        %v4343 = vxor.u32 %v4333, 2147483648
        %v4344 = vsel %vm4342, %v4343, %v4334
        %v4345 = vsel %vm4338, %v4341, %v4344
        %v4346 = vsel %vm4335, nan, %v4345
        %v4347 = vand.u32 2147483647, %v4134
        %vm4348 = vcmp.le.f32.partialorder %v4347, 0.7853982
        %vm4349 = vcmp.lt.s32.totalorder %v4134, 0
        %v4350 = vand.u32 %v4134, 2139095040
        %v4351 = vshrl.u32 %v4350, 23
        %v4352 = vsub.s32 %v4351, 127
        %v4353 = vand.u32 2147483647, %v4134
        %v4354 = vand.u32 %v4353, 8388607
        %v4355 = vor.u32 %v4354, 8388608
        %v4356 = vsub.s32 0, %v4355
        %v4357 = vadd.s32 %v4352, 1
        %vm4358 = vcmp.gt.s32.totalorder %v4357, 0
        %v4359 = vsel %vm4358, %v4357, 0
        %v4360 = vshrl.u32 %v4359, 5
        %v4361 = vand.u32 %v4359, 31
        %v4362 = vsub.s32 32, %v4361
        %v4363 = vshrl.u32 683565275, %v4362
        %v4364 = vshll.u32 683565275, %v4361
        %v4365 = vshrl.u32 2475754826, %v4362
        %v4366 = vor.u32 %v4364, %v4365
        %v4367 = vshll.u32 2475754826, %v4361
        %v4368 = vshrl.u32 2131351028, %v4362
        %v4369 = vor.u32 %v4367, %v4368
        %v4370 = vshll.u32 2131351028, %v4361
        %v4371 = vshrl.u32 2102212464, %v4362
        %v4372 = vor.u32 %v4370, %v4371
        %v4373 = vshll.u32 2102212464, %v4361
        %v4374 = vshrl.u32 920167782, %v4362
        %v4375 = vor.u32 %v4373, %v4374
        %v4376 = vshll.u32 920167782, %v4361
        %v4377 = vshrl.u32 1326507024, %v4362
        %v4378 = vor.u32 %v4376, %v4377
        %vm4379 = vcmp.lt.s32.totalorder %v4360, 1
        %vm4380 = vcmp.lt.s32.totalorder %v4360, 2
        %vm4381 = vcmp.lt.s32.totalorder %v4360, 3
        %vm4382 = vcmp.lt.s32.totalorder %v4360, 4
        %v4383 = vsel %vm4379, %v4363, %v4366
        %v4384 = vsel %vm4382, %v4372, 2102212464
        %v4385 = vsel %vm4381, %v4369, %v4384
        %v4386 = vsel %vm4380, %v4383, %v4385
        %v4387 = vsel %vm4379, %v4366, %v4369
        %v4388 = vsel %vm4382, %v4375, 920167782
        %v4389 = vsel %vm4381, %v4372, %v4388
        %v4390 = vsel %vm4380, %v4387, %v4389
        %v4391 = vsel %vm4379, %v4369, %v4372
        %v4392 = vsel %vm4382, %v4378, 1326507024
        %v4393 = vsel %vm4381, %v4375, %v4392
        %v4394 = vsel %vm4380, %v4391, %v4393
        %v4395 = vshll.u32 %v4355, 8
        %v4396 = vmul.u32.u64.compose %v4395, %v4394
        %v4397 = vextract.low.u32 %v4396
        %v4398 = vextract.high.u32 %v4396
        %v4399 = vmul.u32.u64.compose %v4395, %v4390
        %v4400 = vextract.low.u32 %v4399
        %v4401 = vextract.high.u32 %v4399
        %v4402 = vmul.u32 %v4395, %v4386
        %v4403 = vadd.s32 %v4398, %v4400
        %vm4404 = vc.u32 %v4398, %v4400
        %v4405 = vadd.s32 %v4401, 1
        %v4406 = vsel %vm4404, %v4405, %v4401
        %v4407 = vadd.s32 %v4402, %v4406
        %v4408 = vadd.s32 %v4407, 536870912
        %v4409 = vshrl.u32 %v4408, 30
        %v4410 = vshll.u32 %v4409, 30
        %v4411 = vsub.s32 %v4407, %v4410
        %vm4412 = vcmp.lt.s32.totalorder %v4411, 0
        %v4413 = vsub.s32 0, %v4411
        %v4414 = vsel %vm4412, %v4413, %v4411
        %v4415 = vclz %v4414
        %v4416 = vsub.s32 %v4415, 2
        %vm4417 = vcmp.gt.s32.totalorder 0, %v4416
        %v4418 = vsel %vm4417, 0, %v4416
        %v4419 = vsub.s32 32, %v4418
        %v4420 = vshll.u32 %v4411, %v4418
        %v4421 = vshrl.u32 %v4403, %v4419
        %v4422 = vor.u32 %v4420, %v4421
        %v4423 = vsub.s32 4294967266, %v4418
        %v4424 = vadd.s32 %v4423, 127
        %v4425 = vshll.u32 %v4424, 23
        %v4426 = vor.u32 4788187, %v4425
        %v4427 = vand.u32 2147483647, %v4426
        %v4429 = vcvt.s32.f32 %v4422
        %v4430 = vmul.f32 %v4429, %v4427
        %v4431 = vxor.u32 %v4430, 2147483648
        %v4432 = vsel %vm4349, %v4431, %v4430
        %v4433 = vsub.s32 4, %v4409
        %v4434 = vsel %vm4349, %v4433, %v4409
        %v4435 = vsel %vm4348, %v4134, %v4432
        %v4436 = vsel %vm4348, 0, %v4434
        %v4437 = vcosq.f32.pop %v4435
        %v4438 = vsinq.f32.pop %v4435
        %vm4439 = vweird.f32 %v4134
        %v4440 = vadd.s32 %v4436, 3
        %v4441 = vand.u32 %v4440, 3
        %vm4442 = vcmp.lt.s32.totalorder %v4441, 2
        %vm4443 = vcmp.eq.s32.totalorder %v4441, 0
        %v4444 = vxor.u32 %v4438, 2147483648
        %v4445 = vsel %vm4443, %v4437, %v4444
        %vm4446 = vcmp.eq.s32.totalorder %v4441, 2
        %v4447 = vxor.u32 %v4437, 2147483648
        %v4448 = vsel %vm4446, %v4447, %v4438
        %v4449 = vsel %vm4442, %v4445, %v4448
        %v4450 = vsel %vm4439, nan, %v4449
        %v4451 = vand.u32 2147483647, %v4221
        %vm4452 = vcmp.le.f32.partialorder %v4451, 0.7853982
        %vm4453 = vcmp.lt.s32.totalorder %v4221, 0
        %v4454 = vand.u32 %v4221, 2139095040
        %v4455 = vshrl.u32 %v4454, 23
        %v4456 = vsub.s32 %v4455, 127
        %v4457 = vand.u32 2147483647, %v4221
        %v4458 = vand.u32 %v4457, 8388607
        %v4459 = vor.u32 %v4458, 8388608
        %v4460 = vsub.s32 0, %v4459
        %v4461 = vadd.s32 %v4456, 1
        %vm4462 = vcmp.gt.s32.totalorder %v4461, 0
        %v4463 = vsel %vm4462, %v4461, 0
        %v4464 = vshrl.u32 %v4463, 5
        %v4465 = vand.u32 %v4463, 31
        %v4466 = vsub.s32 32, %v4465
        %v4467 = vshrl.u32 683565275, %v4466
        %v4468 = vshll.u32 683565275, %v4465
        %v4469 = vshrl.u32 2475754826, %v4466
        %v4470 = vor.u32 %v4468, %v4469
        %v4471 = vshll.u32 2475754826, %v4465
        %v4472 = vshrl.u32 2131351028, %v4466
        %v4473 = vor.u32 %v4471, %v4472
        %v4474 = vshll.u32 2131351028, %v4465
        %v4475 = vshrl.u32 2102212464, %v4466
        %v4476 = vor.u32 %v4474, %v4475
        %v4477 = vshll.u32 2102212464, %v4465
        %v4478 = vshrl.u32 920167782, %v4466
        %v4479 = vor.u32 %v4477, %v4478
        %v4480 = vshll.u32 920167782, %v4465
        %v4481 = vshrl.u32 1326507024, %v4466
        %v4482 = vor.u32 %v4480, %v4481
        %vm4483 = vcmp.lt.s32.totalorder %v4464, 1
        %vm4484 = vcmp.lt.s32.totalorder %v4464, 2
        %vm4485 = vcmp.lt.s32.totalorder %v4464, 3
        %vm4486 = vcmp.lt.s32.totalorder %v4464, 4
        %v4487 = vsel %vm4483, %v4467, %v4470
        %v4488 = vsel %vm4486, %v4476, 2102212464
        %v4489 = vsel %vm4485, %v4473, %v4488
        %v4490 = vsel %vm4484, %v4487, %v4489
        %v4491 = vsel %vm4483, %v4470, %v4473
        %v4492 = vsel %vm4486, %v4479, 920167782
        %v4493 = vsel %vm4485, %v4476, %v4492
        %v4494 = vsel %vm4484, %v4491, %v4493
        %v4495 = vsel %vm4483, %v4473, %v4476
        %v4496 = vsel %vm4486, %v4482, 1326507024
        %v4497 = vsel %vm4485, %v4479, %v4496
        %v4498 = vsel %vm4484, %v4495, %v4497
        %v4499 = vshll.u32 %v4459, 8
        %v4500 = vmul.u32.u64.compose %v4499, %v4498
        %v4501 = vextract.low.u32 %v4500
        %v4502 = vextract.high.u32 %v4500
        %v4503 = vmul.u32.u64.compose %v4499, %v4494
        %v4504 = vextract.low.u32 %v4503
        %v4505 = vextract.high.u32 %v4503
        %v4506 = vmul.u32 %v4499, %v4490
        %v4507 = vadd.s32 %v4502, %v4504
        %vm4508 = vc.u32 %v4502, %v4504
        %v4509 = vadd.s32 %v4505, 1
        %v4510 = vsel %vm4508, %v4509, %v4505
        %v4511 = vadd.s32 %v4506, %v4510
        %v4512 = vadd.s32 %v4511, 536870912
        %v4513 = vshrl.u32 %v4512, 30
        %v4514 = vshll.u32 %v4513, 30
        %v4515 = vsub.s32 %v4511, %v4514
        %vm4516 = vcmp.lt.s32.totalorder %v4515, 0
        %v4517 = vsub.s32 0, %v4515
        %v4518 = vsel %vm4516, %v4517, %v4515
        %v4519 = vclz %v4518
        %v4520 = vsub.s32 %v4519, 2
        %vm4521 = vcmp.gt.s32.totalorder 0, %v4520
        %v4522 = vsel %vm4521, 0, %v4520
        %v4523 = vsub.s32 32, %v4522
        %v4524 = vshll.u32 %v4515, %v4522
        %v4525 = vshrl.u32 %v4507, %v4523
        %v4526 = vor.u32 %v4524, %v4525
        %v4527 = vsub.s32 4294967266, %v4522
        %v4528 = vadd.s32 %v4527, 127
        %v4529 = vshll.u32 %v4528, 23
        %v4530 = vor.u32 4788187, %v4529
        %v4531 = vand.u32 2147483647, %v4530
        %v4533 = vcvt.s32.f32 %v4526
        %v4534 = vmul.f32 %v4533, %v4531
        %v4535 = vxor.u32 %v4534, 2147483648
        %v4536 = vsel %vm4453, %v4535, %v4534
        %v4537 = vsub.s32 4, %v4513
        %v4538 = vsel %vm4453, %v4537, %v4513
        %v4539 = vsel %vm4452, %v4221, %v4536
        %v4540 = vsel %vm4452, 0, %v4538
        %v4541 = vcosq.f32.pop %v4539
        %v4542 = vsinq.f32.pop %v4539
        %vm4543 = vweird.f32 %v4221
        %v4544 = vadd.s32 %v4540, 3
        %v4545 = vand.u32 %v4544, 3
        %vm4546 = vcmp.lt.s32.totalorder %v4545, 2
        %vm4547 = vcmp.eq.s32.totalorder %v4545, 0
        %v4548 = vxor.u32 %v4542, 2147483648
        %v4549 = vsel %vm4547, %v4541, %v4548
        %vm4550 = vcmp.eq.s32.totalorder %v4545, 2
        %v4551 = vxor.u32 %v4541, 2147483648
        %v4552 = vsel %vm4550, %v4551, %v4542
        %v4553 = vsel %vm4546, %v4549, %v4552
        %v4554 = vsel %vm4543, nan, %v4553
        %v4555 = vand.u32 2147483647, %v4223
        %vm4556 = vcmp.le.f32.partialorder %v4555, 0.7853982
        %vm4557 = vcmp.lt.s32.totalorder %v4223, 0
        %v4558 = vand.u32 %v4223, 2139095040
        %v4559 = vshrl.u32 %v4558, 23
        %v4560 = vsub.s32 %v4559, 127
        %v4561 = vand.u32 2147483647, %v4223
        %v4562 = vand.u32 %v4561, 8388607
        %v4563 = vor.u32 %v4562, 8388608
        %v4564 = vsub.s32 0, %v4563
        %v4565 = vadd.s32 %v4560, 1
        %vm4566 = vcmp.gt.s32.totalorder %v4565, 0
        %v4567 = vsel %vm4566, %v4565, 0
        %v4568 = vshrl.u32 %v4567, 5
        %v4569 = vand.u32 %v4567, 31
        %v4570 = vsub.s32 32, %v4569
        %v4571 = vshrl.u32 683565275, %v4570
        %v4572 = vshll.u32 683565275, %v4569
        %v4573 = vshrl.u32 2475754826, %v4570
        %v4574 = vor.u32 %v4572, %v4573
        %v4575 = vshll.u32 2475754826, %v4569
        %v4576 = vshrl.u32 2131351028, %v4570
        %v4577 = vor.u32 %v4575, %v4576
        %v4578 = vshll.u32 2131351028, %v4569
        %v4579 = vshrl.u32 2102212464, %v4570
        %v4580 = vor.u32 %v4578, %v4579
        %v4581 = vshll.u32 2102212464, %v4569
        %v4582 = vshrl.u32 920167782, %v4570
        %v4583 = vor.u32 %v4581, %v4582
        %v4584 = vshll.u32 920167782, %v4569
        %v4585 = vshrl.u32 1326507024, %v4570
        %v4586 = vor.u32 %v4584, %v4585
        %vm4587 = vcmp.lt.s32.totalorder %v4568, 1
        %vm4588 = vcmp.lt.s32.totalorder %v4568, 2
        %vm4589 = vcmp.lt.s32.totalorder %v4568, 3
        %vm4590 = vcmp.lt.s32.totalorder %v4568, 4
        %v4591 = vsel %vm4587, %v4571, %v4574
        %v4592 = vsel %vm4590, %v4580, 2102212464
        %v4593 = vsel %vm4589, %v4577, %v4592
        %v4594 = vsel %vm4588, %v4591, %v4593
        %v4595 = vsel %vm4587, %v4574, %v4577
        %v4596 = vsel %vm4590, %v4583, 920167782
        %v4597 = vsel %vm4589, %v4580, %v4596
        %v4598 = vsel %vm4588, %v4595, %v4597
        %v4599 = vsel %vm4587, %v4577, %v4580
        %v4600 = vsel %vm4590, %v4586, 1326507024
        %v4601 = vsel %vm4589, %v4583, %v4600
        %v4602 = vsel %vm4588, %v4599, %v4601
        %v4603 = vshll.u32 %v4563, 8
        %v4604 = vmul.u32.u64.compose %v4603, %v4602
        %v4605 = vextract.low.u32 %v4604
        %v4606 = vextract.high.u32 %v4604
        %v4607 = vmul.u32.u64.compose %v4603, %v4598
        %v4608 = vextract.low.u32 %v4607
        %v4609 = vextract.high.u32 %v4607
        %v4610 = vmul.u32 %v4603, %v4594
        %v4611 = vadd.s32 %v4606, %v4608
        %vm4612 = vc.u32 %v4606, %v4608
        %v4613 = vadd.s32 %v4609, 1
        %v4614 = vsel %vm4612, %v4613, %v4609
        %v4615 = vadd.s32 %v4610, %v4614
        %v4616 = vadd.s32 %v4615, 536870912
        %v4617 = vshrl.u32 %v4616, 30
        %v4618 = vshll.u32 %v4617, 30
        %v4619 = vsub.s32 %v4615, %v4618
        %vm4620 = vcmp.lt.s32.totalorder %v4619, 0
        %v4621 = vsub.s32 0, %v4619
        %v4622 = vsel %vm4620, %v4621, %v4619
        %v4623 = vclz %v4622
        %v4624 = vsub.s32 %v4623, 2
        %vm4625 = vcmp.gt.s32.totalorder 0, %v4624
        %v4626 = vsel %vm4625, 0, %v4624
        %v4627 = vsub.s32 32, %v4626
        %v4628 = vshll.u32 %v4619, %v4626
        %v4629 = vshrl.u32 %v4611, %v4627
        %v4630 = vor.u32 %v4628, %v4629
        %v4631 = vsub.s32 4294967266, %v4626
        %v4632 = vadd.s32 %v4631, 127
        %v4633 = vshll.u32 %v4632, 23
        %v4634 = vor.u32 4788187, %v4633
        %v4635 = vand.u32 2147483647, %v4634
        %v4637 = vcvt.s32.f32 %v4630
        %v4638 = vmul.f32 %v4637, %v4635
        %v4639 = vxor.u32 %v4638, 2147483648
        %v4640 = vsel %vm4557, %v4639, %v4638
        %v4641 = vsub.s32 4, %v4617
        %v4642 = vsel %vm4557, %v4641, %v4617
        %v4643 = vsel %vm4556, %v4223, %v4640
        %v4644 = vsel %vm4556, 0, %v4642
        %v4645 = vcosq.f32.pop %v4643
        %v4646 = vsinq.f32.pop %v4643
        %vm4647 = vweird.f32 %v4223
        %v4648 = vadd.s32 %v4644, 3
        %v4649 = vand.u32 %v4648, 3
        %vm4650 = vcmp.lt.s32.totalorder %v4649, 2
        %vm4651 = vcmp.eq.s32.totalorder %v4649, 0
        %v4652 = vxor.u32 %v4646, 2147483648
        %v4653 = vsel %vm4651, %v4645, %v4652
        %vm4654 = vcmp.eq.s32.totalorder %v4649, 2
        %v4655 = vxor.u32 %v4645, 2147483648
        %v4656 = vsel %vm4654, %v4655, %v4646
        %v4657 = vsel %vm4650, %v4653, %v4656
        %v4658 = vsel %vm4647, nan, %v4657
        %v4659 = vand.u32 2147483647, %v4138
        %vm4660 = vcmp.le.f32.partialorder %v4659, 0.7853982
        %vm4661 = vcmp.lt.s32.totalorder %v4138, 0
        %v4662 = vand.u32 %v4138, 2139095040
        %v4663 = vshrl.u32 %v4662, 23
        %v4664 = vsub.s32 %v4663, 127
        %v4665 = vand.u32 2147483647, %v4138
        %v4666 = vand.u32 %v4665, 8388607
        %v4667 = vor.u32 %v4666, 8388608
        %v4668 = vsub.s32 0, %v4667
        %v4669 = vadd.s32 %v4664, 1
        %vm4670 = vcmp.gt.s32.totalorder %v4669, 0
        %v4671 = vsel %vm4670, %v4669, 0
        %v4672 = vshrl.u32 %v4671, 5
        %v4673 = vand.u32 %v4671, 31
        %v4674 = vsub.s32 32, %v4673
        %v4675 = vshrl.u32 683565275, %v4674
        %v4676 = vshll.u32 683565275, %v4673
        %v4677 = vshrl.u32 2475754826, %v4674
        %v4678 = vor.u32 %v4676, %v4677
        %v4679 = vshll.u32 2475754826, %v4673
        %v4680 = vshrl.u32 2131351028, %v4674
        %v4681 = vor.u32 %v4679, %v4680
        %v4682 = vshll.u32 2131351028, %v4673
        %v4683 = vshrl.u32 2102212464, %v4674
        %v4684 = vor.u32 %v4682, %v4683
        %v4685 = vshll.u32 2102212464, %v4673
        %v4686 = vshrl.u32 920167782, %v4674
        %v4687 = vor.u32 %v4685, %v4686
        %v4688 = vshll.u32 920167782, %v4673
        %v4689 = vshrl.u32 1326507024, %v4674
        %v4690 = vor.u32 %v4688, %v4689
        %vm4691 = vcmp.lt.s32.totalorder %v4672, 1
        %vm4692 = vcmp.lt.s32.totalorder %v4672, 2
        %vm4693 = vcmp.lt.s32.totalorder %v4672, 3
        %vm4694 = vcmp.lt.s32.totalorder %v4672, 4
        %v4695 = vsel %vm4691, %v4675, %v4678
        %v4696 = vsel %vm4694, %v4684, 2102212464
        %v4697 = vsel %vm4693, %v4681, %v4696
        %v4698 = vsel %vm4692, %v4695, %v4697
        %v4699 = vsel %vm4691, %v4678, %v4681
        %v4700 = vsel %vm4694, %v4687, 920167782
        %v4701 = vsel %vm4693, %v4684, %v4700
        %v4702 = vsel %vm4692, %v4699, %v4701
        %v4703 = vsel %vm4691, %v4681, %v4684
        %v4704 = vsel %vm4694, %v4690, 1326507024
        %v4705 = vsel %vm4693, %v4687, %v4704
        %v4706 = vsel %vm4692, %v4703, %v4705
        %v4707 = vshll.u32 %v4667, 8
        %v4708 = vmul.u32.u64.compose %v4707, %v4706
        %v4709 = vextract.low.u32 %v4708
        %v4710 = vextract.high.u32 %v4708
        %v4711 = vmul.u32.u64.compose %v4707, %v4702
        %v4712 = vextract.low.u32 %v4711
        %v4713 = vextract.high.u32 %v4711
        %v4714 = vmul.u32 %v4707, %v4698
        %v4715 = vadd.s32 %v4710, %v4712
        %vm4716 = vc.u32 %v4710, %v4712
        %v4717 = vadd.s32 %v4713, 1
        %v4718 = vsel %vm4716, %v4717, %v4713
        %v4719 = vadd.s32 %v4714, %v4718
        %v4720 = vadd.s32 %v4719, 536870912
        %v4721 = vshrl.u32 %v4720, 30
        %v4722 = vshll.u32 %v4721, 30
        %v4723 = vsub.s32 %v4719, %v4722
        %vm4724 = vcmp.lt.s32.totalorder %v4723, 0
        %v4725 = vsub.s32 0, %v4723
        %v4726 = vsel %vm4724, %v4725, %v4723
        %v4727 = vclz %v4726
        %v4728 = vsub.s32 %v4727, 2
        %vm4729 = vcmp.gt.s32.totalorder 0, %v4728
        %v4730 = vsel %vm4729, 0, %v4728
        %v4731 = vsub.s32 32, %v4730
        %v4732 = vshll.u32 %v4723, %v4730
        %v4733 = vshrl.u32 %v4715, %v4731
        %v4734 = vor.u32 %v4732, %v4733
        %v4735 = vsub.s32 4294967266, %v4730
        %v4736 = vadd.s32 %v4735, 127
        %v4737 = vshll.u32 %v4736, 23
        %v4738 = vor.u32 4788187, %v4737
        %v4739 = vand.u32 2147483647, %v4738
        %v4741 = vcvt.s32.f32 %v4734
        %v4742 = vmul.f32 %v4741, %v4739
        %v4743 = vxor.u32 %v4742, 2147483648
        %v4744 = vsel %vm4661, %v4743, %v4742
        %v4745 = vsub.s32 4, %v4721
        %v4746 = vsel %vm4661, %v4745, %v4721
        %v4747 = vsel %vm4660, %v4138, %v4744
        %v4748 = vsel %vm4660, 0, %v4746
        %v4749 = vcosq.f32.pop %v4747
        %v4750 = vsinq.f32.pop %v4747
        %vm4751 = vweird.f32 %v4138
        %v4752 = vadd.s32 %v4748, 3
        %v4753 = vand.u32 %v4752, 3
        %vm4754 = vcmp.lt.s32.totalorder %v4753, 2
        %vm4755 = vcmp.eq.s32.totalorder %v4753, 0
        %v4756 = vxor.u32 %v4750, 2147483648
        %v4757 = vsel %vm4755, %v4749, %v4756
        %vm4758 = vcmp.eq.s32.totalorder %v4753, 2
        %v4759 = vxor.u32 %v4749, 2147483648
        %v4760 = vsel %vm4758, %v4759, %v4750
        %v4761 = vsel %vm4754, %v4757, %v4760
        %v4762 = vsel %vm4751, nan, %v4761
        %v4763 = vand.u32 2147483647, %v4140
        %vm4764 = vcmp.le.f32.partialorder %v4763, 0.7853982
        %vm4765 = vcmp.lt.s32.totalorder %v4140, 0
        %v4766 = vand.u32 %v4140, 2139095040
        %v4767 = vshrl.u32 %v4766, 23
        %v4768 = vsub.s32 %v4767, 127
        %v4769 = vand.u32 2147483647, %v4140
        %v4770 = vand.u32 %v4769, 8388607
        %v4771 = vor.u32 %v4770, 8388608
        %v4772 = vsub.s32 0, %v4771
        %v4773 = vadd.s32 %v4768, 1
        %vm4774 = vcmp.gt.s32.totalorder %v4773, 0
        %v4775 = vsel %vm4774, %v4773, 0
        %v4776 = vshrl.u32 %v4775, 5
        %v4777 = vand.u32 %v4775, 31
        %v4778 = vsub.s32 32, %v4777
        %v4779 = vshrl.u32 683565275, %v4778
        %v4780 = vshll.u32 683565275, %v4777
        %v4781 = vshrl.u32 2475754826, %v4778
        %v4782 = vor.u32 %v4780, %v4781
        %v4783 = vshll.u32 2475754826, %v4777
        %v4784 = vshrl.u32 2131351028, %v4778
        %v4785 = vor.u32 %v4783, %v4784
        %v4786 = vshll.u32 2131351028, %v4777
        %v4787 = vshrl.u32 2102212464, %v4778
        %v4788 = vor.u32 %v4786, %v4787
        %v4789 = vshll.u32 2102212464, %v4777
        %v4790 = vshrl.u32 920167782, %v4778
        %v4791 = vor.u32 %v4789, %v4790
        %v4792 = vshll.u32 920167782, %v4777
        %v4793 = vshrl.u32 1326507024, %v4778
        %v4794 = vor.u32 %v4792, %v4793
        %vm4795 = vcmp.lt.s32.totalorder %v4776, 1
        %vm4796 = vcmp.lt.s32.totalorder %v4776, 2
        %vm4797 = vcmp.lt.s32.totalorder %v4776, 3
        %vm4798 = vcmp.lt.s32.totalorder %v4776, 4
        %v4799 = vsel %vm4795, %v4779, %v4782
        %v4800 = vsel %vm4798, %v4788, 2102212464
        %v4801 = vsel %vm4797, %v4785, %v4800
        %v4802 = vsel %vm4796, %v4799, %v4801
        %v4803 = vsel %vm4795, %v4782, %v4785
        %v4804 = vsel %vm4798, %v4791, 920167782
        %v4805 = vsel %vm4797, %v4788, %v4804
        %v4806 = vsel %vm4796, %v4803, %v4805
        %v4807 = vsel %vm4795, %v4785, %v4788
        %v4808 = vsel %vm4798, %v4794, 1326507024
        %v4809 = vsel %vm4797, %v4791, %v4808
        %v4810 = vsel %vm4796, %v4807, %v4809
        %v4811 = vshll.u32 %v4771, 8
        %v4812 = vmul.u32.u64.compose %v4811, %v4810
        %v4813 = vextract.low.u32 %v4812
        %v4814 = vextract.high.u32 %v4812
        %v4815 = vmul.u32.u64.compose %v4811, %v4806
        %v4816 = vextract.low.u32 %v4815
        %v4817 = vextract.high.u32 %v4815
        %v4818 = vmul.u32 %v4811, %v4802
        %v4819 = vadd.s32 %v4814, %v4816
        %vm4820 = vc.u32 %v4814, %v4816
        %v4821 = vadd.s32 %v4817, 1
        %v4822 = vsel %vm4820, %v4821, %v4817
        %v4823 = vadd.s32 %v4818, %v4822
        %v4824 = vadd.s32 %v4823, 536870912
        %v4825 = vshrl.u32 %v4824, 30
        %v4826 = vshll.u32 %v4825, 30
        %v4827 = vsub.s32 %v4823, %v4826
        %vm4828 = vcmp.lt.s32.totalorder %v4827, 0
        %v4829 = vsub.s32 0, %v4827
        %v4830 = vsel %vm4828, %v4829, %v4827
        %v4831 = vclz %v4830
        %v4832 = vsub.s32 %v4831, 2
        %vm4833 = vcmp.gt.s32.totalorder 0, %v4832
        %v4834 = vsel %vm4833, 0, %v4832
        %v4835 = vsub.s32 32, %v4834
        %v4836 = vshll.u32 %v4827, %v4834
        %v4837 = vshrl.u32 %v4819, %v4835
        %v4838 = vor.u32 %v4836, %v4837
        %v4839 = vsub.s32 4294967266, %v4834
        %v4840 = vadd.s32 %v4839, 127
        %v4841 = vshll.u32 %v4840, 23
        %v4842 = vor.u32 4788187, %v4841
        %v4843 = vand.u32 2147483647, %v4842
        %v4845 = vcvt.s32.f32 %v4838
        %v4846 = vmul.f32 %v4845, %v4843
        %v4847 = vxor.u32 %v4846, 2147483648
        %v4848 = vsel %vm4765, %v4847, %v4846
        %v4849 = vsub.s32 4, %v4825
        %v4850 = vsel %vm4765, %v4849, %v4825
        %v4851 = vsel %vm4764, %v4140, %v4848
        %v4852 = vsel %vm4764, 0, %v4850
        %v4853 = vcosq.f32.pop %v4851
        %v4854 = vsinq.f32.pop %v4851
        %vm4855 = vweird.f32 %v4140
        %v4856 = vadd.s32 %v4852, 3
        %v4857 = vand.u32 %v4856, 3
        %vm4858 = vcmp.lt.s32.totalorder %v4857, 2
        %vm4859 = vcmp.eq.s32.totalorder %v4857, 0
        %v4860 = vxor.u32 %v4854, 2147483648
        %v4861 = vsel %vm4859, %v4853, %v4860
        %vm4862 = vcmp.eq.s32.totalorder %v4857, 2
        %v4863 = vxor.u32 %v4853, 2147483648
        %v4864 = vsel %vm4862, %v4863, %v4854
        %v4865 = vsel %vm4858, %v4861, %v4864
        %v4866 = vsel %vm4855, nan, %v4865
        %v4867 = vand.u32 2147483647, %v4227
        %vm4868 = vcmp.le.f32.partialorder %v4867, 0.7853982
        %vm4869 = vcmp.lt.s32.totalorder %v4227, 0
        %v4870 = vand.u32 %v4227, 2139095040
        %v4871 = vshrl.u32 %v4870, 23
        %v4872 = vsub.s32 %v4871, 127
        %v4873 = vand.u32 2147483647, %v4227
        %v4874 = vand.u32 %v4873, 8388607
        %v4875 = vor.u32 %v4874, 8388608
        %v4876 = vsub.s32 0, %v4875
        %v4877 = vadd.s32 %v4872, 1
        %vm4878 = vcmp.gt.s32.totalorder %v4877, 0
        %v4879 = vsel %vm4878, %v4877, 0
        %v4880 = vshrl.u32 %v4879, 5
        %v4881 = vand.u32 %v4879, 31
        %v4882 = vsub.s32 32, %v4881
        %v4883 = vshrl.u32 683565275, %v4882
        %v4884 = vshll.u32 683565275, %v4881
        %v4885 = vshrl.u32 2475754826, %v4882
        %v4886 = vor.u32 %v4884, %v4885
        %v4887 = vshll.u32 2475754826, %v4881
        %v4888 = vshrl.u32 2131351028, %v4882
        %v4889 = vor.u32 %v4887, %v4888
        %v4890 = vshll.u32 2131351028, %v4881
        %v4891 = vshrl.u32 2102212464, %v4882
        %v4892 = vor.u32 %v4890, %v4891
        %v4893 = vshll.u32 2102212464, %v4881
        %v4894 = vshrl.u32 920167782, %v4882
        %v4895 = vor.u32 %v4893, %v4894
        %v4896 = vshll.u32 920167782, %v4881
        %v4897 = vshrl.u32 1326507024, %v4882
        %v4898 = vor.u32 %v4896, %v4897
        %vm4899 = vcmp.lt.s32.totalorder %v4880, 1
        %vm4900 = vcmp.lt.s32.totalorder %v4880, 2
        %vm4901 = vcmp.lt.s32.totalorder %v4880, 3
        %vm4902 = vcmp.lt.s32.totalorder %v4880, 4
        %v4903 = vsel %vm4899, %v4883, %v4886
        %v4904 = vsel %vm4902, %v4892, 2102212464
        %v4905 = vsel %vm4901, %v4889, %v4904
        %v4906 = vsel %vm4900, %v4903, %v4905
        %v4907 = vsel %vm4899, %v4886, %v4889
        %v4908 = vsel %vm4902, %v4895, 920167782
        %v4909 = vsel %vm4901, %v4892, %v4908
        %v4910 = vsel %vm4900, %v4907, %v4909
        %v4911 = vsel %vm4899, %v4889, %v4892
        %v4912 = vsel %vm4902, %v4898, 1326507024
        %v4913 = vsel %vm4901, %v4895, %v4912
        %v4914 = vsel %vm4900, %v4911, %v4913
        %v4915 = vshll.u32 %v4875, 8
        %v4916 = vmul.u32.u64.compose %v4915, %v4914
        %v4917 = vextract.low.u32 %v4916
        %v4918 = vextract.high.u32 %v4916
        %v4919 = vmul.u32.u64.compose %v4915, %v4910
        %v4920 = vextract.low.u32 %v4919
        %v4921 = vextract.high.u32 %v4919
        %v4922 = vmul.u32 %v4915, %v4906
        %v4923 = vadd.s32 %v4918, %v4920
        %vm4924 = vc.u32 %v4918, %v4920
        %v4925 = vadd.s32 %v4921, 1
        %v4926 = vsel %vm4924, %v4925, %v4921
        %v4927 = vadd.s32 %v4922, %v4926
        %v4928 = vadd.s32 %v4927, 536870912
        %v4929 = vshrl.u32 %v4928, 30
        %v4930 = vshll.u32 %v4929, 30
        %v4931 = vsub.s32 %v4927, %v4930
        %vm4932 = vcmp.lt.s32.totalorder %v4931, 0
        %v4933 = vsub.s32 0, %v4931
        %v4934 = vsel %vm4932, %v4933, %v4931
        %v4935 = vclz %v4934
        %v4936 = vsub.s32 %v4935, 2
        %vm4937 = vcmp.gt.s32.totalorder 0, %v4936
        %v4938 = vsel %vm4937, 0, %v4936
        %v4939 = vsub.s32 32, %v4938
        %v4940 = vshll.u32 %v4931, %v4938
        %v4941 = vshrl.u32 %v4923, %v4939
        %v4942 = vor.u32 %v4940, %v4941
        %v4943 = vsub.s32 4294967266, %v4938
        %v4944 = vadd.s32 %v4943, 127
        %v4945 = vshll.u32 %v4944, 23
        %v4946 = vor.u32 4788187, %v4945
        %v4947 = vand.u32 2147483647, %v4946
        %v4949 = vcvt.s32.f32 %v4942
        %v4950 = vmul.f32 %v4949, %v4947
        %v4951 = vxor.u32 %v4950, 2147483648
        %v4952 = vsel %vm4869, %v4951, %v4950
        %v4953 = vsub.s32 4, %v4929
        %v4954 = vsel %vm4869, %v4953, %v4929
        %v4955 = vsel %vm4868, %v4227, %v4952
        %v4956 = vsel %vm4868, 0, %v4954
        %v4957 = vcosq.f32.pop %v4955
        %v4958 = vsinq.f32.pop %v4955
        %vm4959 = vweird.f32 %v4227
        %v4960 = vadd.s32 %v4956, 3
        %v4961 = vand.u32 %v4960, 3
        %vm4962 = vcmp.lt.s32.totalorder %v4961, 2
        %vm4963 = vcmp.eq.s32.totalorder %v4961, 0
        %v4964 = vxor.u32 %v4958, 2147483648
        %v4965 = vsel %vm4963, %v4957, %v4964
        %vm4966 = vcmp.eq.s32.totalorder %v4961, 2
        %v4967 = vxor.u32 %v4957, 2147483648
        %v4968 = vsel %vm4966, %v4967, %v4958
        %v4969 = vsel %vm4962, %v4965, %v4968
        %v4970 = vsel %vm4959, nan, %v4969
        %v4971 = vand.u32 2147483647, %v4229
        %vm4972 = vcmp.le.f32.partialorder %v4971, 0.7853982
        %vm4973 = vcmp.lt.s32.totalorder %v4229, 0
        %v4974 = vand.u32 %v4229, 2139095040
        %v4975 = vshrl.u32 %v4974, 23
        %v4976 = vsub.s32 %v4975, 127
        %v4977 = vand.u32 2147483647, %v4229
        %v4978 = vand.u32 %v4977, 8388607
        %v4979 = vor.u32 %v4978, 8388608
        %v4980 = vsub.s32 0, %v4979
        %v4981 = vadd.s32 %v4976, 1
        %vm4982 = vcmp.gt.s32.totalorder %v4981, 0
        %v4983 = vsel %vm4982, %v4981, 0
        %v4984 = vshrl.u32 %v4983, 5
        %v4985 = vand.u32 %v4983, 31
        %v4986 = vsub.s32 32, %v4985
        %v4987 = vshrl.u32 683565275, %v4986
        %v4988 = vshll.u32 683565275, %v4985
        %v4989 = vshrl.u32 2475754826, %v4986
        %v4990 = vor.u32 %v4988, %v4989
        %v4991 = vshll.u32 2475754826, %v4985
        %v4992 = vshrl.u32 2131351028, %v4986
        %v4993 = vor.u32 %v4991, %v4992
        %v4994 = vshll.u32 2131351028, %v4985
        %v4995 = vshrl.u32 2102212464, %v4986
        %v4996 = vor.u32 %v4994, %v4995
        %v4997 = vshll.u32 2102212464, %v4985
        %v4998 = vshrl.u32 920167782, %v4986
        %v4999 = vor.u32 %v4997, %v4998
        %v5000 = vshll.u32 920167782, %v4985
        %v5001 = vshrl.u32 1326507024, %v4986
        %v5002 = vor.u32 %v5000, %v5001
        %vm5003 = vcmp.lt.s32.totalorder %v4984, 1
        %vm5004 = vcmp.lt.s32.totalorder %v4984, 2
        %vm5005 = vcmp.lt.s32.totalorder %v4984, 3
        %vm5006 = vcmp.lt.s32.totalorder %v4984, 4
        %v5007 = vsel %vm5003, %v4987, %v4990
        %v5008 = vsel %vm5006, %v4996, 2102212464
        %v5009 = vsel %vm5005, %v4993, %v5008
        %v5010 = vsel %vm5004, %v5007, %v5009
        %v5011 = vsel %vm5003, %v4990, %v4993
        %v5012 = vsel %vm5006, %v4999, 920167782
        %v5013 = vsel %vm5005, %v4996, %v5012
        %v5014 = vsel %vm5004, %v5011, %v5013
        %v5015 = vsel %vm5003, %v4993, %v4996
        %v5016 = vsel %vm5006, %v5002, 1326507024
        %v5017 = vsel %vm5005, %v4999, %v5016
        %v5018 = vsel %vm5004, %v5015, %v5017
        %v5019 = vshll.u32 %v4979, 8
        %v5020 = vmul.u32.u64.compose %v5019, %v5018
        %v5021 = vextract.low.u32 %v5020
        %v5022 = vextract.high.u32 %v5020
        %v5023 = vmul.u32.u64.compose %v5019, %v5014
        %v5024 = vextract.low.u32 %v5023
        %v5025 = vextract.high.u32 %v5023
        %v5026 = vmul.u32 %v5019, %v5010
        %v5027 = vadd.s32 %v5022, %v5024
        %vm5028 = vc.u32 %v5022, %v5024
        %v5029 = vadd.s32 %v5025, 1
        %v5030 = vsel %vm5028, %v5029, %v5025
        %v5031 = vadd.s32 %v5026, %v5030
        %v5032 = vadd.s32 %v5031, 536870912
        %v5033 = vshrl.u32 %v5032, 30
        %v5034 = vshll.u32 %v5033, 30
        %v5035 = vsub.s32 %v5031, %v5034
        %vm5036 = vcmp.lt.s32.totalorder %v5035, 0
        %v5037 = vsub.s32 0, %v5035
        %v5038 = vsel %vm5036, %v5037, %v5035
        %v5039 = vclz %v5038
        %v5040 = vsub.s32 %v5039, 2
        %vm5041 = vcmp.gt.s32.totalorder 0, %v5040
        %v5042 = vsel %vm5041, 0, %v5040
        %v5043 = vsub.s32 32, %v5042
        %v5044 = vshll.u32 %v5035, %v5042
        %v5045 = vshrl.u32 %v5027, %v5043
        %v5046 = vor.u32 %v5044, %v5045
        %v5047 = vsub.s32 4294967266, %v5042
        %v5048 = vadd.s32 %v5047, 127
        %v5049 = vshll.u32 %v5048, 23
        %v5050 = vor.u32 4788187, %v5049
        %v5051 = vand.u32 2147483647, %v5050
        %v5053 = vcvt.s32.f32 %v5046
        %v5054 = vmul.f32 %v5053, %v5051
        %v5055 = vxor.u32 %v5054, 2147483648
        %v5056 = vsel %vm4973, %v5055, %v5054
        %v5057 = vsub.s32 4, %v5033
        %v5058 = vsel %vm4973, %v5057, %v5033
        %v5059 = vsel %vm4972, %v4229, %v5056
        %v5060 = vsel %vm4972, 0, %v5058
        %v5061 = vcosq.f32.pop %v5059
        %v5062 = vsinq.f32.pop %v5059
        %vm5063 = vweird.f32 %v4229
        %v5064 = vadd.s32 %v5060, 3
        %v5065 = vand.u32 %v5064, 3
        %vm5066 = vcmp.lt.s32.totalorder %v5065, 2
        %vm5067 = vcmp.eq.s32.totalorder %v5065, 0
        %v5068 = vxor.u32 %v5062, 2147483648
        %v5069 = vsel %vm5067, %v5061, %v5068
        %vm5070 = vcmp.eq.s32.totalorder %v5065, 2
        %v5071 = vxor.u32 %v5061, 2147483648
        %v5072 = vsel %vm5070, %v5071, %v5062
        %v5073 = vsel %vm5066, %v5069, %v5072
        %v5074 = vsel %vm5063, nan, %v5073
        %v5075 = vand.u32 2147483647, %v4144
        %vm5076 = vcmp.le.f32.partialorder %v5075, 0.7853982
        %vm5077 = vcmp.lt.s32.totalorder %v4144, 0
        %v5078 = vand.u32 %v4144, 2139095040
        %v5079 = vshrl.u32 %v5078, 23
        %v5080 = vsub.s32 %v5079, 127
        %v5081 = vand.u32 2147483647, %v4144
        %v5082 = vand.u32 %v5081, 8388607
        %v5083 = vor.u32 %v5082, 8388608
        %v5084 = vsub.s32 0, %v5083
        %v5085 = vadd.s32 %v5080, 1
        %vm5086 = vcmp.gt.s32.totalorder %v5085, 0
        %v5087 = vsel %vm5086, %v5085, 0
        %v5088 = vshrl.u32 %v5087, 5
        %v5089 = vand.u32 %v5087, 31
        %v5090 = vsub.s32 32, %v5089
        %v5091 = vshrl.u32 683565275, %v5090
        %v5092 = vshll.u32 683565275, %v5089
        %v5093 = vshrl.u32 2475754826, %v5090
        %v5094 = vor.u32 %v5092, %v5093
        %v5095 = vshll.u32 2475754826, %v5089
        %v5096 = vshrl.u32 2131351028, %v5090
        %v5097 = vor.u32 %v5095, %v5096
        %v5098 = vshll.u32 2131351028, %v5089
        %v5099 = vshrl.u32 2102212464, %v5090
        %v5100 = vor.u32 %v5098, %v5099
        %v5101 = vshll.u32 2102212464, %v5089
        %v5102 = vshrl.u32 920167782, %v5090
        %v5103 = vor.u32 %v5101, %v5102
        %v5104 = vshll.u32 920167782, %v5089
        %v5105 = vshrl.u32 1326507024, %v5090
        %v5106 = vor.u32 %v5104, %v5105
        %vm5107 = vcmp.lt.s32.totalorder %v5088, 1
        %vm5108 = vcmp.lt.s32.totalorder %v5088, 2
        %vm5109 = vcmp.lt.s32.totalorder %v5088, 3
        %vm5110 = vcmp.lt.s32.totalorder %v5088, 4
        %v5111 = vsel %vm5107, %v5091, %v5094
        %v5112 = vsel %vm5110, %v5100, 2102212464
        %v5113 = vsel %vm5109, %v5097, %v5112
        %v5114 = vsel %vm5108, %v5111, %v5113
        %v5115 = vsel %vm5107, %v5094, %v5097
        %v5116 = vsel %vm5110, %v5103, 920167782
        %v5117 = vsel %vm5109, %v5100, %v5116
        %v5118 = vsel %vm5108, %v5115, %v5117
        %v5119 = vsel %vm5107, %v5097, %v5100
        %v5120 = vsel %vm5110, %v5106, 1326507024
        %v5121 = vsel %vm5109, %v5103, %v5120
        %v5122 = vsel %vm5108, %v5119, %v5121
        %v5123 = vshll.u32 %v5083, 8
        %v5124 = vmul.u32.u64.compose %v5123, %v5122
        %v5125 = vextract.low.u32 %v5124
        %v5126 = vextract.high.u32 %v5124
        %v5127 = vmul.u32.u64.compose %v5123, %v5118
        %v5128 = vextract.low.u32 %v5127
        %v5129 = vextract.high.u32 %v5127
        %v5130 = vmul.u32 %v5123, %v5114
        %v5131 = vadd.s32 %v5126, %v5128
        %vm5132 = vc.u32 %v5126, %v5128
        %v5133 = vadd.s32 %v5129, 1
        %v5134 = vsel %vm5132, %v5133, %v5129
        %v5135 = vadd.s32 %v5130, %v5134
        %v5136 = vadd.s32 %v5135, 536870912
        %v5137 = vshrl.u32 %v5136, 30
        %v5138 = vshll.u32 %v5137, 30
        %v5139 = vsub.s32 %v5135, %v5138
        %vm5140 = vcmp.lt.s32.totalorder %v5139, 0
        %v5141 = vsub.s32 0, %v5139
        %v5142 = vsel %vm5140, %v5141, %v5139
        %v5143 = vclz %v5142
        %v5144 = vsub.s32 %v5143, 2
        %vm5145 = vcmp.gt.s32.totalorder 0, %v5144
        %v5146 = vsel %vm5145, 0, %v5144
        %v5147 = vsub.s32 32, %v5146
        %v5148 = vshll.u32 %v5139, %v5146
        %v5149 = vshrl.u32 %v5131, %v5147
        %v5150 = vor.u32 %v5148, %v5149
        %v5151 = vsub.s32 4294967266, %v5146
        %v5152 = vadd.s32 %v5151, 127
        %v5153 = vshll.u32 %v5152, 23
        %v5154 = vor.u32 4788187, %v5153
        %v5155 = vand.u32 2147483647, %v5154
        %v5157 = vcvt.s32.f32 %v5150
        %v5158 = vmul.f32 %v5157, %v5155
        %v5159 = vxor.u32 %v5158, 2147483648
        %v5160 = vsel %vm5077, %v5159, %v5158
        %v5161 = vsub.s32 4, %v5137
        %v5162 = vsel %vm5077, %v5161, %v5137
        %v5163 = vsel %vm5076, %v4144, %v5160
        %v5164 = vsel %vm5076, 0, %v5162
        %v5165 = vcosq.f32.pop %v5163
        %v5166 = vsinq.f32.pop %v5163
        %vm5167 = vweird.f32 %v4144
        %v5168 = vadd.s32 %v5164, 3
        %v5169 = vand.u32 %v5168, 3
        %vm5170 = vcmp.lt.s32.totalorder %v5169, 2
        %vm5171 = vcmp.eq.s32.totalorder %v5169, 0
        %v5172 = vxor.u32 %v5166, 2147483648
        %v5173 = vsel %vm5171, %v5165, %v5172
        %vm5174 = vcmp.eq.s32.totalorder %v5169, 2
        %v5175 = vxor.u32 %v5165, 2147483648
        %v5176 = vsel %vm5174, %v5175, %v5166
        %v5177 = vsel %vm5170, %v5173, %v5176
        %v5178 = vsel %vm5167, nan, %v5177
        %v5179 = vand.u32 2147483647, %v4146
        %vm5180 = vcmp.le.f32.partialorder %v5179, 0.7853982
        %vm5181 = vcmp.lt.s32.totalorder %v4146, 0
        %v5182 = vand.u32 %v4146, 2139095040
        %v5183 = vshrl.u32 %v5182, 23
        %v5184 = vsub.s32 %v5183, 127
        %v5185 = vand.u32 2147483647, %v4146
        %v5186 = vand.u32 %v5185, 8388607
        %v5187 = vor.u32 %v5186, 8388608
        %v5188 = vsub.s32 0, %v5187
        %v5189 = vadd.s32 %v5184, 1
        %vm5190 = vcmp.gt.s32.totalorder %v5189, 0
        %v5191 = vsel %vm5190, %v5189, 0
        %v5192 = vshrl.u32 %v5191, 5
        %v5193 = vand.u32 %v5191, 31
        %v5194 = vsub.s32 32, %v5193
        %v5195 = vshrl.u32 683565275, %v5194
        %v5196 = vshll.u32 683565275, %v5193
        %v5197 = vshrl.u32 2475754826, %v5194
        %v5198 = vor.u32 %v5196, %v5197
        %v5199 = vshll.u32 2475754826, %v5193
        %v5200 = vshrl.u32 2131351028, %v5194
        %v5201 = vor.u32 %v5199, %v5200
        %v5202 = vshll.u32 2131351028, %v5193
        %v5203 = vshrl.u32 2102212464, %v5194
        %v5204 = vor.u32 %v5202, %v5203
        %v5205 = vshll.u32 2102212464, %v5193
        %v5206 = vshrl.u32 920167782, %v5194
        %v5207 = vor.u32 %v5205, %v5206
        %v5208 = vshll.u32 920167782, %v5193
        %v5209 = vshrl.u32 1326507024, %v5194
        %v5210 = vor.u32 %v5208, %v5209
        %vm5211 = vcmp.lt.s32.totalorder %v5192, 1
        %vm5212 = vcmp.lt.s32.totalorder %v5192, 2
        %vm5213 = vcmp.lt.s32.totalorder %v5192, 3
        %vm5214 = vcmp.lt.s32.totalorder %v5192, 4
        %v5215 = vsel %vm5211, %v5195, %v5198
        %v5216 = vsel %vm5214, %v5204, 2102212464
        %v5217 = vsel %vm5213, %v5201, %v5216
        %v5218 = vsel %vm5212, %v5215, %v5217
        %v5219 = vsel %vm5211, %v5198, %v5201
        %v5220 = vsel %vm5214, %v5207, 920167782
        %v5221 = vsel %vm5213, %v5204, %v5220
        %v5222 = vsel %vm5212, %v5219, %v5221
        %v5223 = vsel %vm5211, %v5201, %v5204
        %v5224 = vsel %vm5214, %v5210, 1326507024
        %v5225 = vsel %vm5213, %v5207, %v5224
        %v5226 = vsel %vm5212, %v5223, %v5225
        %v5227 = vshll.u32 %v5187, 8
        %v5228 = vmul.u32.u64.compose %v5227, %v5226
        %v5229 = vextract.low.u32 %v5228
        %v5230 = vextract.high.u32 %v5228
        %v5231 = vmul.u32.u64.compose %v5227, %v5222
        %v5232 = vextract.low.u32 %v5231
        %v5233 = vextract.high.u32 %v5231
        %v5234 = vmul.u32 %v5227, %v5218
        %v5235 = vadd.s32 %v5230, %v5232
        %vm5236 = vc.u32 %v5230, %v5232
        %v5237 = vadd.s32 %v5233, 1
        %v5238 = vsel %vm5236, %v5237, %v5233
        %v5239 = vadd.s32 %v5234, %v5238
        %v5240 = vadd.s32 %v5239, 536870912
        %v5241 = vshrl.u32 %v5240, 30
        %v5242 = vshll.u32 %v5241, 30
        %v5243 = vsub.s32 %v5239, %v5242
        %vm5244 = vcmp.lt.s32.totalorder %v5243, 0
        %v5245 = vsub.s32 0, %v5243
        %v5246 = vsel %vm5244, %v5245, %v5243
        %v5247 = vclz %v5246
        %v5248 = vsub.s32 %v5247, 2
        %vm5249 = vcmp.gt.s32.totalorder 0, %v5248
        %v5250 = vsel %vm5249, 0, %v5248
        %v5251 = vsub.s32 32, %v5250
        %v5252 = vshll.u32 %v5243, %v5250
        %v5253 = vshrl.u32 %v5235, %v5251
        %v5254 = vor.u32 %v5252, %v5253
        %v5255 = vsub.s32 4294967266, %v5250
        %v5256 = vadd.s32 %v5255, 127
        %v5257 = vshll.u32 %v5256, 23
        %v5258 = vor.u32 4788187, %v5257
        %v5259 = vand.u32 2147483647, %v5258
        %v5261 = vcvt.s32.f32 %v5254
        %v5262 = vmul.f32 %v5261, %v5259
        %v5263 = vxor.u32 %v5262, 2147483648
        %v5264 = vsel %vm5181, %v5263, %v5262
        %v5265 = vsub.s32 4, %v5241
        %v5266 = vsel %vm5181, %v5265, %v5241
        %v5267 = vsel %vm5180, %v4146, %v5264
        %v5268 = vsel %vm5180, 0, %v5266
        %v5269 = vcosq.f32.pop %v5267
        %v5270 = vsinq.f32.pop %v5267
        %vm5271 = vweird.f32 %v4146
        %v5272 = vadd.s32 %v5268, 3
        %v5273 = vand.u32 %v5272, 3
        %vm5274 = vcmp.lt.s32.totalorder %v5273, 2
        %vm5275 = vcmp.eq.s32.totalorder %v5273, 0
        %v5276 = vxor.u32 %v5270, 2147483648
        %v5277 = vsel %vm5275, %v5269, %v5276
        %vm5278 = vcmp.eq.s32.totalorder %v5273, 2
        %v5279 = vxor.u32 %v5269, 2147483648
        %v5280 = vsel %vm5278, %v5279, %v5270
        %v5281 = vsel %vm5274, %v5277, %v5280
        %v5282 = vsel %vm5271, nan, %v5281
        %v5283 = vand.u32 2147483647, %v4233
        %vm5284 = vcmp.le.f32.partialorder %v5283, 0.7853982
        %vm5285 = vcmp.lt.s32.totalorder %v4233, 0
        %v5286 = vand.u32 %v4233, 2139095040
        %v5287 = vshrl.u32 %v5286, 23
        %v5288 = vsub.s32 %v5287, 127
        %v5289 = vand.u32 2147483647, %v4233
        %v5290 = vand.u32 %v5289, 8388607
        %v5291 = vor.u32 %v5290, 8388608
        %v5292 = vsub.s32 0, %v5291
        %v5293 = vadd.s32 %v5288, 1
        %vm5294 = vcmp.gt.s32.totalorder %v5293, 0
        %v5295 = vsel %vm5294, %v5293, 0
        %v5296 = vshrl.u32 %v5295, 5
        %v5297 = vand.u32 %v5295, 31
        %v5298 = vsub.s32 32, %v5297
        %v5299 = vshrl.u32 683565275, %v5298
        %v5300 = vshll.u32 683565275, %v5297
        %v5301 = vshrl.u32 2475754826, %v5298
        %v5302 = vor.u32 %v5300, %v5301
        %v5303 = vshll.u32 2475754826, %v5297
        %v5304 = vshrl.u32 2131351028, %v5298
        %v5305 = vor.u32 %v5303, %v5304
        %v5306 = vshll.u32 2131351028, %v5297
        %v5307 = vshrl.u32 2102212464, %v5298
        %v5308 = vor.u32 %v5306, %v5307
        %v5309 = vshll.u32 2102212464, %v5297
        %v5310 = vshrl.u32 920167782, %v5298
        %v5311 = vor.u32 %v5309, %v5310
        %v5312 = vshll.u32 920167782, %v5297
        %v5313 = vshrl.u32 1326507024, %v5298
        %v5314 = vor.u32 %v5312, %v5313
        %vm5315 = vcmp.lt.s32.totalorder %v5296, 1
        %vm5316 = vcmp.lt.s32.totalorder %v5296, 2
        %vm5317 = vcmp.lt.s32.totalorder %v5296, 3
        %vm5318 = vcmp.lt.s32.totalorder %v5296, 4
        %v5319 = vsel %vm5315, %v5299, %v5302
        %v5320 = vsel %vm5318, %v5308, 2102212464
        %v5321 = vsel %vm5317, %v5305, %v5320
        %v5322 = vsel %vm5316, %v5319, %v5321
        %v5323 = vsel %vm5315, %v5302, %v5305
        %v5324 = vsel %vm5318, %v5311, 920167782
        %v5325 = vsel %vm5317, %v5308, %v5324
        %v5326 = vsel %vm5316, %v5323, %v5325
        %v5327 = vsel %vm5315, %v5305, %v5308
        %v5328 = vsel %vm5318, %v5314, 1326507024
        %v5329 = vsel %vm5317, %v5311, %v5328
        %v5330 = vsel %vm5316, %v5327, %v5329
        %v5331 = vshll.u32 %v5291, 8
        %v5332 = vmul.u32.u64.compose %v5331, %v5330
        %v5333 = vextract.low.u32 %v5332
        %v5334 = vextract.high.u32 %v5332
        %v5335 = vmul.u32.u64.compose %v5331, %v5326
        %v5336 = vextract.low.u32 %v5335
        %v5337 = vextract.high.u32 %v5335
        %v5338 = vmul.u32 %v5331, %v5322
        %v5339 = vadd.s32 %v5334, %v5336
        %vm5340 = vc.u32 %v5334, %v5336
        %v5341 = vadd.s32 %v5337, 1
        %v5342 = vsel %vm5340, %v5341, %v5337
        %v5343 = vadd.s32 %v5338, %v5342
        %v5344 = vadd.s32 %v5343, 536870912
        %v5345 = vshrl.u32 %v5344, 30
        %v5346 = vshll.u32 %v5345, 30
        %v5347 = vsub.s32 %v5343, %v5346
        %vm5348 = vcmp.lt.s32.totalorder %v5347, 0
        %v5349 = vsub.s32 0, %v5347
        %v5350 = vsel %vm5348, %v5349, %v5347
        %v5351 = vclz %v5350
        %v5352 = vsub.s32 %v5351, 2
        %vm5353 = vcmp.gt.s32.totalorder 0, %v5352
        %v5354 = vsel %vm5353, 0, %v5352
        %v5355 = vsub.s32 32, %v5354
        %v5356 = vshll.u32 %v5347, %v5354
        %v5357 = vshrl.u32 %v5339, %v5355
        %v5358 = vor.u32 %v5356, %v5357
        %v5359 = vsub.s32 4294967266, %v5354
        %v5360 = vadd.s32 %v5359, 127
        %v5361 = vshll.u32 %v5360, 23
        %v5362 = vor.u32 4788187, %v5361
        %v5363 = vand.u32 2147483647, %v5362
        %v5365 = vcvt.s32.f32 %v5358
        %v5366 = vmul.f32 %v5365, %v5363
        %v5367 = vxor.u32 %v5366, 2147483648
        %v5368 = vsel %vm5285, %v5367, %v5366
        %v5369 = vsub.s32 4, %v5345
        %v5370 = vsel %vm5285, %v5369, %v5345
        %v5371 = vsel %vm5284, %v4233, %v5368
        %v5372 = vsel %vm5284, 0, %v5370
        %v5373 = vcosq.f32.pop %v5371
        %v5374 = vsinq.f32.pop %v5371
        %vm5375 = vweird.f32 %v4233
        %v5376 = vadd.s32 %v5372, 3
        %v5377 = vand.u32 %v5376, 3
        %vm5378 = vcmp.lt.s32.totalorder %v5377, 2
        %vm5379 = vcmp.eq.s32.totalorder %v5377, 0
        %v5380 = vxor.u32 %v5374, 2147483648
        %v5381 = vsel %vm5379, %v5373, %v5380
        %vm5382 = vcmp.eq.s32.totalorder %v5377, 2
        %v5383 = vxor.u32 %v5373, 2147483648
        %v5384 = vsel %vm5382, %v5383, %v5374
        %v5385 = vsel %vm5378, %v5381, %v5384
        %v5386 = vsel %vm5375, nan, %v5385
        %v5387 = vand.u32 2147483647, %v4235
        %vm5388 = vcmp.le.f32.partialorder %v5387, 0.7853982
        %vm5389 = vcmp.lt.s32.totalorder %v4235, 0
        %v5390 = vand.u32 %v4235, 2139095040
        %v5391 = vshrl.u32 %v5390, 23
        %v5392 = vsub.s32 %v5391, 127
        %v5393 = vand.u32 2147483647, %v4235
        %v5394 = vand.u32 %v5393, 8388607
        %v5395 = vor.u32 %v5394, 8388608
        %v5396 = vsub.s32 0, %v5395
        %v5397 = vadd.s32 %v5392, 1
        %vm5398 = vcmp.gt.s32.totalorder %v5397, 0
        %v5399 = vsel %vm5398, %v5397, 0
        %v5400 = vshrl.u32 %v5399, 5
        %v5401 = vand.u32 %v5399, 31
        %v5402 = vsub.s32 32, %v5401
        %v5403 = vshrl.u32 683565275, %v5402
        %v5404 = vshll.u32 683565275, %v5401
        %v5405 = vshrl.u32 2475754826, %v5402
        %v5406 = vor.u32 %v5404, %v5405
        %v5407 = vshll.u32 2475754826, %v5401
        %v5408 = vshrl.u32 2131351028, %v5402
        %v5409 = vor.u32 %v5407, %v5408
        %v5410 = vshll.u32 2131351028, %v5401
        %v5411 = vshrl.u32 2102212464, %v5402
        %v5412 = vor.u32 %v5410, %v5411
        %v5413 = vshll.u32 2102212464, %v5401
        %v5414 = vshrl.u32 920167782, %v5402
        %v5415 = vor.u32 %v5413, %v5414
        %v5416 = vshll.u32 920167782, %v5401
        %v5417 = vshrl.u32 1326507024, %v5402
        %v5418 = vor.u32 %v5416, %v5417
        %vm5419 = vcmp.lt.s32.totalorder %v5400, 1
        %vm5420 = vcmp.lt.s32.totalorder %v5400, 2
        %vm5421 = vcmp.lt.s32.totalorder %v5400, 3
        %vm5422 = vcmp.lt.s32.totalorder %v5400, 4
        %v5423 = vsel %vm5419, %v5403, %v5406
        %v5424 = vsel %vm5422, %v5412, 2102212464
        %v5425 = vsel %vm5421, %v5409, %v5424
        %v5426 = vsel %vm5420, %v5423, %v5425
        %v5427 = vsel %vm5419, %v5406, %v5409
        %v5428 = vsel %vm5422, %v5415, 920167782
        %v5429 = vsel %vm5421, %v5412, %v5428
        %v5430 = vsel %vm5420, %v5427, %v5429
        %v5431 = vsel %vm5419, %v5409, %v5412
        %v5432 = vsel %vm5422, %v5418, 1326507024
        %v5433 = vsel %vm5421, %v5415, %v5432
        %v5434 = vsel %vm5420, %v5431, %v5433
        %v5435 = vshll.u32 %v5395, 8
        %v5436 = vmul.u32.u64.compose %v5435, %v5434
        %v5437 = vextract.low.u32 %v5436
        %v5438 = vextract.high.u32 %v5436
        %v5439 = vmul.u32.u64.compose %v5435, %v5430
        %v5440 = vextract.low.u32 %v5439
        %v5441 = vextract.high.u32 %v5439
        %v5442 = vmul.u32 %v5435, %v5426
        %v5443 = vadd.s32 %v5438, %v5440
        %vm5444 = vc.u32 %v5438, %v5440
        %v5445 = vadd.s32 %v5441, 1
        %v5446 = vsel %vm5444, %v5445, %v5441
        %v5447 = vadd.s32 %v5442, %v5446
        %v5448 = vadd.s32 %v5447, 536870912
        %v5449 = vshrl.u32 %v5448, 30
        %v5450 = vshll.u32 %v5449, 30
        %v5451 = vsub.s32 %v5447, %v5450
        %vm5452 = vcmp.lt.s32.totalorder %v5451, 0
        %v5453 = vsub.s32 0, %v5451
        %v5454 = vsel %vm5452, %v5453, %v5451
        %v5455 = vclz %v5454
        %v5456 = vsub.s32 %v5455, 2
        %vm5457 = vcmp.gt.s32.totalorder 0, %v5456
        %v5458 = vsel %vm5457, 0, %v5456
        %v5459 = vsub.s32 32, %v5458
        %v5460 = vshll.u32 %v5451, %v5458
        %v5461 = vshrl.u32 %v5443, %v5459
        %v5462 = vor.u32 %v5460, %v5461
        %v5463 = vsub.s32 4294967266, %v5458
        %v5464 = vadd.s32 %v5463, 127
        %v5465 = vshll.u32 %v5464, 23
        %v5466 = vor.u32 4788187, %v5465
        %v5467 = vand.u32 2147483647, %v5466
        %v5469 = vcvt.s32.f32 %v5462
        %v5470 = vmul.f32 %v5469, %v5467
        %v5471 = vxor.u32 %v5470, 2147483648
        %v5472 = vsel %vm5389, %v5471, %v5470
        %v5473 = vsub.s32 4, %v5449
        %v5474 = vsel %vm5389, %v5473, %v5449
        %v5475 = vsel %vm5388, %v4235, %v5472
        %v5476 = vsel %vm5388, 0, %v5474
        %v5477 = vcosq.f32.pop %v5475
        %v5478 = vsinq.f32.pop %v5475
        %vm5479 = vweird.f32 %v4235
        %v5480 = vadd.s32 %v5476, 3
        %v5481 = vand.u32 %v5480, 3
        %vm5482 = vcmp.lt.s32.totalorder %v5481, 2
        %vm5483 = vcmp.eq.s32.totalorder %v5481, 0
        %v5484 = vxor.u32 %v5478, 2147483648
        %v5485 = vsel %vm5483, %v5477, %v5484
        %vm5486 = vcmp.eq.s32.totalorder %v5481, 2
        %v5487 = vxor.u32 %v5477, 2147483648
        %v5488 = vsel %vm5486, %v5487, %v5478
        %v5489 = vsel %vm5482, %v5485, %v5488
        %v5490 = vsel %vm5479, nan, %v5489
        %v5491 = vand.u32 2147483647, %v4150
        %vm5492 = vcmp.le.f32.partialorder %v5491, 0.7853982
        %vm5493 = vcmp.lt.s32.totalorder %v4150, 0
        %v5494 = vand.u32 %v4150, 2139095040
        %v5495 = vshrl.u32 %v5494, 23
        %v5496 = vsub.s32 %v5495, 127
        %v5497 = vand.u32 2147483647, %v4150
        %v5498 = vand.u32 %v5497, 8388607
        %v5499 = vor.u32 %v5498, 8388608
        %v5500 = vsub.s32 0, %v5499
        %v5501 = vadd.s32 %v5496, 1
        %vm5502 = vcmp.gt.s32.totalorder %v5501, 0
        %v5503 = vsel %vm5502, %v5501, 0
        %v5504 = vshrl.u32 %v5503, 5
        %v5505 = vand.u32 %v5503, 31
        %v5506 = vsub.s32 32, %v5505
        %v5507 = vshrl.u32 683565275, %v5506
        %v5508 = vshll.u32 683565275, %v5505
        %v5509 = vshrl.u32 2475754826, %v5506
        %v5510 = vor.u32 %v5508, %v5509
        %v5511 = vshll.u32 2475754826, %v5505
        %v5512 = vshrl.u32 2131351028, %v5506
        %v5513 = vor.u32 %v5511, %v5512
        %v5514 = vshll.u32 2131351028, %v5505
        %v5515 = vshrl.u32 2102212464, %v5506
        %v5516 = vor.u32 %v5514, %v5515
        %v5517 = vshll.u32 2102212464, %v5505
        %v5518 = vshrl.u32 920167782, %v5506
        %v5519 = vor.u32 %v5517, %v5518
        %v5520 = vshll.u32 920167782, %v5505
        %v5521 = vshrl.u32 1326507024, %v5506
        %v5522 = vor.u32 %v5520, %v5521
        %vm5523 = vcmp.lt.s32.totalorder %v5504, 1
        %vm5524 = vcmp.lt.s32.totalorder %v5504, 2
        %vm5525 = vcmp.lt.s32.totalorder %v5504, 3
        %vm5526 = vcmp.lt.s32.totalorder %v5504, 4
        %v5527 = vsel %vm5523, %v5507, %v5510
        %v5528 = vsel %vm5526, %v5516, 2102212464
        %v5529 = vsel %vm5525, %v5513, %v5528
        %v5530 = vsel %vm5524, %v5527, %v5529
        %v5531 = vsel %vm5523, %v5510, %v5513
        %v5532 = vsel %vm5526, %v5519, 920167782
        %v5533 = vsel %vm5525, %v5516, %v5532
        %v5534 = vsel %vm5524, %v5531, %v5533
        %v5535 = vsel %vm5523, %v5513, %v5516
        %v5536 = vsel %vm5526, %v5522, 1326507024
        %v5537 = vsel %vm5525, %v5519, %v5536
        %v5538 = vsel %vm5524, %v5535, %v5537
        %v5539 = vshll.u32 %v5499, 8
        %v5540 = vmul.u32.u64.compose %v5539, %v5538
        %v5541 = vextract.low.u32 %v5540
        %v5542 = vextract.high.u32 %v5540
        %v5543 = vmul.u32.u64.compose %v5539, %v5534
        %v5544 = vextract.low.u32 %v5543
        %v5545 = vextract.high.u32 %v5543
        %v5546 = vmul.u32 %v5539, %v5530
        %v5547 = vadd.s32 %v5542, %v5544
        %vm5548 = vc.u32 %v5542, %v5544
        %v5549 = vadd.s32 %v5545, 1
        %v5550 = vsel %vm5548, %v5549, %v5545
        %v5551 = vadd.s32 %v5546, %v5550
        %v5552 = vadd.s32 %v5551, 536870912
        %v5553 = vshrl.u32 %v5552, 30
        %v5554 = vshll.u32 %v5553, 30
        %v5555 = vsub.s32 %v5551, %v5554
        %vm5556 = vcmp.lt.s32.totalorder %v5555, 0
        %v5557 = vsub.s32 0, %v5555
        %v5558 = vsel %vm5556, %v5557, %v5555
        %v5559 = vclz %v5558
        %v5560 = vsub.s32 %v5559, 2
        %vm5561 = vcmp.gt.s32.totalorder 0, %v5560
        %v5562 = vsel %vm5561, 0, %v5560
        %v5563 = vsub.s32 32, %v5562
        %v5564 = vshll.u32 %v5555, %v5562
        %v5565 = vshrl.u32 %v5547, %v5563
        %v5566 = vor.u32 %v5564, %v5565
        %v5567 = vsub.s32 4294967266, %v5562
        %v5568 = vadd.s32 %v5567, 127
        %v5569 = vshll.u32 %v5568, 23
        %v5570 = vor.u32 4788187, %v5569
        %v5571 = vand.u32 2147483647, %v5570
        %v5573 = vcvt.s32.f32 %v5566
        %v5574 = vmul.f32 %v5573, %v5571
        %v5575 = vxor.u32 %v5574, 2147483648
        %v5576 = vsel %vm5493, %v5575, %v5574
        %v5577 = vsub.s32 4, %v5553
        %v5578 = vsel %vm5493, %v5577, %v5553
        %v5579 = vsel %vm5492, %v4150, %v5576
        %v5580 = vsel %vm5492, 0, %v5578
        %v5581 = vcosq.f32.pop %v5579
        %v5582 = vsinq.f32.pop %v5579
        %vm5583 = vweird.f32 %v4150
        %v5584 = vadd.s32 %v5580, 3
        %v5585 = vand.u32 %v5584, 3
        %vm5586 = vcmp.lt.s32.totalorder %v5585, 2
        %vm5587 = vcmp.eq.s32.totalorder %v5585, 0
        %v5588 = vxor.u32 %v5582, 2147483648
        %v5589 = vsel %vm5587, %v5581, %v5588
        %vm5590 = vcmp.eq.s32.totalorder %v5585, 2
        %v5591 = vxor.u32 %v5581, 2147483648
        %v5592 = vsel %vm5590, %v5591, %v5582
        %v5593 = vsel %vm5586, %v5589, %v5592
        %v5594 = vsel %vm5583, nan, %v5593
        %v5595 = vand.u32 2147483647, %v4152
        %vm5596 = vcmp.le.f32.partialorder %v5595, 0.7853982
        %vm5597 = vcmp.lt.s32.totalorder %v4152, 0
        %v5598 = vand.u32 %v4152, 2139095040
        %v5599 = vshrl.u32 %v5598, 23
        %v5600 = vsub.s32 %v5599, 127
        %v5601 = vand.u32 2147483647, %v4152
        %v5602 = vand.u32 %v5601, 8388607
        %v5603 = vor.u32 %v5602, 8388608
        %v5604 = vsub.s32 0, %v5603
        %v5605 = vadd.s32 %v5600, 1
        %vm5606 = vcmp.gt.s32.totalorder %v5605, 0
        %v5607 = vsel %vm5606, %v5605, 0
        %v5608 = vshrl.u32 %v5607, 5
        %v5609 = vand.u32 %v5607, 31
        %v5610 = vsub.s32 32, %v5609
        %v5611 = vshrl.u32 683565275, %v5610
        %v5612 = vshll.u32 683565275, %v5609
        %v5613 = vshrl.u32 2475754826, %v5610
        %v5614 = vor.u32 %v5612, %v5613
        %v5615 = vshll.u32 2475754826, %v5609
        %v5616 = vshrl.u32 2131351028, %v5610
        %v5617 = vor.u32 %v5615, %v5616
        %v5618 = vshll.u32 2131351028, %v5609
        %v5619 = vshrl.u32 2102212464, %v5610
        %v5620 = vor.u32 %v5618, %v5619
        %v5621 = vshll.u32 2102212464, %v5609
        %v5622 = vshrl.u32 920167782, %v5610
        %v5623 = vor.u32 %v5621, %v5622
        %v5624 = vshll.u32 920167782, %v5609
        %v5625 = vshrl.u32 1326507024, %v5610
        %v5626 = vor.u32 %v5624, %v5625
        %vm5627 = vcmp.lt.s32.totalorder %v5608, 1
        %vm5628 = vcmp.lt.s32.totalorder %v5608, 2
        %vm5629 = vcmp.lt.s32.totalorder %v5608, 3
        %vm5630 = vcmp.lt.s32.totalorder %v5608, 4
        %v5631 = vsel %vm5627, %v5611, %v5614
        %v5632 = vsel %vm5630, %v5620, 2102212464
        %v5633 = vsel %vm5629, %v5617, %v5632
        %v5634 = vsel %vm5628, %v5631, %v5633
        %v5635 = vsel %vm5627, %v5614, %v5617
        %v5636 = vsel %vm5630, %v5623, 920167782
        %v5637 = vsel %vm5629, %v5620, %v5636
        %v5638 = vsel %vm5628, %v5635, %v5637
        %v5639 = vsel %vm5627, %v5617, %v5620
        %v5640 = vsel %vm5630, %v5626, 1326507024
        %v5641 = vsel %vm5629, %v5623, %v5640
        %v5642 = vsel %vm5628, %v5639, %v5641
        %v5643 = vshll.u32 %v5603, 8
        %v5644 = vmul.u32.u64.compose %v5643, %v5642
        %v5645 = vextract.low.u32 %v5644
        %v5646 = vextract.high.u32 %v5644
        %v5647 = vmul.u32.u64.compose %v5643, %v5638
        %v5648 = vextract.low.u32 %v5647
        %v5649 = vextract.high.u32 %v5647
        %v5650 = vmul.u32 %v5643, %v5634
        %v5651 = vadd.s32 %v5646, %v5648
        %vm5652 = vc.u32 %v5646, %v5648
        %v5653 = vadd.s32 %v5649, 1
        %v5654 = vsel %vm5652, %v5653, %v5649
        %v5655 = vadd.s32 %v5650, %v5654
        %v5656 = vadd.s32 %v5655, 536870912
        %v5657 = vshrl.u32 %v5656, 30
        %v5658 = vshll.u32 %v5657, 30
        %v5659 = vsub.s32 %v5655, %v5658
        %vm5660 = vcmp.lt.s32.totalorder %v5659, 0
        %v5661 = vsub.s32 0, %v5659
        %v5662 = vsel %vm5660, %v5661, %v5659
        %v5663 = vclz %v5662
        %v5664 = vsub.s32 %v5663, 2
        %vm5665 = vcmp.gt.s32.totalorder 0, %v5664
        %v5666 = vsel %vm5665, 0, %v5664
        %v5667 = vsub.s32 32, %v5666
        %v5668 = vshll.u32 %v5659, %v5666
        %v5669 = vshrl.u32 %v5651, %v5667
        %v5670 = vor.u32 %v5668, %v5669
        %v5671 = vsub.s32 4294967266, %v5666
        %v5672 = vadd.s32 %v5671, 127
        %v5673 = vshll.u32 %v5672, 23
        %v5674 = vor.u32 4788187, %v5673
        %v5675 = vand.u32 2147483647, %v5674
        %v5677 = vcvt.s32.f32 %v5670
        %v5678 = vmul.f32 %v5677, %v5675
        %v5679 = vxor.u32 %v5678, 2147483648
        %v5680 = vsel %vm5597, %v5679, %v5678
        %v5681 = vsub.s32 4, %v5657
        %v5682 = vsel %vm5597, %v5681, %v5657
        %v5683 = vsel %vm5596, %v4152, %v5680
        %v5684 = vsel %vm5596, 0, %v5682
        %v5685 = vcosq.f32.pop %v5683
        %v5686 = vsinq.f32.pop %v5683
        %vm5687 = vweird.f32 %v4152
        %v5688 = vadd.s32 %v5684, 3
        %v5689 = vand.u32 %v5688, 3
        %vm5690 = vcmp.lt.s32.totalorder %v5689, 2
        %vm5691 = vcmp.eq.s32.totalorder %v5689, 0
        %v5692 = vxor.u32 %v5686, 2147483648
        %v5693 = vsel %vm5691, %v5685, %v5692
        %vm5694 = vcmp.eq.s32.totalorder %v5689, 2
        %v5695 = vxor.u32 %v5685, 2147483648
        %v5696 = vsel %vm5694, %v5695, %v5686
        %v5697 = vsel %vm5690, %v5693, %v5696
        %v5698 = vsel %vm5687, nan, %v5697
        %v5699 = vand.u32 2147483647, %v4239
        %vm5700 = vcmp.le.f32.partialorder %v5699, 0.7853982
        %vm5701 = vcmp.lt.s32.totalorder %v4239, 0
        %v5702 = vand.u32 %v4239, 2139095040
        %v5703 = vshrl.u32 %v5702, 23
        %v5704 = vsub.s32 %v5703, 127
        %v5705 = vand.u32 2147483647, %v4239
        %v5706 = vand.u32 %v5705, 8388607
        %v5707 = vor.u32 %v5706, 8388608
        %v5708 = vsub.s32 0, %v5707
        %v5709 = vadd.s32 %v5704, 1
        %vm5710 = vcmp.gt.s32.totalorder %v5709, 0
        %v5711 = vsel %vm5710, %v5709, 0
        %v5712 = vshrl.u32 %v5711, 5
        %v5713 = vand.u32 %v5711, 31
        %v5714 = vsub.s32 32, %v5713
        %v5715 = vshrl.u32 683565275, %v5714
        %v5716 = vshll.u32 683565275, %v5713
        %v5717 = vshrl.u32 2475754826, %v5714
        %v5718 = vor.u32 %v5716, %v5717
        %v5719 = vshll.u32 2475754826, %v5713
        %v5720 = vshrl.u32 2131351028, %v5714
        %v5721 = vor.u32 %v5719, %v5720
        %v5722 = vshll.u32 2131351028, %v5713
        %v5723 = vshrl.u32 2102212464, %v5714
        %v5724 = vor.u32 %v5722, %v5723
        %v5725 = vshll.u32 2102212464, %v5713
        %v5726 = vshrl.u32 920167782, %v5714
        %v5727 = vor.u32 %v5725, %v5726
        %v5728 = vshll.u32 920167782, %v5713
        %v5729 = vshrl.u32 1326507024, %v5714
        %v5730 = vor.u32 %v5728, %v5729
        %vm5731 = vcmp.lt.s32.totalorder %v5712, 1
        %vm5732 = vcmp.lt.s32.totalorder %v5712, 2
        %vm5733 = vcmp.lt.s32.totalorder %v5712, 3
        %vm5734 = vcmp.lt.s32.totalorder %v5712, 4
        %v5735 = vsel %vm5731, %v5715, %v5718
        %v5736 = vsel %vm5734, %v5724, 2102212464
        %v5737 = vsel %vm5733, %v5721, %v5736
        %v5738 = vsel %vm5732, %v5735, %v5737
        %v5739 = vsel %vm5731, %v5718, %v5721
        %v5740 = vsel %vm5734, %v5727, 920167782
        %v5741 = vsel %vm5733, %v5724, %v5740
        %v5742 = vsel %vm5732, %v5739, %v5741
        %v5743 = vsel %vm5731, %v5721, %v5724
        %v5744 = vsel %vm5734, %v5730, 1326507024
        %v5745 = vsel %vm5733, %v5727, %v5744
        %v5746 = vsel %vm5732, %v5743, %v5745
        %v5747 = vshll.u32 %v5707, 8
        %v5748 = vmul.u32.u64.compose %v5747, %v5746
        %v5749 = vextract.low.u32 %v5748
        %v5750 = vextract.high.u32 %v5748
        %v5751 = vmul.u32.u64.compose %v5747, %v5742
        %v5752 = vextract.low.u32 %v5751
        %v5753 = vextract.high.u32 %v5751
        %v5754 = vmul.u32 %v5747, %v5738
        %v5755 = vadd.s32 %v5750, %v5752
        %vm5756 = vc.u32 %v5750, %v5752
        %v5757 = vadd.s32 %v5753, 1
        %v5758 = vsel %vm5756, %v5757, %v5753
        %v5759 = vadd.s32 %v5754, %v5758
        %v5760 = vadd.s32 %v5759, 536870912
        %v5761 = vshrl.u32 %v5760, 30
        %v5762 = vshll.u32 %v5761, 30
        %v5763 = vsub.s32 %v5759, %v5762
        %vm5764 = vcmp.lt.s32.totalorder %v5763, 0
        %v5765 = vsub.s32 0, %v5763
        %v5766 = vsel %vm5764, %v5765, %v5763
        %v5767 = vclz %v5766
        %v5768 = vsub.s32 %v5767, 2
        %vm5769 = vcmp.gt.s32.totalorder 0, %v5768
        %v5770 = vsel %vm5769, 0, %v5768
        %v5771 = vsub.s32 32, %v5770
        %v5772 = vshll.u32 %v5763, %v5770
        %v5773 = vshrl.u32 %v5755, %v5771
        %v5774 = vor.u32 %v5772, %v5773
        %v5775 = vsub.s32 4294967266, %v5770
        %v5776 = vadd.s32 %v5775, 127
        %v5777 = vshll.u32 %v5776, 23
        %v5778 = vor.u32 4788187, %v5777
        %v5779 = vand.u32 2147483647, %v5778
        %v5781 = vcvt.s32.f32 %v5774
        %v5782 = vmul.f32 %v5781, %v5779
        %v5783 = vxor.u32 %v5782, 2147483648
        %v5784 = vsel %vm5701, %v5783, %v5782
        %v5785 = vsub.s32 4, %v5761
        %v5786 = vsel %vm5701, %v5785, %v5761
        %v5787 = vsel %vm5700, %v4239, %v5784
        %v5788 = vsel %vm5700, 0, %v5786
        %v5789 = vcosq.f32.pop %v5787
        %v5790 = vsinq.f32.pop %v5787
        %vm5791 = vweird.f32 %v4239
        %v5792 = vadd.s32 %v5788, 3
        %v5793 = vand.u32 %v5792, 3
        %vm5794 = vcmp.lt.s32.totalorder %v5793, 2
        %vm5795 = vcmp.eq.s32.totalorder %v5793, 0
        %v5796 = vxor.u32 %v5790, 2147483648
        %v5797 = vsel %vm5795, %v5789, %v5796
        %vm5798 = vcmp.eq.s32.totalorder %v5793, 2
        %v5799 = vxor.u32 %v5789, 2147483648
        %v5800 = vsel %vm5798, %v5799, %v5790
        %v5801 = vsel %vm5794, %v5797, %v5800
        %v5802 = vsel %vm5791, nan, %v5801
        %v5803 = vand.u32 2147483647, %v4241
        %vm5804 = vcmp.le.f32.partialorder %v5803, 0.7853982
        %vm5805 = vcmp.lt.s32.totalorder %v4241, 0
        %v5806 = vand.u32 %v4241, 2139095040
        %v5807 = vshrl.u32 %v5806, 23
        %v5808 = vsub.s32 %v5807, 127
        %v5809 = vand.u32 2147483647, %v4241
        %v5810 = vand.u32 %v5809, 8388607
        %v5811 = vor.u32 %v5810, 8388608
        %v5812 = vsub.s32 0, %v5811
        %v5813 = vadd.s32 %v5808, 1
        %vm5814 = vcmp.gt.s32.totalorder %v5813, 0
        %v5815 = vsel %vm5814, %v5813, 0
        %v5816 = vshrl.u32 %v5815, 5
        %v5817 = vand.u32 %v5815, 31
        %v5818 = vsub.s32 32, %v5817
        %v5819 = vshrl.u32 683565275, %v5818
        %v5820 = vshll.u32 683565275, %v5817
        %v5821 = vshrl.u32 2475754826, %v5818
        %v5822 = vor.u32 %v5820, %v5821
        %v5823 = vshll.u32 2475754826, %v5817
        %v5824 = vshrl.u32 2131351028, %v5818
        %v5825 = vor.u32 %v5823, %v5824
        %v5826 = vshll.u32 2131351028, %v5817
        %v5827 = vshrl.u32 2102212464, %v5818
        %v5828 = vor.u32 %v5826, %v5827
        %v5829 = vshll.u32 2102212464, %v5817
        %v5830 = vshrl.u32 920167782, %v5818
        %v5831 = vor.u32 %v5829, %v5830
        %v5832 = vshll.u32 920167782, %v5817
        %v5833 = vshrl.u32 1326507024, %v5818
        %v5834 = vor.u32 %v5832, %v5833
        %vm5835 = vcmp.lt.s32.totalorder %v5816, 1
        %vm5836 = vcmp.lt.s32.totalorder %v5816, 2
        %vm5837 = vcmp.lt.s32.totalorder %v5816, 3
        %vm5838 = vcmp.lt.s32.totalorder %v5816, 4
        %v5839 = vsel %vm5835, %v5819, %v5822
        %v5840 = vsel %vm5838, %v5828, 2102212464
        %v5841 = vsel %vm5837, %v5825, %v5840
        %v5842 = vsel %vm5836, %v5839, %v5841
        %v5843 = vsel %vm5835, %v5822, %v5825
        %v5844 = vsel %vm5838, %v5831, 920167782
        %v5845 = vsel %vm5837, %v5828, %v5844
        %v5846 = vsel %vm5836, %v5843, %v5845
        %v5847 = vsel %vm5835, %v5825, %v5828
        %v5848 = vsel %vm5838, %v5834, 1326507024
        %v5849 = vsel %vm5837, %v5831, %v5848
        %v5850 = vsel %vm5836, %v5847, %v5849
        %v5851 = vshll.u32 %v5811, 8
        %v5852 = vmul.u32.u64.compose %v5851, %v5850
        %v5853 = vextract.low.u32 %v5852
        %v5854 = vextract.high.u32 %v5852
        %v5855 = vmul.u32.u64.compose %v5851, %v5846
        %v5856 = vextract.low.u32 %v5855
        %v5857 = vextract.high.u32 %v5855
        %v5858 = vmul.u32 %v5851, %v5842
        %v5859 = vadd.s32 %v5854, %v5856
        %vm5860 = vc.u32 %v5854, %v5856
        %v5861 = vadd.s32 %v5857, 1
        %v5862 = vsel %vm5860, %v5861, %v5857
        %v5863 = vadd.s32 %v5858, %v5862
        %v5864 = vadd.s32 %v5863, 536870912
        %v5865 = vshrl.u32 %v5864, 30
        %v5866 = vshll.u32 %v5865, 30
        %v5867 = vsub.s32 %v5863, %v5866
        %vm5868 = vcmp.lt.s32.totalorder %v5867, 0
        %v5869 = vsub.s32 0, %v5867
        %v5870 = vsel %vm5868, %v5869, %v5867
        %v5871 = vclz %v5870
        %v5872 = vsub.s32 %v5871, 2
        %vm5873 = vcmp.gt.s32.totalorder 0, %v5872
        %v5874 = vsel %vm5873, 0, %v5872
        %v5875 = vsub.s32 32, %v5874
        %v5876 = vshll.u32 %v5867, %v5874
        %v5877 = vshrl.u32 %v5859, %v5875
        %v5878 = vor.u32 %v5876, %v5877
        %v5879 = vsub.s32 4294967266, %v5874
        %v5880 = vadd.s32 %v5879, 127
        %v5881 = vshll.u32 %v5880, 23
        %v5882 = vor.u32 4788187, %v5881
        %v5883 = vand.u32 2147483647, %v5882
        %v5885 = vcvt.s32.f32 %v5878
        %v5886 = vmul.f32 %v5885, %v5883
        %v5887 = vxor.u32 %v5886, 2147483648
        %v5888 = vsel %vm5805, %v5887, %v5886
        %v5889 = vsub.s32 4, %v5865
        %v5890 = vsel %vm5805, %v5889, %v5865
        %v5891 = vsel %vm5804, %v4241, %v5888
        %v5892 = vsel %vm5804, 0, %v5890
        %v5893 = vcosq.f32.pop %v5891
        %v5894 = vsinq.f32.pop %v5891
        %vm5895 = vweird.f32 %v4241
        %v5896 = vadd.s32 %v5892, 3
        %v5897 = vand.u32 %v5896, 3
        %vm5898 = vcmp.lt.s32.totalorder %v5897, 2
        %vm5899 = vcmp.eq.s32.totalorder %v5897, 0
        %v5900 = vxor.u32 %v5894, 2147483648
        %v5901 = vsel %vm5899, %v5893, %v5900
        %vm5902 = vcmp.eq.s32.totalorder %v5897, 2
        %v5903 = vxor.u32 %v5893, 2147483648
        %v5904 = vsel %vm5902, %v5903, %v5894
        %v5905 = vsel %vm5898, %v5901, %v5904
        %v5906 = vsel %vm5895, nan, %v5905
        %5907 = vst [vmem:[#allocation2 + $0x120] sm:$0xff] %v4346
        %5908 = vst [vmem:[#allocation2 + $0x128] sm:$0xff] %v4450
        %5909 = vst [vmem:[#allocation2 + $0x130] sm:$0xff] %v4554
        %5910 = vst [vmem:[#allocation2 + $0x138] sm:$0xff] %v4658
        %5911 = vst [vmem:[#allocation2 + $0x140] sm:$0xff] %v4762
        %5912 = vst [vmem:[#allocation2 + $0x148] sm:$0xff] %v4866
        %5913 = vst [vmem:[#allocation2 + $0x150] sm:$0xff] %v4970
        %5914 = vst [vmem:[#allocation2 + $0x158] sm:$0xff] %v5074
        %5915 = vst [vmem:[#allocation2 + $0x160] sm:$0xff] %v5178
        %5916 = vst [vmem:[#allocation2 + $0x168] sm:$0xff] %v5282
        %5917 = vst [vmem:[#allocation2 + $0x170] sm:$0xff] %v5386
        %5918 = vst [vmem:[#allocation2 + $0x178] sm:$0xff] %v5490
        %5919 = vst [vmem:[#allocation2 + $0x180] sm:$0xff] %v5594
        %5920 = vst [vmem:[#allocation2 + $0x188] sm:$0xff] %v5698
        %5921 = vst [vmem:[#allocation2 + $0x190] sm:$0xff] %v5802
        %5922 = vst [vmem:[#allocation2 + $0x198] sm:$0xff] %v5906
        %v5923 = vld [vmem:[#allocation8] sm:$0xff]
        %v5924 = vld [vmem:[#allocation2] sm:$0xff]
        %v5925 = vld [vmem:[#allocation2 + $0x8] sm:$0xff]
        %v5926 = vld [vmem:[#allocation2 + $0x10] sm:$0xff]
        %v5927 = vld [vmem:[#allocation2 + $0x18] sm:$0xff]
        %v5928 = vld [vmem:[#allocation2 + $0x20] sm:$0xff]
        %v5929 = vld [vmem:[#allocation2 + $0x28] sm:$0xff]
        %v5930 = vld [vmem:[#allocation2 + $0x30] sm:$0xff]
        %v5931 = vld [vmem:[#allocation2 + $0x38] sm:$0xff]
        %v5932 = vld [vmem:[#allocation2 + $0x40] sm:$0xff]
        %v5933 = vld [vmem:[#allocation2 + $0x48] sm:$0xff]
        %v5934 = vld [vmem:[#allocation2 + $0x50] sm:$0xff]
        %v5935 = vld [vmem:[#allocation2 + $0x58] sm:$0xff]
        %v5936 = vld [vmem:[#allocation2 + $0x60] sm:$0xff]
        %v5937 = vld [vmem:[#allocation2 + $0x68] sm:$0xff]
        %v5938 = vld [vmem:[#allocation2 + $0x70] sm:$0xff]
        %v5939 = vld [vmem:[#allocation2 + $0x78] sm:$0xff]
        %v5940 = vld [vmem:[#allocation2 + $0x80] sm:$0xff]
        %v5941 = vld [vmem:[#allocation2 + $0x88] sm:$0xff]
        %v5942 = vld [vmem:[#allocation2 + $0x90] sm:$0xff]
        %v5943 = vld [vmem:[#allocation2 + $0x98] sm:$0xff]
        %v5944 = vld [vmem:[#allocation2 + $0xa0] sm:$0xff]
        %v5945 = vld [vmem:[#allocation2 + $0xa8] sm:$0xff]
        %v5946 = vld [vmem:[#allocation2 + $0xb0] sm:$0xff]
        %v5947 = vld [vmem:[#allocation2 + $0xb8] sm:$0xff]
        %v5948 = vld [vmem:[#allocation2 + $0xc0] sm:$0xff]
        %v5949 = vld [vmem:[#allocation2 + $0xc8] sm:$0xff]
        %v5950 = vld [vmem:[#allocation2 + $0xd0] sm:$0xff]
        %v5951 = vld [vmem:[#allocation2 + $0xd8] sm:$0xff]
        %v5952 = vld [vmem:[#allocation2 + $0xe0] sm:$0xff]
        %v5953 = vld [vmem:[#allocation2 + $0xe8] sm:$0xff]
        %v5954 = vld [vmem:[#allocation2 + $0xf0] sm:$0xff]
        %v5955 = vld [vmem:[#allocation2 + $0xf8] sm:$0xff]
        %v5956 = vld [vmem:[#allocation2 + $0x100] sm:$0xff]
        %v5957 = vld [vmem:[#allocation2 + $0x108] sm:$0xff]
        %v5958 = vld [vmem:[#allocation2 + $0x110] sm:$0xff]
        %v5959 = vld [vmem:[#allocation2 + $0x118] sm:$0xff]
        %v5960 = vld [vmem:[#allocation2 + $0x120] sm:$0xff]
        %v5961 = vld [vmem:[#allocation2 + $0x128] sm:$0xff]
        %v5962 = vld [vmem:[#allocation2 + $0x130] sm:$0xff]
        %v5963 = vld [vmem:[#allocation2 + $0x138] sm:$0xff]
        %v5964 = vld [vmem:[#allocation2 + $0x140] sm:$0xff]
        %v5965 = vld [vmem:[#allocation2 + $0x148] sm:$0xff]
        %v5966 = vld [vmem:[#allocation2 + $0x150] sm:$0xff]
        %v5967 = vld [vmem:[#allocation2 + $0x158] sm:$0xff]
        %v5968 = vld [vmem:[#allocation2 + $0x160] sm:$0xff]
        %v5969 = vld [vmem:[#allocation2 + $0x168] sm:$0xff]
        %v5970 = vld [vmem:[#allocation2 + $0x170] sm:$0xff]
        %v5971 = vld [vmem:[#allocation2 + $0x178] sm:$0xff]
        %v5972 = vld [vmem:[#allocation2 + $0x180] sm:$0xff]
        %v5973 = vld [vmem:[#allocation2 + $0x188] sm:$0xff]
        %v5974 = vld [vmem:[#allocation2 + $0x190] sm:$0xff]
        %v5975 = vld [vmem:[#allocation2 + $0x198] sm:$0xff]
        %vm5976 = vcmask 850944
        %v5978 = vsel %vm5976, %v5923, 0
        %5980 = vmatprep.subr.mxu0 %v5925
        %5981 = vmatpush1.msra.mxu0 %v5924
        %5982 = vmatprep.subr.mxu0 %v5929
        %5983 = vmatpush1.msra.mxu0 %v5928
        %5984 = vmatprep.subr.mxu0 %v5933
        %5985 = vmatpush1.msra.mxu0 %v5932
        %5986 = vmatprep.subr.mxu0 %v5937
        %5987 = vmatpush1.msra.mxu0 %v5936
        %5988 = vmatprep.subr.mxu0 %v5941
        %5989 = vmatpush1.msra.mxu0 %v5940
        %5990 = vmatprep.subr.mxu0 %v5945
        %5991 = vmatpush1.msra.mxu0 %v5944
        %5992 = vmatprep.subr.mxu0 %v5949
        %5993 = vmatpush1.msra.mxu0 %v5948
        %5994 = vmatprep.subr.mxu0 %v5953
        %5995 = vmatpush1.msra.mxu0 %v5952
        %5996 = vmatprep.subr.mxu0 %v5957
        %5997 = vmatpush1.msra.mxu0 %v5956
        %5998 = vmatprep.subr.mxu0 %v5961
        %5999 = vmatpush1.msra.mxu0 %v5960
        %6000 = vmatprep.subr.mxu0 %v5965
        %6001 = vmatpush1.msra.mxu0 %v5964
        %6002 = vmatprep.subr.mxu0 %v5969
        %6003 = vmatpush1.msra.mxu0 %v5968
        %6004 = vmatprep.subr.mxu0 %v5973
        %6005 = vmatpush1.msra.mxu0 %v5972
        %6006 = vmatprep.subr.mxu0 0.0
        %6007 = vmatpush1.msra.mxu0 0.0
        %6008 = vmatprep.subr.mxu0 0.0
        %6009 = vmatpush1.msra.mxu0 0.0
        %6010 = vmatprep.subr.mxu0 0.0
        %6011 = vmatpush1.msra.mxu0 0.0
        %6012 = vmatprep.subr.mxu0 0.0
        %6013 = vmatpush1.msra.mxu0 0.0
        %6014 = vmatprep.subr.mxu0 0.0
        %6015 = vmatpush1.msra.mxu0 0.0
        %6016 = vmatprep.subr.mxu0 0.0
        %6017 = vmatpush1.msra.mxu0 0.0
        %6018 = vmatprep.subr.mxu0 0.0
        %6019 = vmatpush1.msra.mxu0 0.0
        %6020 = vmatprep.subr.mxu0 0.0
        %6021 = vmatpush1.msra.mxu0 0.0
        %6022 = vmatprep.subr.mxu0 0.0
        %6023 = vmatpush1.msra.mxu0 0.0
        %6024 = vmatprep.subr.mxu0 0.0
        %6025 = vmatpush1.msra.mxu0 0.0
        %6026 = vmatprep.subr.mxu0 0.0
        %6027 = vmatpush1.msra.mxu0 0.0
        %6028 = vmatprep.subr.mxu0 0.0
        %6029 = vmatpush1.msra.mxu0 0.0
        %6030 = vmatprep.subr.mxu0 0.0
        %6031 = vmatpush1.msra.mxu0 0.0
        %6032 = vmatprep.subr.mxu0 0.0
        %6033 = vmatpush1.msra.mxu0 0.0
        %6034 = vmatprep.subr.mxu0 0.0
        %6035 = vmatpush1.msra.mxu0 0.0
        %6036 = vmatprep.subr.mxu0 0.0
        %6037 = vmatpush1.msra.mxu0 0.0
        %6038 = vmatprep.subr.mxu0 0.0
        %6039 = vmatpush1.msra.mxu0 0.0
        %6040 = vmatprep.subr.mxu0 0.0
        %6041 = vmatpush1.msra.mxu0 0.0
        %6042 = vmatprep.subr.mxu0 0.0
        %6043 = vmatpush1.msra.mxu0 0.0
        %6044 = vmatprep.mubr.f32.mxu0 0.0
        %6045 = vmatmul.mubr.f32.gmra.mrb[0].mxu0 %v5978
        %v6046 = vpop.f32.mrb[0].mxu0
        %v6047 = vadd.f32 0.0, %v6046
        %v6048 = vpop.f32.mrb[0].mxu0
        %v6049 = vadd.f32 0.0, %v6048
        %6050 = vdwg.mxu0
        %6051 = vmatprep.subr.mxu0 %v5927
        %6052 = vmatpush1.msra.mxu0 %v5926
        %6053 = vmatprep.subr.mxu0 %v5931
        %6054 = vmatpush1.msra.mxu0 %v5930
        %6055 = vmatprep.subr.mxu0 %v5935
        %6056 = vmatpush1.msra.mxu0 %v5934
        %6057 = vmatprep.subr.mxu0 %v5939
        %6058 = vmatpush1.msra.mxu0 %v5938
        %6059 = vmatprep.subr.mxu0 %v5943
        %6060 = vmatpush1.msra.mxu0 %v5942
        %6061 = vmatprep.subr.mxu0 %v5947
        %6062 = vmatpush1.msra.mxu0 %v5946
        %6063 = vmatprep.subr.mxu0 %v5951
        %6064 = vmatpush1.msra.mxu0 %v5950
        %6065 = vmatprep.subr.mxu0 %v5955
        %6066 = vmatpush1.msra.mxu0 %v5954
        %6067 = vmatprep.subr.mxu0 %v5959
        %6068 = vmatpush1.msra.mxu0 %v5958
        %6069 = vmatprep.subr.mxu0 %v5963
        %6070 = vmatpush1.msra.mxu0 %v5962
        %6071 = vmatprep.subr.mxu0 %v5967
        %6072 = vmatpush1.msra.mxu0 %v5966
        %6073 = vmatprep.subr.mxu0 %v5971
        %6074 = vmatpush1.msra.mxu0 %v5970
        %6075 = vmatprep.subr.mxu0 %v5975
        %6076 = vmatpush1.msra.mxu0 %v5974
        %6077 = vmatprep.subr.mxu0 0.0
        %6078 = vmatpush1.msra.mxu0 0.0
        %6079 = vmatprep.subr.mxu0 0.0
        %6080 = vmatpush1.msra.mxu0 0.0
        %6081 = vmatprep.subr.mxu0 0.0
        %6082 = vmatpush1.msra.mxu0 0.0
        %6083 = vmatprep.subr.mxu0 0.0
        %6084 = vmatpush1.msra.mxu0 0.0
        %6085 = vmatprep.subr.mxu0 0.0
        %6086 = vmatpush1.msra.mxu0 0.0
        %6087 = vmatprep.subr.mxu0 0.0
        %6088 = vmatpush1.msra.mxu0 0.0
        %6089 = vmatprep.subr.mxu0 0.0
        %6090 = vmatpush1.msra.mxu0 0.0
        %6091 = vmatprep.subr.mxu0 0.0
        %6092 = vmatpush1.msra.mxu0 0.0
        %6093 = vmatprep.subr.mxu0 0.0
        %6094 = vmatpush1.msra.mxu0 0.0
        %6095 = vmatprep.subr.mxu0 0.0
        %6096 = vmatpush1.msra.mxu0 0.0
        %6097 = vmatprep.subr.mxu0 0.0
        %6098 = vmatpush1.msra.mxu0 0.0
        %6099 = vmatprep.subr.mxu0 0.0
        %6100 = vmatpush1.msra.mxu0 0.0
        %6101 = vmatprep.subr.mxu0 0.0
        %6102 = vmatpush1.msra.mxu0 0.0
        %6103 = vmatprep.subr.mxu0 0.0
        %6104 = vmatpush1.msra.mxu0 0.0
        %6105 = vmatprep.subr.mxu0 0.0
        %6106 = vmatpush1.msra.mxu0 0.0
        %6107 = vmatprep.subr.mxu0 0.0
        %6108 = vmatpush1.msra.mxu0 0.0
        %6109 = vmatprep.subr.mxu0 0.0
        %6110 = vmatpush1.msra.mxu0 0.0
        %6111 = vmatprep.subr.mxu0 0.0
        %6112 = vmatpush1.msra.mxu0 0.0
        %6113 = vmatprep.subr.mxu0 0.0
        %6114 = vmatpush1.msra.mxu0 0.0
        %6115 = vmatprep.mubr.f32.mxu0 0.0
        %6116 = vmatmul.mubr.f32.gmra.mrb[0].mxu0 %v5978
        %v6117 = vpop.f32.mrb[0].mxu0
        %v6118 = vadd.f32 0.0, %v6117
        %v6119 = vpop.f32.mrb[0].mxu0
        %v6120 = vadd.f32 0.0, %v6119
        %6121 = vdwg.mxu0
        %6122 = vst [vmem:[%s213] sm:$0xff] %v6047
        %6123 = vst [vmem:[%s213 + $0x8] sm:$0xff] %v6049
        %6124 = vst [vmem:[%s213 + $0x10] sm:$0xff] %v6118
        %6125 = vst [vmem:[%s213 + $0x18] sm:$0xff] %v6120
        %s6126 = sand.u32 %s97, 1
        %s6127 = scalar_lea.sflag [#allocation5], %s6126
        %s6128 = sand.u32 %s97, 1
        %s6129 = smul.addr %s6128, 32
        %s6130 = scalar_lea.vmem [#allocation9], %s6129
        // Predicated region
        $region45: #{tpu_custom_call.1} parent=31 // pred_check
          %p6131 = pneg %p107
        $region46: #{tpu_custom_call.1} parent=31 // pred_check_branch
          %6133 = sbr.rel (%p6131) target = $region48
        $region47: #{tpu_custom_call.1} parent=31 // pred_region
          %s6134 = smul.u32 4, %s21
          %s6136 = ssub.s32 512, 512
          %6137 = vsyncadd %s6127, %s6136
          %s6138 = smul.addr %s6134, 128
          %s6139 = scalar_lea.hbm %s3, %s6138
          %s6141 = sshll.u32 %s6130, 4
          %s6142 = int_to_ptr.vmem [resolvable:$true] %s6141
          %6144 = dma.vmem_to_hbm [thread:$0]  %s6142, 512, %s6139, %s6127
        $region48: #{tpu_custom_call.1} parent=31 // pred_fallthru
          _
      $region32: #{tpu_custom_call.1} parent=5 // pred_fallthru
        _
      %p6145 = scmp.le.s32.totalorder 2, %s16
      // Predicated region
      $region49: #{tpu_custom_call.1} parent=5 // pred_check
        %p6146 = pneg %p6145
      $region50: #{tpu_custom_call.1} parent=5 // pred_check_branch
        %6148 = sbr.rel (%p6146) target = $region52
      $region51: #{tpu_custom_call.1} parent=5 // pred_region
        %s6149 = ssub.s32 %s16, 2
        // Predicated region
        $region53: #{tpu_custom_call.1} parent=51 // pred_check
          %p6150 = pneg %p113
        $region54: #{tpu_custom_call.1} parent=51 // pred_check_branch
          %6152 = sbr.rel (%p6150) target = $region56
        $region55: #{tpu_custom_call.1} parent=51 // pred_region
          %s6153 = sand.u32 %s98, 1
          %s6154 = scalar_lea.sflag [#allocation5], %s6153
          %s6155 = sand.u32 %s98, 1
          %s6156 = smul.addr %s6155, 32
          %s6157 = scalar_lea.vmem [#allocation9], %s6156
          %6158 = dma.done %s6154, 512
        $region56: #{tpu_custom_call.1} parent=51 // pred_fallthru
          _
      $region52: #{tpu_custom_call.1} parent=5 // pred_fallthru
        _
    $region6: #{tpu_custom_call.1} parent=1 // loop_footer
      %s20 = sadd.s32 1, %s16
    $region7: #{tpu_custom_call.1} parent=1 // loop_footer_branch
      %15 = sbr.rel target = $region3
    $region8: #{tpu_custom_call.1} parent=1 // loop_exit
      _
    %6159 = vsyncpa [#allocation4], 1
    %s6160 = scalar_lea.sflag [#allocation4], 1
    %6161 = vsyncpa %s6160, 1
    %6162 = vsyncpa [#allocation7], 1
    %6163 = vsyncpa [#allocation5], 1
    %s6164 = scalar_lea.sflag [#allocation5], 1
    %6165 = vsyncpa %s6164, 1

</llo_original>
